<compile_context>
chip_gen: v6e
topology: v6e:2x2x1
jax: 0.10.0
libtpu: 0.0.40
codegen_flags: <defaults>
</compile_context>

<pallas_src>
import functools

import jax
import jax.numpy as jnp
from jax import lax
from jax.experimental import pallas as pl
from jax.experimental.pallas import tpu as pltpu


def _log_sigmoid(x):
    # numerically stable log(sigmoid(x)) = min(x, 0) - log(1 + exp(-|x|))
    return jnp.minimum(x, 0.0) - jnp.log(1.0 + jnp.exp(-jnp.abs(x)))


def _cumsum_rows(x, n_rows):
    """Inclusive cumsum along axis 0 (Hillis-Steele: XLU rolls + VPU adds).

    Keeps the cumulative-gate computation off the MXU, which is the
    saturating unit for the attention matmuls.
    """
    row = lax.broadcasted_iota(jnp.int32, x.shape, 0)
    acc = x
    shift = 1
    while shift < n_rows:
        shifted = pltpu.roll(acc, shift=shift, axis=0)
        acc = acc + jnp.where(row >= shift, shifted, 0.0)
        shift *= 2
    return acc


def _gla_kernel(x_ref, w_in_ref, wgk2_ref, bgk2_ref, wnorm_ref, wo_ref,
                mask_ref, out_ref, y_ref, state_ref, *,
                num_heads, head_qk, head_v, key_dim, value_dim, chunk,
                gate_logit_normalizer, eps):
    f32, bf16 = jnp.float32, jnp.bfloat16
    dot = functools.partial(jnp.dot, preferred_element_type=f32)
    dotg = functools.partial(lax.dot_general, preferred_element_type=f32)

    K, V, C = key_dim, value_dim, chunk
    H, dk, dv = num_heads, head_qk, head_v

    # Reset the carried per-head state at the start of every sequence.
    @pl.when(pl.program_id(1) == 0)
    def _():
        state_ref[...] = jnp.zeros_like(state_ref)

    xb = x_ref[0].astype(bf16)                            # (C, D)

    # One fused lane-dense projection: [q | k | v | g | gk_lowrank].
    proj = dot(xb, w_in_ref[...])                         # (C, 2K+2V+R) f32
    q = proj[:, :K]
    k = proj[:, K:2 * K]
    v = proj[:, 2 * K:2 * K + V]
    g = proj[:, 2 * K + V:2 * K + 2 * V]
    low = proj[:, 2 * K + 2 * V:]

    gk = dot(low.astype(bf16), wgk2_ref[...]) + bgk2_ref[...]
    gk = _log_sigmoid(gk) / gate_logit_normalizer         # (C, K), <= 0

    # Chunk-relative inclusive cumulative log-gates -> bounded exponents.
    # TODO(synk): for extreme trained gate values a secondary sub-chunking of
    # the intra-chunk exp(-G) term (as in fla's fused_chunk_gla) would be
    # needed; not required at this chunk size / gate_logit_normalizer.
    cum_g = _cumsum_rows(gk, C)                           # (C, K)
    exp_pos = jnp.exp(cum_g)                              # exp(G)  <= 1
    exp_neg = pl.reciprocal(exp_pos, approx=True)         # exp(-G), reuse exp
    exp_last = exp_pos[C - 1:C, :]                        # (1, K), total decay

    # TODO(synk): fla's fused_chunk_gla default scale (head_qk ** -0.5) assumed.
    scale = dk ** -0.5
    qg = (q * exp_pos * scale).astype(bf16)               # q * exp(G) * scale
    kg_intra = (k * exp_neg).astype(bf16)                 # k * exp(-G)
    kg_state = (k * exp_neg * exp_last).astype(bf16)      # k * exp(G_last - G)
    vb = v.astype(bf16)

    mask = mask_ref[...] != 0.0                           # (C, C) causal incl.

    for h in range(H):                                    # static head unroll
        qk0, v0 = h * dk, h * dv
        q_h = qg[:, qk0:qk0 + dk]
        ki_h = kg_intra[:, qk0:qk0 + dk]
        ks_h = kg_state[:, qk0:qk0 + dk]
        v_h = vb[:, v0:v0 + dv]

        st = state_ref[h]                                 # (dv, dk) f32 = S^T

        # Inter-chunk: (q * exp(G)) @ S_prev   (state stored transposed).
        o_inter = dotg(q_h, st.astype(bf16), (((1,), (1,)), ((), ())))  # (C,dv)

        # Intra-chunk causal attention.
        attn = dotg(q_h, ki_h, (((1,), (1,)), ((), ())))                # (C,C)
        attn = jnp.where(mask, attn, 0.0)
        o_h = o_inter + dot(attn.astype(bf16), v_h)                     # (C,dv)

        # Carried state update: S^T <- S^T * exp(G_last) + v^T @ (k*exp(G_last-G)).
        state_ref[h] = (st * exp_last[:, qk0:qk0 + dk]
                        + dotg(v_h, ks_h, (((0,), (0,)), ((), ()))))

        # Per-head RMSNorm (norm weight + swish gate applied full-width below).
        ms = jnp.mean(o_h * o_h, axis=-1, keepdims=True)
        y_ref[:, v0:v0 + dv] = o_h * lax.rsqrt(ms + eps)

    # FusedRMSNormSwishGate tail (lane-dense over V) + output projection.
    swish = g * (1.0 / (1.0 + jnp.exp(-g)))
    y = (y_ref[...] * wnorm_ref[...] * swish).astype(bf16)              # (C, V)
    out_ref[0] = dot(y, wo_ref[...])                                    # (C, D)


def gated_linear_attention(x, params, *, num_heads, head_qk, head_v,
                           gate_logit_normalizer=16.0, eps=1e-5, chunk=64):
    B, N, D = x.shape
    K = num_heads * head_qk
    V = num_heads * head_v
    R = params["wgk1"].shape[1]
    C = min(chunk, N)
    assert N % C == 0, "sequence length must be a multiple of the chunk size"
    assert C == N or C % 8 == 0, "chunk must be a multiple of 8"
    n_chunks = N // C

    bf16 = jnp.bfloat16
    # Fused input projection [wq | wk | wv | wg | wgk1], cast bf16 for the MXU.
    w_in = jnp.concatenate(
        [params["wq"], params["wk"], params["wv"], params["wg"],
         params["wgk1"]], axis=1).astype(bf16)            # (D, 2K+2V+R)
    wgk2 = params["wgk2"].astype(bf16)                    # (R, K)
    bgk2 = params["bgk2"].reshape(1, K).astype(jnp.float32)
    wnorm = jnp.tile(params["wnorm"].astype(jnp.float32),
                     num_heads).reshape(1, V)             # per-head weight -> (1,V)
    wo = params["wo"].astype(bf16)                        # (V, D)
    # Causal (inclusive) mask built once on the host.
    mask = (jnp.arange(C)[:, None] >= jnp.arange(C)[None, :]).astype(jnp.float32)

    kernel = functools.partial(
        _gla_kernel, num_heads=num_heads, head_qk=head_qk, head_v=head_v,
        key_dim=K, value_dim=V, chunk=C,
        gate_logit_normalizer=float(gate_logit_normalizer), eps=float(eps))

    def full(arr):
        nd = arr.ndim
        return pl.BlockSpec(arr.shape, lambda b, c, _nd=nd: (0,) * _nd)

    # Explicit VMEM budget: weights + double-buffered x/out blocks + scratch +
    # chunk-local intermediates, with headroom; capped to fit v7x's 64 MiB.
    weight_bytes = sum(int(w.size) * w.dtype.itemsize
                       for w in (w_in, wgk2, bgk2, wnorm, wo, mask))
    io_bytes = 2 * 2 * C * D * 4
    scratch_bytes = (C * V + num_heads * head_v * head_qk) * 4
    interm_bytes = C * (2 * K + 2 * V + R) * 4 + 8 * C * K * 4 + 4 * C * V * 4 \
        + 2 * C * C * 4
    vmem_limit = int(min(60 * 1024 * 1024,
                         max(32 * 1024 * 1024,
                             3 * (weight_bytes + io_bytes + scratch_bytes
                                  + interm_bytes))))

    return pl.pallas_call(
        kernel,
        out_shape=jax.ShapeDtypeStruct((B, N, D), jnp.float32),
        grid=(B, n_chunks),
        in_specs=[
            pl.BlockSpec((1, C, D), lambda b, c: (b, c, 0)),   # x
            full(w_in), full(wgk2), full(bgk2), full(wnorm), full(wo),
            full(mask),
        ],
        out_specs=pl.BlockSpec((1, C, D), lambda b, c: (b, c, 0)),
        scratch_shapes=[
            pltpu.VMEM((C, V), jnp.float32),                          # y buffer
            pltpu.VMEM((num_heads, head_v, head_qk), jnp.float32),    # S^T/head
        ],
        compiler_params=pltpu.CompilerParams(
            dimension_semantics=("parallel", "arbitrary"),
            vmem_limit_bytes=vmem_limit),
    )(x, w_in, wgk2, bgk2, wnorm, wo, mask)


# ------------------------- pure-JAX reference (recurrent form) -------------
def reference(x, params, *, num_heads, head_qk, head_v,
              gate_logit_normalizer=16.0, eps=1e-5):
    B, N, D = x.shape
    H, dk, dv = num_heads, head_qk, head_v
    q = x @ params["wq"]
    k = x @ params["wk"]
    v = x @ params["wv"]
    g = x @ params["wg"]
    gk = (x @ params["wgk1"]) @ params["wgk2"] + params["bgk2"]
    gk = jax.nn.log_sigmoid(gk) / gate_logit_normalizer

    def to_heads(t, d):
        return t.reshape(B, N, H, d).transpose(0, 2, 1, 3)    # (B,H,N,d)

    qh, kh, gkh = to_heads(q, dk), to_heads(k, dk), to_heads(gk, dk)
    vh = to_heads(v, dv)
    scale = dk ** -0.5

    def per_head(q_, k_, v_, gk_):
        def step(S, inp):
            qt, kt, vt, gt = inp
            S = S * jnp.exp(gt)[:, None] + kt[:, None] * vt[None, :]
            return S, (qt * scale) @ S
        _, o = lax.scan(step, jnp.zeros((dk, dv), jnp.float32),
                        (q_, k_, v_, gk_))
        return o                                               # (N, dv)

    o = jax.vmap(jax.vmap(per_head))(qh, kh, vh, gkh)          # (B,H,N,dv)
    o = o.transpose(0, 2, 1, 3)                                # (B,N,H,dv)
    gh = g.reshape(B, N, H, dv)
    ms = jnp.mean(o * o, axis=-1, keepdims=True)
    o = o * lax.rsqrt(ms + eps) * params["wnorm"]
    o = o * (gh * jax.nn.sigmoid(gh))
    return o.reshape(B, N, H * dv) @ params["wo"]


# ------------------------------ parameter init ------------------------------
def init_params(key, d_model, key_dim, value_dim, gate_low_rank_dim, head_v):
    gain = 2.0 ** (-2.5)

    def xavier(k, fan_in, fan_out):
        bound = gain * (6.0 / (fan_in + fan_out)) ** 0.5
        return jax.random.uniform(k, (fan_in, fan_out), jnp.float32,
                                  -bound, bound)

    ks = jax.random.split(key, 8)
    bias_bound = 1.0 / (gate_low_rank_dim ** 0.5)
    return {
        "wq": xavier(ks[0], d_model, key_dim),
        "wk": xavier(ks[1], d_model, key_dim),
        "wv": xavier(ks[2], d_model, value_dim),
        "wg": xavier(ks[3], d_model, value_dim),
        "wgk1": xavier(ks[4], d_model, gate_low_rank_dim),
        "wgk2": xavier(ks[5], gate_low_rank_dim, key_dim),
        "bgk2": jax.random.uniform(ks[6], (key_dim,), jnp.float32,
                                   -bias_bound, bias_bound),
        "wnorm": jnp.ones((head_v,), jnp.float32),
        "wo": xavier(ks[7], value_dim, d_model),
    }


if __name__ == "__main__":
    # Small but multi-chunk config: N=128 with chunk=64 exercises the carried
    # state (2 chunks per sequence) against the step-by-step recurrence.
    B, N, D = 2, 128, 32
    num_heads = 4
    expand_k, expand_v = 1.0, 2.0
    key_dim = int(D * expand_k)          # 32
    value_dim = int(D * expand_v)        # 64
    head_qk = key_dim // num_heads       # 8
    head_v = value_dim // num_heads      # 16
    gate_low_rank_dim = 16
    chunk = 64

    root = jax.random.PRNGKey(0)
    kx, kp = jax.random.split(root)
    x = jax.random.normal(kx, (B, N, D), jnp.float32)
    params = init_params(kp, D, key_dim, value_dim, gate_low_rank_dim, head_v)

    out = gated_linear_attention(x, params, num_heads=num_heads,
                                 head_qk=head_qk, head_v=head_v, chunk=chunk)
    out = jax.block_until_ready(out)

    ref = reference(x, params, num_heads=num_heads,
                    head_qk=head_qk, head_v=head_v)

    assert out.shape == (B, N, D), out.shape
    assert bool(jnp.all(jnp.isfinite(out)))
    # Normalized max error; loose enough for bf16 MXU operands + approx recip,
    # tight enough to catch wrong gating / masking / state carry.
    denom = float(jnp.max(jnp.abs(ref))) + 1e-12
    err = float(jnp.max(jnp.abs(out - ref))) / denom
    if err > 5e-2:
        raise AssertionError(
            f"Pallas GLA kernel mismatch vs JAX reference (rel err {err:.3e})")
    print("KERNEL_OK")
</pallas_src>

<mosaic_0001>
module attributes {stable_mosaic.version = 11 : i64} {
  func.func @_gla_kernel(%arg0: i32, %arg1: i32, %arg2: memref<1x64x32xf32, #tpu.memory_space<vmem>>, %arg3: memref<32x208xbf16, #tpu.memory_space<vmem>>, %arg4: memref<16x32xbf16, #tpu.memory_space<vmem>>, %arg5: memref<1x32xf32, #tpu.memory_space<vmem>>, %arg6: memref<1x64xf32, #tpu.memory_space<vmem>>, %arg7: memref<64x32xbf16, #tpu.memory_space<vmem>>, %arg8: memref<64x64xf32, #tpu.memory_space<vmem>>, %arg9: memref<1x64x32xf32, #tpu.memory_space<vmem>>, %arg10: memref<64x64xf32, #tpu.memory_space<vmem>>, %arg11: memref<4x16x8xf32, #tpu.memory_space<vmem>>) attributes {dimension_semantics = [#tpu.dimension_semantics<parallel>, #tpu.dimension_semantics<arbitrary>], iteration_bounds = array<i64: 2, 2>, scalar_prefetch = 0 : i64, scratch_operands = 2 : i64, tpu.core_type = #tpu.core_type<tc>, window_params = [{transform_indices = @transform_0, window_bounds = array<i64: 1, 64, 32>}, {pipeline_mode = #tpu.pipeline_mode<synchronous>, transform_indices = @transform_1, window_bounds = array<i64: 32, 208>}, {pipeline_mode = #tpu.pipeline_mode<synchronous>, transform_indices = @transform_2, window_bounds = array<i64: 16, 32>}, {pipeline_mode = #tpu.pipeline_mode<synchronous>, transform_indices = @transform_3, window_bounds = array<i64: 1, 32>}, {pipeline_mode = #tpu.pipeline_mode<synchronous>, transform_indices = @transform_4, window_bounds = array<i64: 1, 64>}, {pipeline_mode = #tpu.pipeline_mode<synchronous>, transform_indices = @transform_5, window_bounds = array<i64: 64, 32>}, {pipeline_mode = #tpu.pipeline_mode<synchronous>, transform_indices = @transform_6, window_bounds = array<i64: 64, 64>}, {transform_indices = @transform_7, window_bounds = array<i64: 1, 64, 32>}]} {
    %c0_i32 = arith.constant 0 : i32
    %0 = arith.cmpi eq, %arg1, %c0_i32 : i32
    %1 = arith.extui %0 : i1 to i32
    %c0_i32_0 = arith.constant 0 : i32
    %2 = arith.cmpi ne, %1, %c0_i32_0 : i32
    scf.if %2 {
      %cst_101 = arith.constant 0.000000e+00 : f32
      %236 = vector.broadcast %cst_101 : f32 to vector<4x16x8xf32>
      %c0_102 = arith.constant 0 : index
      %c0_103 = arith.constant 0 : index
      %c0_104 = arith.constant 0 : index
      %237 = vector.load %arg11[%c0_102, %c0_103, %c0_104] : memref<4x16x8xf32, #tpu.memory_space<vmem>>, vector<4x16x8xf32>
      tpu.vector_store %arg11[%c0_102, %c0_103, %c0_104], %236 {strides = array<i32>} : memref<4x16x8xf32, #tpu.memory_space<vmem>>, vector<4x16x8xf32>,
    } else {
    }
    %c0 = arith.constant 0 : index
    %c0_1 = arith.constant 0 : index
    %c0_2 = arith.constant 0 : index
    %3 = vector.load %arg2[%c0, %c0_1, %c0_2] : memref<1x64x32xf32, #tpu.memory_space<vmem>>, vector<1x64x32xf32>
    %4 = vector.shape_cast %3 : vector<1x64x32xf32> to vector<64x32xf32>
    %5 = arith.truncf %4 : vector<64x32xf32> to vector<64x32xbf16>
    %c0_3 = arith.constant 0 : index
    %c0_4 = arith.constant 0 : index
    %6 = vector.load %arg3[%c0_3, %c0_4] : memref<32x208xbf16, #tpu.memory_space<vmem>>, vector<32x208xbf16>
    %cst = arith.constant dense<0.000000e+00> : vector<64x208xf32>
    %7 = tpu.matmul %5, %6, %cst {dimension_numbers = #tpu.dot_dimension_numbers<[1], [0], [0], [1], [0, 0, 1, 1], [], []>} : vector<64x32xbf16>, vector<32x208xbf16>, vector<64x208xf32> -> vector<64x208xf32>
    %8 = vector.extract_strided_slice %7 {offsets = [0, 0], sizes = [64, 32], strides = [1, 1]} : vector<64x208xf32> to vector<64x32xf32>
    %9 = vector.extract_strided_slice %7 {offsets = [0, 32], sizes = [64, 32], strides = [1, 1]} : vector<64x208xf32> to vector<64x32xf32>
    %10 = vector.extract_strided_slice %7 {offsets = [0, 64], sizes = [64, 64], strides = [1, 1]} : vector<64x208xf32> to vector<64x64xf32>
    %11 = vector.extract_strided_slice %7 {offsets = [0, 128], sizes = [64, 64], strides = [1, 1]} : vector<64x208xf32> to vector<64x64xf32>
    %12 = vector.extract_strided_slice %7 {offsets = [0, 192], sizes = [64, 16], strides = [1, 1]} : vector<64x208xf32> to vector<64x16xf32>
    %13 = arith.truncf %12 : vector<64x16xf32> to vector<64x16xbf16>
    %c0_5 = arith.constant 0 : index
    %c0_6 = arith.constant 0 : index
    %14 = vector.load %arg4[%c0_5, %c0_6] : memref<16x32xbf16, #tpu.memory_space<vmem>>, vector<16x32xbf16>
    %cst_7 = arith.constant dense<0.000000e+00> : vector<64x32xf32>
    %15 = tpu.matmul %13, %14, %cst_7 {dimension_numbers = #tpu.dot_dimension_numbers<[1], [0], [0], [1], [0, 0, 1, 1], [], []>} : vector<64x16xbf16>, vector<16x32xbf16>, vector<64x32xf32> -> vector<64x32xf32>
    %c0_8 = arith.constant 0 : index
    %c0_9 = arith.constant 0 : index
    %16 = vector.load %arg5[%c0_8, %c0_9] : memref<1x32xf32, #tpu.memory_space<vmem>>, vector<1x32xf32>
    %17 = vector.broadcast %16 : vector<1x32xf32> to vector<64x32xf32>
    %18 = arith.addf %15, %17 : vector<64x32xf32>
    %cst_10 = arith.constant 0.000000e+00 : f32
    %19 = vector.broadcast %cst_10 : f32 to vector<64x32xf32>
    %20 = arith.minimumf %18, %19 : vector<64x32xf32>
    %21 = math.absf %18 : vector<64x32xf32>
    %cst_11 = arith.constant 0.000000e+00 : f32
    %22 = vector.broadcast %cst_11 : f32 to vector<64x32xf32>
    %23 = arith.subf %22, %21 : vector<64x32xf32>
    %24 = math.exp %23 : vector<64x32xf32>
    %cst_12 = arith.constant 1.000000e+00 : f32
    %25 = vector.broadcast %cst_12 : f32 to vector<64x32xf32>
    %26 = arith.addf %25, %24 : vector<64x32xf32>
    %27 = math.log %26 : vector<64x32xf32>
    %28 = arith.subf %20, %27 : vector<64x32xf32>
    %cst_13 = arith.constant 1.600000e+01 : f32
    %29 = vector.broadcast %cst_13 : f32 to vector<64x32xf32>
    %30 = arith.divf %28, %29 : vector<64x32xf32>
    %31 = tpu.iota {dimensions = array<i32: 0>} : vector<64x32xi32>
    %c1_i32 = arith.constant 1 : i32
    %32 = tpu.dynamic_rotate %30 by %c1_i32 dim 0 : vector<64x32xf32>, i32 -> vector<64x32xf32>
    %c1_i32_14 = arith.constant 1 : i32
    %33 = vector.broadcast %c1_i32_14 : i32 to vector<64x32xi32>
    %34 = arith.cmpi sge, %31, %33 : vector<64x32xi32>
    %cst_15 = arith.constant 0.000000e+00 : f32
    %35 = vector.broadcast %cst_15 : f32 to vector<64x32xf32>
    %36 = arith.select %34, %32, %35 : vector<64x32xi1>, vector<64x32xf32>
    %37 = arith.addf %30, %36 : vector<64x32xf32>
    %c2_i32 = arith.constant 2 : i32
    %38 = tpu.dynamic_rotate %37 by %c2_i32 dim 0 : vector<64x32xf32>, i32 -> vector<64x32xf32>
    %c2_i32_16 = arith.constant 2 : i32
    %39 = vector.broadcast %c2_i32_16 : i32 to vector<64x32xi32>
    %40 = arith.cmpi sge, %31, %39 : vector<64x32xi32>
    %cst_17 = arith.constant 0.000000e+00 : f32
    %41 = vector.broadcast %cst_17 : f32 to vector<64x32xf32>
    %42 = arith.select %40, %38, %41 : vector<64x32xi1>, vector<64x32xf32>
    %43 = arith.addf %37, %42 : vector<64x32xf32>
    %c4_i32 = arith.constant 4 : i32
    %44 = tpu.dynamic_rotate %43 by %c4_i32 dim 0 : vector<64x32xf32>, i32 -> vector<64x32xf32>
    %c4_i32_18 = arith.constant 4 : i32
    %45 = vector.broadcast %c4_i32_18 : i32 to vector<64x32xi32>
    %46 = arith.cmpi sge, %31, %45 : vector<64x32xi32>
    %cst_19 = arith.constant 0.000000e+00 : f32
    %47 = vector.broadcast %cst_19 : f32 to vector<64x32xf32>
    %48 = arith.select %46, %44, %47 : vector<64x32xi1>, vector<64x32xf32>
    %49 = arith.addf %43, %48 : vector<64x32xf32>
    %c8_i32 = arith.constant 8 : i32
    %50 = tpu.dynamic_rotate %49 by %c8_i32 dim 0 : vector<64x32xf32>, i32 -> vector<64x32xf32>
    %c8_i32_20 = arith.constant 8 : i32
    %51 = vector.broadcast %c8_i32_20 : i32 to vector<64x32xi32>
    %52 = arith.cmpi sge, %31, %51 : vector<64x32xi32>
    %cst_21 = arith.constant 0.000000e+00 : f32
    %53 = vector.broadcast %cst_21 : f32 to vector<64x32xf32>
    %54 = arith.select %52, %50, %53 : vector<64x32xi1>, vector<64x32xf32>
    %55 = arith.addf %49, %54 : vector<64x32xf32>
    %c16_i32 = arith.constant 16 : i32
    %56 = tpu.dynamic_rotate %55 by %c16_i32 dim 0 : vector<64x32xf32>, i32 -> vector<64x32xf32>
    %c16_i32_22 = arith.constant 16 : i32
    %57 = vector.broadcast %c16_i32_22 : i32 to vector<64x32xi32>
    %58 = arith.cmpi sge, %31, %57 : vector<64x32xi32>
    %cst_23 = arith.constant 0.000000e+00 : f32
    %59 = vector.broadcast %cst_23 : f32 to vector<64x32xf32>
    %60 = arith.select %58, %56, %59 : vector<64x32xi1>, vector<64x32xf32>
    %61 = arith.addf %55, %60 : vector<64x32xf32>
    %c32_i32 = arith.constant 32 : i32
    %62 = tpu.dynamic_rotate %61 by %c32_i32 dim 0 : vector<64x32xf32>, i32 -> vector<64x32xf32>
    %c32_i32_24 = arith.constant 32 : i32
    %63 = vector.broadcast %c32_i32_24 : i32 to vector<64x32xi32>
    %64 = arith.cmpi sge, %31, %63 : vector<64x32xi32>
    %cst_25 = arith.constant 0.000000e+00 : f32
    %65 = vector.broadcast %cst_25 : f32 to vector<64x32xf32>
    %66 = arith.select %64, %62, %65 : vector<64x32xi1>, vector<64x32xf32>
    %67 = arith.addf %61, %66 : vector<64x32xf32>
    %68 = math.exp %67 : vector<64x32xf32>
    %69 = tpu.reciprocal %68 {approx = true} : vector<64x32xf32> -> vector<64x32xf32>
    %70 = vector.extract_strided_slice %68 {offsets = [63, 0], sizes = [1, 32], strides = [1, 1]} : vector<64x32xf32> to vector<1x32xf32>
    %71 = arith.mulf %8, %68 : vector<64x32xf32>
    %cst_26 = arith.constant 0.353553385 : f32
    %72 = vector.broadcast %cst_26 : f32 to vector<64x32xf32>
    %73 = arith.mulf %71, %72 : vector<64x32xf32>
    %74 = arith.truncf %73 : vector<64x32xf32> to vector<64x32xbf16>
    %75 = arith.mulf %9, %69 : vector<64x32xf32>
    %76 = arith.truncf %75 : vector<64x32xf32> to vector<64x32xbf16>
    %77 = arith.mulf %9, %69 : vector<64x32xf32>
    %78 = vector.broadcast %70 : vector<1x32xf32> to vector<64x32xf32>
    %79 = arith.mulf %77, %78 : vector<64x32xf32>
    %80 = arith.truncf %79 : vector<64x32xf32> to vector<64x32xbf16>
    %81 = arith.truncf %10 : vector<64x64xf32> to vector<64x64xbf16>
    %c0_27 = arith.constant 0 : index
    %c0_28 = arith.constant 0 : index
    %82 = vector.load %arg8[%c0_27, %c0_28] : memref<64x64xf32, #tpu.memory_space<vmem>>, vector<64x64xf32>
    %cst_29 = arith.constant 0.000000e+00 : f32
    %83 = vector.broadcast %cst_29 : f32 to vector<64x64xf32>
    %84 = arith.cmpf one, %82, %83 : vector<64x64xf32>
    %85 = vector.extract_strided_slice %74 {offsets = [0, 0], sizes = [64, 8], strides = [1, 1]} : vector<64x32xbf16> to vector<64x8xbf16>
    %86 = vector.extract_strided_slice %76 {offsets = [0, 0], sizes = [64, 8], strides = [1, 1]} : vector<64x32xbf16> to vector<64x8xbf16>
    %87 = vector.extract_strided_slice %80 {offsets = [0, 0], sizes = [64, 8], strides = [1, 1]} : vector<64x32xbf16> to vector<64x8xbf16>
    %88 = vector.extract_strided_slice %81 {offsets = [0, 0], sizes = [64, 16], strides = [1, 1]} : vector<64x64xbf16> to vector<64x16xbf16>
    %c0_30 = arith.constant 0 : index
    %c0_31 = arith.constant 0 : index
    %c0_32 = arith.constant 0 : index
    %89 = vector.load %arg11[%c0_30, %c0_31, %c0_32] : memref<4x16x8xf32, #tpu.memory_space<vmem>>, vector<1x16x8xf32>
    %90 = vector.shape_cast %89 : vector<1x16x8xf32> to vector<16x8xf32>
    %91 = arith.truncf %90 : vector<16x8xf32> to vector<16x8xbf16>
    %cst_33 = arith.constant dense<0.000000e+00> : vector<64x16xf32>
    %92 = tpu.matmul %85, %91, %cst_33 {dimension_numbers = #tpu.dot_dimension_numbers<[1], [1], [0], [0], [0, 0, 1, 0], [], []>} : vector<64x8xbf16>, vector<16x8xbf16>, vector<64x16xf32> -> vector<64x16xf32>
    %cst_34 = arith.constant dense<0.000000e+00> : vector<64x64xf32>
    %93 = tpu.matmul %85, %86, %cst_34 {dimension_numbers = #tpu.dot_dimension_numbers<[1], [1], [0], [0], [0, 0, 1, 0], [], []>} : vector<64x8xbf16>, vector<64x8xbf16>, vector<64x64xf32> -> vector<64x64xf32>
    %cst_35 = arith.constant 0.000000e+00 : f32
    %94 = vector.broadcast %cst_35 : f32 to vector<64x64xf32>
    %95 = arith.select %84, %93, %94 : vector<64x64xi1>, vector<64x64xf32>
    %96 = arith.truncf %95 : vector<64x64xf32> to vector<64x64xbf16>
    %cst_36 = arith.constant dense<0.000000e+00> : vector<64x16xf32>
    %97 = tpu.matmul %96, %88, %cst_36 {dimension_numbers = #tpu.dot_dimension_numbers<[1], [0], [0], [1], [0, 0, 1, 1], [], []>} : vector<64x64xbf16>, vector<64x16xbf16>, vector<64x16xf32> -> vector<64x16xf32>
    %98 = arith.addf %92, %97 : vector<64x16xf32>
    %99 = vector.extract_strided_slice %70 {offsets = [0, 0], sizes = [1, 8], strides = [1, 1]} : vector<1x32xf32> to vector<1x8xf32>
    %100 = vector.broadcast %99 : vector<1x8xf32> to vector<16x8xf32>
    %101 = arith.mulf %90, %100 : vector<16x8xf32>
    %cst_37 = arith.constant dense<0.000000e+00> : vector<16x8xf32>
    %102 = tpu.matmul %88, %87, %cst_37 {dimension_numbers = #tpu.dot_dimension_numbers<[0], [0], [1], [1], [0, 1, 1, 1], [], []>} : vector<64x16xbf16>, vector<64x8xbf16>, vector<16x8xf32> -> vector<16x8xf32>
    %103 = arith.addf %101, %102 : vector<16x8xf32>
    %c0_38 = arith.constant 0 : index
    %c0_39 = arith.constant 0 : index
    %c0_40 = arith.constant 0 : index
    %104 = vector.load %arg11[%c0_38, %c0_39, %c0_40] : memref<4x16x8xf32, #tpu.memory_space<vmem>>, vector<1x16x8xf32>
    %105 = vector.shape_cast %104 : vector<1x16x8xf32> to vector<16x8xf32>
    %106 = vector.shape_cast %103 : vector<16x8xf32> to vector<1x16x8xf32>
    tpu.vector_store %arg11[%c0_38, %c0_39, %c0_40], %106 {strides = array<i32>} : memref<4x16x8xf32, #tpu.memory_space<vmem>>, vector<1x16x8xf32>,
    %107 = arith.mulf %98, %98 : vector<64x16xf32>
    %cst_41 = arith.constant dense<0.000000e+00> : vector<64xf32>
    %108 = vector.multi_reduction <add>, %107, %cst_41 [1] : vector<64x16xf32> to vector<64xf32>
    %109 = vector.shape_cast %108 : vector<64xf32> to vector<64x1xf32>
    %cst_42 = arith.constant 1.600000e+01 : f32
    %110 = vector.broadcast %cst_42 : f32 to vector<64x1xf32>
    %111 = arith.divf %109, %110 : vector<64x1xf32>
    %cst_43 = arith.constant 9.99999974E-6 : f32
    %112 = vector.broadcast %cst_43 : f32 to vector<64x1xf32>
    %113 = arith.addf %111, %112 : vector<64x1xf32>
    %114 = math.rsqrt %113 : vector<64x1xf32>
    %115 = vector.broadcast %114 : vector<64x1xf32> to vector<64x16xf32>
    %116 = arith.mulf %98, %115 : vector<64x16xf32>
    %c0_44 = arith.constant 0 : index
    %c0_45 = arith.constant 0 : index
    %117 = vector.load %arg10[%c0_44, %c0_45] : memref<64x64xf32, #tpu.memory_space<vmem>>, vector<64x16xf32>
    tpu.vector_store %arg10[%c0_44, %c0_45], %116 {strides = array<i32>} : memref<64x64xf32, #tpu.memory_space<vmem>>, vector<64x16xf32>,
    %118 = vector.extract_strided_slice %74 {offsets = [0, 8], sizes = [64, 8], strides = [1, 1]} : vector<64x32xbf16> to vector<64x8xbf16>
    %119 = vector.extract_strided_slice %76 {offsets = [0, 8], sizes = [64, 8], strides = [1, 1]} : vector<64x32xbf16> to vector<64x8xbf16>
    %120 = vector.extract_strided_slice %80 {offsets = [0, 8], sizes = [64, 8], strides = [1, 1]} : vector<64x32xbf16> to vector<64x8xbf16>
    %121 = vector.extract_strided_slice %81 {offsets = [0, 16], sizes = [64, 16], strides = [1, 1]} : vector<64x64xbf16> to vector<64x16xbf16>
    %c1 = arith.constant 1 : index
    %c0_46 = arith.constant 0 : index
    %c0_47 = arith.constant 0 : index
    %122 = vector.load %arg11[%c1, %c0_46, %c0_47] : memref<4x16x8xf32, #tpu.memory_space<vmem>>, vector<1x16x8xf32>
    %123 = vector.shape_cast %122 : vector<1x16x8xf32> to vector<16x8xf32>
    %124 = arith.truncf %123 : vector<16x8xf32> to vector<16x8xbf16>
    %cst_48 = arith.constant dense<0.000000e+00> : vector<64x16xf32>
    %125 = tpu.matmul %118, %124, %cst_48 {dimension_numbers = #tpu.dot_dimension_numbers<[1], [1], [0], [0], [0, 0, 1, 0], [], []>} : vector<64x8xbf16>, vector<16x8xbf16>, vector<64x16xf32> -> vector<64x16xf32>
    %cst_49 = arith.constant dense<0.000000e+00> : vector<64x64xf32>
    %126 = tpu.matmul %118, %119, %cst_49 {dimension_numbers = #tpu.dot_dimension_numbers<[1], [1], [0], [0], [0, 0, 1, 0], [], []>} : vector<64x8xbf16>, vector<64x8xbf16>, vector<64x64xf32> -> vector<64x64xf32>
    %cst_50 = arith.constant 0.000000e+00 : f32
    %127 = vector.broadcast %cst_50 : f32 to vector<64x64xf32>
    %128 = arith.select %84, %126, %127 : vector<64x64xi1>, vector<64x64xf32>
    %129 = arith.truncf %128 : vector<64x64xf32> to vector<64x64xbf16>
    %cst_51 = arith.constant dense<0.000000e+00> : vector<64x16xf32>
    %130 = tpu.matmul %129, %121, %cst_51 {dimension_numbers = #tpu.dot_dimension_numbers<[1], [0], [0], [1], [0, 0, 1, 1], [], []>} : vector<64x64xbf16>, vector<64x16xbf16>, vector<64x16xf32> -> vector<64x16xf32>
    %131 = arith.addf %125, %130 : vector<64x16xf32>
    %132 = vector.extract_strided_slice %70 {offsets = [0, 8], sizes = [1, 8], strides = [1, 1]} : vector<1x32xf32> to vector<1x8xf32>
    %133 = vector.broadcast %132 : vector<1x8xf32> to vector<16x8xf32>
    %134 = arith.mulf %123, %133 : vector<16x8xf32>
    %cst_52 = arith.constant dense<0.000000e+00> : vector<16x8xf32>
    %135 = tpu.matmul %121, %120, %cst_52 {dimension_numbers = #tpu.dot_dimension_numbers<[0], [0], [1], [1], [0, 1, 1, 1], [], []>} : vector<64x16xbf16>, vector<64x8xbf16>, vector<16x8xf32> -> vector<16x8xf32>
    %136 = arith.addf %134, %135 : vector<16x8xf32>
    %c1_53 = arith.constant 1 : index
    %c0_54 = arith.constant 0 : index
    %c0_55 = arith.constant 0 : index
    %137 = vector.load %arg11[%c1_53, %c0_54, %c0_55] : memref<4x16x8xf32, #tpu.memory_space<vmem>>, vector<1x16x8xf32>
    %138 = vector.shape_cast %137 : vector<1x16x8xf32> to vector<16x8xf32>
    %139 = vector.shape_cast %136 : vector<16x8xf32> to vector<1x16x8xf32>
    tpu.vector_store %arg11[%c1_53, %c0_54, %c0_55], %139 {strides = array<i32>} : memref<4x16x8xf32, #tpu.memory_space<vmem>>, vector<1x16x8xf32>,
    %140 = arith.mulf %131, %131 : vector<64x16xf32>
    %cst_56 = arith.constant dense<0.000000e+00> : vector<64xf32>
    %141 = vector.multi_reduction <add>, %140, %cst_56 [1] : vector<64x16xf32> to vector<64xf32>
    %142 = vector.shape_cast %141 : vector<64xf32> to vector<64x1xf32>
    %cst_57 = arith.constant 1.600000e+01 : f32
    %143 = vector.broadcast %cst_57 : f32 to vector<64x1xf32>
    %144 = arith.divf %142, %143 : vector<64x1xf32>
    %cst_58 = arith.constant 9.99999974E-6 : f32
    %145 = vector.broadcast %cst_58 : f32 to vector<64x1xf32>
    %146 = arith.addf %144, %145 : vector<64x1xf32>
    %147 = math.rsqrt %146 : vector<64x1xf32>
    %148 = vector.broadcast %147 : vector<64x1xf32> to vector<64x16xf32>
    %149 = arith.mulf %131, %148 : vector<64x16xf32>
    %c0_59 = arith.constant 0 : index
    %c16 = arith.constant 16 : index
    %150 = vector.load %arg10[%c0_59, %c16] : memref<64x64xf32, #tpu.memory_space<vmem>>, vector<64x16xf32>
    tpu.vector_store %arg10[%c0_59, %c16], %149 {strides = array<i32>} : memref<64x64xf32, #tpu.memory_space<vmem>>, vector<64x16xf32>,
    %151 = vector.extract_strided_slice %74 {offsets = [0, 16], sizes = [64, 8], strides = [1, 1]} : vector<64x32xbf16> to vector<64x8xbf16>
    %152 = vector.extract_strided_slice %76 {offsets = [0, 16], sizes = [64, 8], strides = [1, 1]} : vector<64x32xbf16> to vector<64x8xbf16>
    %153 = vector.extract_strided_slice %80 {offsets = [0, 16], sizes = [64, 8], strides = [1, 1]} : vector<64x32xbf16> to vector<64x8xbf16>
    %154 = vector.extract_strided_slice %81 {offsets = [0, 32], sizes = [64, 16], strides = [1, 1]} : vector<64x64xbf16> to vector<64x16xbf16>
    %c2 = arith.constant 2 : index
    %c0_60 = arith.constant 0 : index
    %c0_61 = arith.constant 0 : index
    %155 = vector.load %arg11[%c2, %c0_60, %c0_61] : memref<4x16x8xf32, #tpu.memory_space<vmem>>, vector<1x16x8xf32>
    %156 = vector.shape_cast %155 : vector<1x16x8xf32> to vector<16x8xf32>
    %157 = arith.truncf %156 : vector<16x8xf32> to vector<16x8xbf16>
    %cst_62 = arith.constant dense<0.000000e+00> : vector<64x16xf32>
    %158 = tpu.matmul %151, %157, %cst_62 {dimension_numbers = #tpu.dot_dimension_numbers<[1], [1], [0], [0], [0, 0, 1, 0], [], []>} : vector<64x8xbf16>, vector<16x8xbf16>, vector<64x16xf32> -> vector<64x16xf32>
    %cst_63 = arith.constant dense<0.000000e+00> : vector<64x64xf32>
    %159 = tpu.matmul %151, %152, %cst_63 {dimension_numbers = #tpu.dot_dimension_numbers<[1], [1], [0], [0], [0, 0, 1, 0], [], []>} : vector<64x8xbf16>, vector<64x8xbf16>, vector<64x64xf32> -> vector<64x64xf32>
    %cst_64 = arith.constant 0.000000e+00 : f32
    %160 = vector.broadcast %cst_64 : f32 to vector<64x64xf32>
    %161 = arith.select %84, %159, %160 : vector<64x64xi1>, vector<64x64xf32>
    %162 = arith.truncf %161 : vector<64x64xf32> to vector<64x64xbf16>
    %cst_65 = arith.constant dense<0.000000e+00> : vector<64x16xf32>
    %163 = tpu.matmul %162, %154, %cst_65 {dimension_numbers = #tpu.dot_dimension_numbers<[1], [0], [0], [1], [0, 0, 1, 1], [], []>} : vector<64x64xbf16>, vector<64x16xbf16>, vector<64x16xf32> -> vector<64x16xf32>
    %164 = arith.addf %158, %163 : vector<64x16xf32>
    %165 = vector.extract_strided_slice %70 {offsets = [0, 16], sizes = [1, 8], strides = [1, 1]} : vector<1x32xf32> to vector<1x8xf32>
    %166 = vector.broadcast %165 : vector<1x8xf32> to vector<16x8xf32>
    %167 = arith.mulf %156, %166 : vector<16x8xf32>
    %cst_66 = arith.constant dense<0.000000e+00> : vector<16x8xf32>
    %168 = tpu.matmul %154, %153, %cst_66 {dimension_numbers = #tpu.dot_dimension_numbers<[0], [0], [1], [1], [0, 1, 1, 1], [], []>} : vector<64x16xbf16>, vector<64x8xbf16>, vector<16x8xf32> -> vector<16x8xf32>
    %169 = arith.addf %167, %168 : vector<16x8xf32>
    %c2_67 = arith.constant 2 : index
    %c0_68 = arith.constant 0 : index
    %c0_69 = arith.constant 0 : index
    %170 = vector.load %arg11[%c2_67, %c0_68, %c0_69] : memref<4x16x8xf32, #tpu.memory_space<vmem>>, vector<1x16x8xf32>
    %171 = vector.shape_cast %170 : vector<1x16x8xf32> to vector<16x8xf32>
    %172 = vector.shape_cast %169 : vector<16x8xf32> to vector<1x16x8xf32>
    tpu.vector_store %arg11[%c2_67, %c0_68, %c0_69], %172 {strides = array<i32>} : memref<4x16x8xf32, #tpu.memory_space<vmem>>, vector<1x16x8xf32>,
    %173 = arith.mulf %164, %164 : vector<64x16xf32>
    %cst_70 = arith.constant dense<0.000000e+00> : vector<64xf32>
    %174 = vector.multi_reduction <add>, %173, %cst_70 [1] : vector<64x16xf32> to vector<64xf32>
    %175 = vector.shape_cast %174 : vector<64xf32> to vector<64x1xf32>
    %cst_71 = arith.constant 1.600000e+01 : f32
    %176 = vector.broadcast %cst_71 : f32 to vector<64x1xf32>
    %177 = arith.divf %175, %176 : vector<64x1xf32>
    %cst_72 = arith.constant 9.99999974E-6 : f32
    %178 = vector.broadcast %cst_72 : f32 to vector<64x1xf32>
    %179 = arith.addf %177, %178 : vector<64x1xf32>
    %180 = math.rsqrt %179 : vector<64x1xf32>
    %181 = vector.broadcast %180 : vector<64x1xf32> to vector<64x16xf32>
    %182 = arith.mulf %164, %181 : vector<64x16xf32>
    %c0_73 = arith.constant 0 : index
    %c32 = arith.constant 32 : index
    %183 = vector.load %arg10[%c0_73, %c32] : memref<64x64xf32, #tpu.memory_space<vmem>>, vector<64x16xf32>
    tpu.vector_store %arg10[%c0_73, %c32], %182 {strides = array<i32>} : memref<64x64xf32, #tpu.memory_space<vmem>>, vector<64x16xf32>,
    %184 = vector.extract_strided_slice %74 {offsets = [0, 24], sizes = [64, 8], strides = [1, 1]} : vector<64x32xbf16> to vector<64x8xbf16>
    %185 = vector.extract_strided_slice %76 {offsets = [0, 24], sizes = [64, 8], strides = [1, 1]} : vector<64x32xbf16> to vector<64x8xbf16>
    %186 = vector.extract_strided_slice %80 {offsets = [0, 24], sizes = [64, 8], strides = [1, 1]} : vector<64x32xbf16> to vector<64x8xbf16>
    %187 = vector.extract_strided_slice %81 {offsets = [0, 48], sizes = [64, 16], strides = [1, 1]} : vector<64x64xbf16> to vector<64x16xbf16>
    %c3 = arith.constant 3 : index
    %c0_74 = arith.constant 0 : index
    %c0_75 = arith.constant 0 : index
    %188 = vector.load %arg11[%c3, %c0_74, %c0_75] : memref<4x16x8xf32, #tpu.memory_space<vmem>>, vector<1x16x8xf32>
    %189 = vector.shape_cast %188 : vector<1x16x8xf32> to vector<16x8xf32>
    %190 = arith.truncf %189 : vector<16x8xf32> to vector<16x8xbf16>
    %cst_76 = arith.constant dense<0.000000e+00> : vector<64x16xf32>
    %191 = tpu.matmul %184, %190, %cst_76 {dimension_numbers = #tpu.dot_dimension_numbers<[1], [1], [0], [0], [0, 0, 1, 0], [], []>} : vector<64x8xbf16>, vector<16x8xbf16>, vector<64x16xf32> -> vector<64x16xf32>
    %cst_77 = arith.constant dense<0.000000e+00> : vector<64x64xf32>
    %192 = tpu.matmul %184, %185, %cst_77 {dimension_numbers = #tpu.dot_dimension_numbers<[1], [1], [0], [0], [0, 0, 1, 0], [], []>} : vector<64x8xbf16>, vector<64x8xbf16>, vector<64x64xf32> -> vector<64x64xf32>
    %cst_78 = arith.constant 0.000000e+00 : f32
    %193 = vector.broadcast %cst_78 : f32 to vector<64x64xf32>
    %194 = arith.select %84, %192, %193 : vector<64x64xi1>, vector<64x64xf32>
    %195 = arith.truncf %194 : vector<64x64xf32> to vector<64x64xbf16>
    %cst_79 = arith.constant dense<0.000000e+00> : vector<64x16xf32>
    %196 = tpu.matmul %195, %187, %cst_79 {dimension_numbers = #tpu.dot_dimension_numbers<[1], [0], [0], [1], [0, 0, 1, 1], [], []>} : vector<64x64xbf16>, vector<64x16xbf16>, vector<64x16xf32> -> vector<64x16xf32>
    %197 = arith.addf %191, %196 : vector<64x16xf32>
    %198 = vector.extract_strided_slice %70 {offsets = [0, 24], sizes = [1, 8], strides = [1, 1]} : vector<1x32xf32> to vector<1x8xf32>
    %199 = vector.broadcast %198 : vector<1x8xf32> to vector<16x8xf32>
    %200 = arith.mulf %189, %199 : vector<16x8xf32>
    %cst_80 = arith.constant dense<0.000000e+00> : vector<16x8xf32>
    %201 = tpu.matmul %187, %186, %cst_80 {dimension_numbers = #tpu.dot_dimension_numbers<[0], [0], [1], [1], [0, 1, 1, 1], [], []>} : vector<64x16xbf16>, vector<64x8xbf16>, vector<16x8xf32> -> vector<16x8xf32>
    %202 = arith.addf %200, %201 : vector<16x8xf32>
    %c3_81 = arith.constant 3 : index
    %c0_82 = arith.constant 0 : index
    %c0_83 = arith.constant 0 : index
    %203 = vector.load %arg11[%c3_81, %c0_82, %c0_83] : memref<4x16x8xf32, #tpu.memory_space<vmem>>, vector<1x16x8xf32>
    %204 = vector.shape_cast %203 : vector<1x16x8xf32> to vector<16x8xf32>
    %205 = vector.shape_cast %202 : vector<16x8xf32> to vector<1x16x8xf32>
    tpu.vector_store %arg11[%c3_81, %c0_82, %c0_83], %205 {strides = array<i32>} : memref<4x16x8xf32, #tpu.memory_space<vmem>>, vector<1x16x8xf32>,
    %206 = arith.mulf %197, %197 : vector<64x16xf32>
    %cst_84 = arith.constant dense<0.000000e+00> : vector<64xf32>
    %207 = vector.multi_reduction <add>, %206, %cst_84 [1] : vector<64x16xf32> to vector<64xf32>
    %208 = vector.shape_cast %207 : vector<64xf32> to vector<64x1xf32>
    %cst_85 = arith.constant 1.600000e+01 : f32
    %209 = vector.broadcast %cst_85 : f32 to vector<64x1xf32>
    %210 = arith.divf %208, %209 : vector<64x1xf32>
    %cst_86 = arith.constant 9.99999974E-6 : f32
    %211 = vector.broadcast %cst_86 : f32 to vector<64x1xf32>
    %212 = arith.addf %210, %211 : vector<64x1xf32>
    %213 = math.rsqrt %212 : vector<64x1xf32>
    %214 = vector.broadcast %213 : vector<64x1xf32> to vector<64x16xf32>
    %215 = arith.mulf %197, %214 : vector<64x16xf32>
    %c0_87 = arith.constant 0 : index
    %c48 = arith.constant 48 : index
    %216 = vector.load %arg10[%c0_87, %c48] : memref<64x64xf32, #tpu.memory_space<vmem>>, vector<64x16xf32>
    tpu.vector_store %arg10[%c0_87, %c48], %215 {strides = array<i32>} : memref<64x64xf32, #tpu.memory_space<vmem>>, vector<64x16xf32>,
    %cst_88 = arith.constant 0.000000e+00 : f32
    %217 = vector.broadcast %cst_88 : f32 to vector<64x64xf32>
    %218 = arith.subf %217, %11 : vector<64x64xf32>
    %219 = math.exp %218 : vector<64x64xf32>
    %cst_89 = arith.constant 1.000000e+00 : f32
    %220 = vector.broadcast %cst_89 : f32 to vector<64x64xf32>
    %221 = arith.addf %220, %219 : vector<64x64xf32>
    %cst_90 = arith.constant 1.000000e+00 : f32
    %222 = vector.broadcast %cst_90 : f32 to vector<64x64xf32>
    %223 = arith.divf %222, %221 : vector<64x64xf32>
    %224 = arith.mulf %11, %223 : vector<64x64xf32>
    %c0_91 = arith.constant 0 : index
    %c0_92 = arith.constant 0 : index
    %225 = vector.load %arg10[%c0_91, %c0_92] : memref<64x64xf32, #tpu.memory_space<vmem>>, vector<64x64xf32>
    %c0_93 = arith.constant 0 : index
    %c0_94 = arith.constant 0 : index
    %226 = vector.load %arg6[%c0_93, %c0_94] : memref<1x64xf32, #tpu.memory_space<vmem>>, vector<1x64xf32>
    %227 = vector.broadcast %226 : vector<1x64xf32> to vector<64x64xf32>
    %228 = arith.mulf %225, %227 : vector<64x64xf32>
    %229 = arith.mulf %228, %224 : vector<64x64xf32>
    %230 = arith.truncf %229 : vector<64x64xf32> to vector<64x64xbf16>
    %c0_95 = arith.constant 0 : index
    %c0_96 = arith.constant 0 : index
    %231 = vector.load %arg7[%c0_95, %c0_96] : memref<64x32xbf16, #tpu.memory_space<vmem>>, vector<64x32xbf16>
    %cst_97 = arith.constant dense<0.000000e+00> : vector<64x32xf32>
    %232 = tpu.matmul %230, %231, %cst_97 {dimension_numbers = #tpu.dot_dimension_numbers<[1], [0], [0], [1], [0, 0, 1, 1], [], []>} : vector<64x64xbf16>, vector<64x32xbf16>, vector<64x32xf32> -> vector<64x32xf32>
    %c0_98 = arith.constant 0 : index
    %c0_99 = arith.constant 0 : index
    %c0_100 = arith.constant 0 : index
    %233 = vector.load %arg9[%c0_98, %c0_99, %c0_100] : memref<1x64x32xf32, #tpu.memory_space<vmem>>, vector<1x64x32xf32>
    %234 = vector.shape_cast %233 : vector<1x64x32xf32> to vector<64x32xf32>
    %235 = vector.shape_cast %232 : vector<64x32xf32> to vector<1x64x32xf32>
    tpu.vector_store %arg9[%c0_98, %c0_99, %c0_100], %235 {strides = array<i32>} : memref<1x64x32xf32, #tpu.memory_space<vmem>>, vector<1x64x32xf32>,
    return
  }
  func.func @transform_0(%arg0: i32, %arg1: i32) -> (i32, i32, i32) {
    %c0_i32 = arith.constant 0 : i32
    %c0_i32_0 = arith.constant 0 : i32
    return %arg0, %arg1, %c0_i32 : i32, i32, i32
  }
  func.func @transform_1(%arg0: i32, %arg1: i32) -> (i32, i32) {
    %c0_i32 = arith.constant 0 : i32
    %c0_i32_0 = arith.constant 0 : i32
    %c0_i32_1 = arith.constant 0 : i32
    return %c0_i32, %c0_i32_0 : i32, i32
  }
  func.func @transform_2(%arg0: i32, %arg1: i32) -> (i32, i32) {
    %c0_i32 = arith.constant 0 : i32
    %c0_i32_0 = arith.constant 0 : i32
    %c0_i32_1 = arith.constant 0 : i32
    return %c0_i32, %c0_i32_0 : i32, i32
  }
  func.func @transform_3(%arg0: i32, %arg1: i32) -> (i32, i32) {
    %c0_i32 = arith.constant 0 : i32
    %c0_i32_0 = arith.constant 0 : i32
    %c0_i32_1 = arith.constant 0 : i32
    return %c0_i32, %c0_i32_0 : i32, i32
  }
  func.func @transform_4(%arg0: i32, %arg1: i32) -> (i32, i32) {
    %c0_i32 = arith.constant 0 : i32
    %c0_i32_0 = arith.constant 0 : i32
    %c0_i32_1 = arith.constant 0 : i32
    return %c0_i32, %c0_i32_0 : i32, i32
  }
  func.func @transform_5(%arg0: i32, %arg1: i32) -> (i32, i32) {
    %c0_i32 = arith.constant 0 : i32
    %c0_i32_0 = arith.constant 0 : i32
    %c0_i32_1 = arith.constant 0 : i32
    return %c0_i32, %c0_i32_0 : i32, i32
  }
  func.func @transform_6(%arg0: i32, %arg1: i32) -> (i32, i32) {
    %c0_i32 = arith.constant 0 : i32
    %c0_i32_0 = arith.constant 0 : i32
    %c0_i32_1 = arith.constant 0 : i32
    return %c0_i32, %c0_i32_0 : i32, i32
  }
  func.func @transform_7(%arg0: i32, %arg1: i32) -> (i32, i32, i32) {
    %c0_i32 = arith.constant 0 : i32
    %c0_i32_0 = arith.constant 0 : i32
    return %arg0, %arg1, %c0_i32 : i32, i32, i32
  }
}

</mosaic_0001>

<llo_original>
// kernel: tpu_custom_call.1
$region0: #{tpu_custom_call.1}
  #allocation0 [shape = 'u32[]', space=smem, size = 0x4, offset = 0x4, fixed_abs, tag = 'smem constant byte address 0x4 - core index']
  #allocation1 [shape = 'u32[144,128]{1,0:T(1,128)}', space=vmem, size = 0x12000, scoped, tag = 'internal scratch']
  #allocation2 [shape = 'f32[64,64]{1,0:T(8,128)}', space=vmem, size = 0x8000, scoped, tag = 'scratch operand']
  #allocation3 [shape = 'f32[4,16,8]{2,1,0:T(8,128)}', space=vmem, size = 0x8000, scoped, tag = 'scratch operand']
  %s0 = inlined_call_operand.vmem [shape: f32[2,128,32], index: 0, kind: input, shape index: {}]
  %s1 = inlined_call_operand.vmem [shape: bf16[32,208], index: 1, kind: input, shape index: {}]
  %s2 = inlined_call_operand.vmem [shape: bf16[16,32], index: 2, kind: input, shape index: {}]
  %s3 = inlined_call_operand.vmem [shape: f32[1,32], index: 3, kind: input, shape index: {}]
  %s4 = inlined_call_operand.vmem [shape: f32[1,64], index: 4, kind: input, shape index: {}]
  %s5 = inlined_call_operand.vmem [shape: bf16[64,32], index: 5, kind: input, shape index: {}]
  %s6 = inlined_call_operand.vmem [shape: f32[64,64], index: 6, kind: input, shape index: {}]
  %s7 = inlined_call_operand.vmem [shape: f32[2,128,32], index: 7, kind: output, shape index: {}]
  %s8 = sld [smem:[#allocation0]]
  $region65: #{tpu_custom_call.1} parent=0
    _
  %s10 = ssub.s32 1, %s8
  %s11 = scalar_select 0, %s10, %s8
  loop: start=0, step=1, limit=6
  $region2: #{tpu_custom_call.1} parent=0 // loop_pre_header
    _
  $region3: #{tpu_custom_call.1} parent=0 // loop_header
    %s13 = sphi 0, %s17
    %p14 = scmp.ge.s32.totalorder %s13, 6
    %s20 = sphi 0, %s32
    %s21 = sphi 0, %s28
    %s22 = sphi 0, %s20
    %s23 = sphi 0, %s21
    %s24 = sphi 0, %s22
    %s25 = sphi 0, %s23
    %s37 = sphi 0, %s39
    %s40 = sphi 0, %s37
    %s41 = sphi 0, %s40
    %s57 = sphi 0, %s41
    %s61 = sphi 0, %s61
    %s63 = sphi 0, %s61
    %s64 = sphi 0, %s63
    %s78 = sphi 0, %s64
    %s82 = sphi 0, %s82
    %s84 = sphi 0, %s82
    %s85 = sphi 0, %s84
    %s99 = sphi 0, %s85
    %s103 = sphi 0, %s103
    %s105 = sphi 0, %s103
    %s106 = sphi 0, %s105
    %s120 = sphi 0, %s106
    %s124 = sphi 0, %s124
    %s126 = sphi 0, %s124
    %s127 = sphi 0, %s126
    %s141 = sphi 0, %s127
    %s145 = sphi 0, %s145
    %s147 = sphi 0, %s145
    %s148 = sphi 0, %s147
    %s162 = sphi 0, %s148
    %s166 = sphi 0, %s166
    %s168 = sphi 0, %s166
    %s169 = sphi 0, %s168
    %s183 = sphi 0, %s169
    %s191 = sphi 0, %s193
    %s194 = sphi 0, %s191
    %s195 = sphi 0, %s194
    %s211 = sphi 0, %s195
  $region4: #{tpu_custom_call.1} parent=0 // loop_header_branch
    %16 = sbr.rel (%p14) target = $region8
  $region5: #{tpu_custom_call.1} parent=0 // loop_body
    %s18 = ssub.s32 %s13, 1
    %s19 = ssub.s32 %s13, 2
    %s26 = sadd.s32 1, %s21
    %p27 = scmp.ge.s32.totalorder %s26, 2
    %s28 = scalar_select %p27, 0, %s26
    %s29 = sadd.s32 1, %s20
    %s30 = scalar_select %p27, %s29, %s20
    %p31 = scmp.ge.s32.totalorder %s30, 2
    %s32 = scalar_select %p31, 0, %s30
    %s33 = ssub.s32 %s20, %s32
    %s34 = ssub.s32 %s21, %s28
    %s35 = sor.u32 %s33, %s34
    %p36 = scmp.eq.s32.totalorder %s35, 0
    %s38 = sadd.s32 %s37, 1
    %s39 = scalar_select %p36, %s37, %s38
    %p42 = pneg %p36
    %p43 = scmp.eq.s32.totalorder %s13, 3
    %p44 = por %p42, %p43
    %p45 = scmp.ne.s32.totalorder %s37, %s40
    %p46 = scmp.eq.s32.totalorder %s13, 0
    %p47 = por %p45, %p46
    %p48 = scmp.ne.s32.totalorder %s37, %s40
    %p49 = scmp.eq.s32.totalorder %s18, 3
    %p50 = por %p48, %p49
    %p51 = scmp.ne.s32.totalorder %s40, %s41
    %p52 = scmp.eq.s32.totalorder %s18, 0
    %p53 = por %p51, %p52
    %p54 = scmp.ne.s32.totalorder %s40, %s41
    %p55 = scmp.eq.s32.totalorder %s19, 3
    %p56 = por %p54, %p55
    %p58 = scmp.ne.s32.totalorder %s41, %s57
    %p59 = scmp.eq.s32.totalorder %s19, 0
    %p60 = por %p58, %p59
    %s62 = sadd.s32 %s61, 1
    %p65 = scmp.eq.s32.totalorder %s13, 3
    %p66 = scmp.ne.s32.totalorder %s61, %s63
    %p67 = scmp.eq.s32.totalorder %s13, 0
    %p68 = por %p66, %p67
    %p69 = scmp.ne.s32.totalorder %s61, %s63
    %p70 = scmp.eq.s32.totalorder %s18, 3
    %p71 = por %p69, %p70
    %p72 = scmp.ne.s32.totalorder %s63, %s64
    %p73 = scmp.eq.s32.totalorder %s18, 0
    %p74 = por %p72, %p73
    %p75 = scmp.ne.s32.totalorder %s63, %s64
    %p76 = scmp.eq.s32.totalorder %s19, 3
    %p77 = por %p75, %p76
    %p79 = scmp.ne.s32.totalorder %s64, %s78
    %p80 = scmp.eq.s32.totalorder %s19, 0
    %p81 = por %p79, %p80
    %s83 = sadd.s32 %s82, 1
    %p86 = scmp.eq.s32.totalorder %s13, 3
    %p87 = scmp.ne.s32.totalorder %s82, %s84
    %p88 = scmp.eq.s32.totalorder %s13, 0
    %p89 = por %p87, %p88
    %p90 = scmp.ne.s32.totalorder %s82, %s84
    %p91 = scmp.eq.s32.totalorder %s18, 3
    %p92 = por %p90, %p91
    %p93 = scmp.ne.s32.totalorder %s84, %s85
    %p94 = scmp.eq.s32.totalorder %s18, 0
    %p95 = por %p93, %p94
    %p96 = scmp.ne.s32.totalorder %s84, %s85
    %p97 = scmp.eq.s32.totalorder %s19, 3
    %p98 = por %p96, %p97
    %p100 = scmp.ne.s32.totalorder %s85, %s99
    %p101 = scmp.eq.s32.totalorder %s19, 0
    %p102 = por %p100, %p101
    %s104 = sadd.s32 %s103, 1
    %p107 = scmp.eq.s32.totalorder %s13, 3
    %p108 = scmp.ne.s32.totalorder %s103, %s105
    %p109 = scmp.eq.s32.totalorder %s13, 0
    %p110 = por %p108, %p109
    %p111 = scmp.ne.s32.totalorder %s103, %s105
    %p112 = scmp.eq.s32.totalorder %s18, 3
    %p113 = por %p111, %p112
    %p114 = scmp.ne.s32.totalorder %s105, %s106
    %p115 = scmp.eq.s32.totalorder %s18, 0
    %p116 = por %p114, %p115
    %p117 = scmp.ne.s32.totalorder %s105, %s106
    %p118 = scmp.eq.s32.totalorder %s19, 3
    %p119 = por %p117, %p118
    %p121 = scmp.ne.s32.totalorder %s106, %s120
    %p122 = scmp.eq.s32.totalorder %s19, 0
    %p123 = por %p121, %p122
    %s125 = sadd.s32 %s124, 1
    %p128 = scmp.eq.s32.totalorder %s13, 3
    %p129 = scmp.ne.s32.totalorder %s124, %s126
    %p130 = scmp.eq.s32.totalorder %s13, 0
    %p131 = por %p129, %p130
    %p132 = scmp.ne.s32.totalorder %s124, %s126
    %p133 = scmp.eq.s32.totalorder %s18, 3
    %p134 = por %p132, %p133
    %p135 = scmp.ne.s32.totalorder %s126, %s127
    %p136 = scmp.eq.s32.totalorder %s18, 0
    %p137 = por %p135, %p136
    %p138 = scmp.ne.s32.totalorder %s126, %s127
    %p139 = scmp.eq.s32.totalorder %s19, 3
    %p140 = por %p138, %p139
    %p142 = scmp.ne.s32.totalorder %s127, %s141
    %p143 = scmp.eq.s32.totalorder %s19, 0
    %p144 = por %p142, %p143
    %s146 = sadd.s32 %s145, 1
    %p149 = scmp.eq.s32.totalorder %s13, 3
    %p150 = scmp.ne.s32.totalorder %s145, %s147
    %p151 = scmp.eq.s32.totalorder %s13, 0
    %p152 = por %p150, %p151
    %p153 = scmp.ne.s32.totalorder %s145, %s147
    %p154 = scmp.eq.s32.totalorder %s18, 3
    %p155 = por %p153, %p154
    %p156 = scmp.ne.s32.totalorder %s147, %s148
    %p157 = scmp.eq.s32.totalorder %s18, 0
    %p158 = por %p156, %p157
    %p159 = scmp.ne.s32.totalorder %s147, %s148
    %p160 = scmp.eq.s32.totalorder %s19, 3
    %p161 = por %p159, %p160
    %p163 = scmp.ne.s32.totalorder %s148, %s162
    %p164 = scmp.eq.s32.totalorder %s19, 0
    %p165 = por %p163, %p164
    %s167 = sadd.s32 %s166, 1
    %p170 = scmp.eq.s32.totalorder %s13, 3
    %p171 = scmp.ne.s32.totalorder %s166, %s168
    %p172 = scmp.eq.s32.totalorder %s13, 0
    %p173 = por %p171, %p172
    %p174 = scmp.ne.s32.totalorder %s166, %s168
    %p175 = scmp.eq.s32.totalorder %s18, 3
    %p176 = por %p174, %p175
    %p177 = scmp.ne.s32.totalorder %s168, %s169
    %p178 = scmp.eq.s32.totalorder %s18, 0
    %p179 = por %p177, %p178
    %p180 = scmp.ne.s32.totalorder %s168, %s169
    %p181 = scmp.eq.s32.totalorder %s19, 3
    %p182 = por %p180, %p181
    %p184 = scmp.ne.s32.totalorder %s169, %s183
    %p185 = scmp.eq.s32.totalorder %s19, 0
    %p186 = por %p184, %p185
    %s187 = ssub.s32 %s20, %s32
    %s188 = ssub.s32 %s21, %s28
    %s189 = sor.u32 %s187, %s188
    %p190 = scmp.eq.s32.totalorder %s189, 0
    %s192 = sadd.s32 %s191, 1
    %s193 = scalar_select %p190, %s191, %s192
    %p196 = pneg %p190
    %p197 = scmp.eq.s32.totalorder %s13, 3
    %p198 = por %p196, %p197
    %p199 = scmp.ne.s32.totalorder %s191, %s194
    %p200 = scmp.eq.s32.totalorder %s13, 0
    %p201 = por %p199, %p200
    %p202 = scmp.ne.s32.totalorder %s191, %s194
    %p203 = scmp.eq.s32.totalorder %s18, 3
    %p204 = por %p202, %p203
    %p205 = scmp.ne.s32.totalorder %s194, %s195
    %p206 = scmp.eq.s32.totalorder %s18, 0
    %p207 = por %p205, %p206
    %p208 = scmp.ne.s32.totalorder %s194, %s195
    %p209 = scmp.eq.s32.totalorder %s19, 3
    %p210 = por %p208, %p209
    %p212 = scmp.ne.s32.totalorder %s195, %s211
    %p213 = scmp.eq.s32.totalorder %s19, 0
    %p214 = por %p212, %p213
    %p215 = scmp.le.s32.totalorder 1, %s13
    %p216 = scmp.lt.s32.totalorder %s13, 5
    %p217 = pnand %p215, %p216
    %p218 = pneg %p217
    // Predicated region
    $region9: #{tpu_custom_call.1} parent=5 // pred_check
      _
    $region10: #{tpu_custom_call.1} parent=5 // pred_check_branch
      %220 = sbr.rel (%p217) target = $region12
    $region11: #{tpu_custom_call.1} parent=5 // pred_region
      %s221 = ssub.s32 %s13, 1
      // Predicated region
      $region13: #{tpu_custom_call.1} parent=11 // pred_check
        %p222 = pneg %p74
      $region14: #{tpu_custom_call.1} parent=11 // pred_check_branch
        %224 = sbr.rel (%p222) target = $region16
      $region15: #{tpu_custom_call.1} parent=11 // pred_region
        _
      $region16: #{tpu_custom_call.1} parent=11 // pred_fallthru
        _
      // Predicated region
      $region17: #{tpu_custom_call.1} parent=11 // pred_check
        %p225 = pneg %p95
      $region18: #{tpu_custom_call.1} parent=11 // pred_check_branch
        %227 = sbr.rel (%p225) target = $region20
      $region19: #{tpu_custom_call.1} parent=11 // pred_region
        _
      $region20: #{tpu_custom_call.1} parent=11 // pred_fallthru
        _
      // Predicated region
      $region21: #{tpu_custom_call.1} parent=11 // pred_check
        %p228 = pneg %p116
      $region22: #{tpu_custom_call.1} parent=11 // pred_check_branch
        %230 = sbr.rel (%p228) target = $region24
      $region23: #{tpu_custom_call.1} parent=11 // pred_region
        _
      $region24: #{tpu_custom_call.1} parent=11 // pred_fallthru
        _
      // Predicated region
      $region25: #{tpu_custom_call.1} parent=11 // pred_check
        %p231 = pneg %p137
      $region26: #{tpu_custom_call.1} parent=11 // pred_check_branch
        %233 = sbr.rel (%p231) target = $region28
      $region27: #{tpu_custom_call.1} parent=11 // pred_region
        _
      $region28: #{tpu_custom_call.1} parent=11 // pred_fallthru
        _
      // Predicated region
      $region29: #{tpu_custom_call.1} parent=11 // pred_check
        %p234 = pneg %p158
      $region30: #{tpu_custom_call.1} parent=11 // pred_check_branch
        %236 = sbr.rel (%p234) target = $region32
      $region31: #{tpu_custom_call.1} parent=11 // pred_region
        _
      $region32: #{tpu_custom_call.1} parent=11 // pred_fallthru
        _
      // Predicated region
      $region33: #{tpu_custom_call.1} parent=11 // pred_check
        %p237 = pneg %p179
      $region34: #{tpu_custom_call.1} parent=11 // pred_check_branch
        %239 = sbr.rel (%p237) target = $region36
      $region35: #{tpu_custom_call.1} parent=11 // pred_region
        _
      $region36: #{tpu_custom_call.1} parent=11 // pred_fallthru
        _
    $region12: #{tpu_custom_call.1} parent=5 // pred_fallthru
      _
    %p240 = scmp.lt.s32.totalorder %s13, 4
    // Predicated region
    $region37: #{tpu_custom_call.1} parent=5 // pred_check
      %p241 = pneg %p240
    $region38: #{tpu_custom_call.1} parent=5 // pred_check_branch
      %243 = sbr.rel (%p241) target = $region40
    $region39: #{tpu_custom_call.1} parent=5 // pred_region
      // Predicated region
      $region41: #{tpu_custom_call.1} parent=39 // pred_check
        %p244 = pneg %p47
      $region42: #{tpu_custom_call.1} parent=39 // pred_check_branch
        %246 = sbr.rel (%p244) target = $region44
      $region43: #{tpu_custom_call.1} parent=39 // pred_region
        %s247 = smul.u32 8, %s21
        %p248 = scmp.lt.s32.totalorder %s20, 1
        %s249 = scalar_select %p248, %s20, 1
        %p250 = scmp.lt.s32.totalorder %s247, 15
        %s251 = scalar_select %p250, %s247, 15
        %s252 = smul.addr %s249, 16
        %s253 = sadd.s32 %s251, %s252
        %s254 = smul.addr %s253, 8
        %s255 = scalar_lea.vmem %s0, %s254
        %s256 = smul.u32 8, %s21
      $region44: #{tpu_custom_call.1} parent=39 // pred_fallthru
        _
    $region40: #{tpu_custom_call.1} parent=5 // pred_fallthru
      _
    %p257 = scmp.le.s32.totalorder 1, %s13
    %p258 = scmp.lt.s32.totalorder %s13, 5
    %p259 = pnand %p257, %p258
    %p260 = pneg %p259
    // Predicated region
    $region45: #{tpu_custom_call.1} parent=5 // pred_check
      _
    $region46: #{tpu_custom_call.1} parent=5 // pred_check_branch
      %262 = sbr.rel (%p259) target = $region48
    $region47: #{tpu_custom_call.1} parent=5 // pred_region
      %s263 = ssub.s32 %s13, 1
      %s264 = smul.u32 8, %s23
      %p265 = scmp.lt.s32.totalorder %s22, 1
      %s266 = scalar_select %p265, %s22, 1
      %p267 = scmp.lt.s32.totalorder %s264, 15
      %s268 = scalar_select %p267, %s264, 15
      %s269 = smul.addr %s266, 16
      %s270 = sadd.s32 %s268, %s269
      %s271 = smul.addr %s270, 8
      %s272 = scalar_lea.vmem %s0, %s271
      %p273 = pneg %p53
      %p274 = pneg %p50
      %p275 = pneg %p74
      %p276 = pneg %p71
      %p277 = pneg %p95
      %p278 = pneg %p92
      %p279 = pneg %p116
      %p280 = pneg %p113
      %p281 = pneg %p137
      %p282 = pneg %p134
      %p283 = pneg %p158
      %p284 = pneg %p155
      %p285 = pneg %p179
      %p286 = pneg %p176
      %p287 = pneg %p207
      %p288 = pneg %p204
      %s289 = smul.u32 8, %s23
      %p290 = scmp.lt.s32.totalorder %s22, 1
      %s291 = scalar_select %p290, %s22, 1
      %p292 = scmp.lt.s32.totalorder %s289, 15
      %s293 = scalar_select %p292, %s289, 15
      %s294 = smul.addr %s291, 16
      %s295 = sadd.s32 %s293, %s294
      %s296 = smul.addr %s295, 8
      %s297 = scalar_lea.vmem %s7, %s296
      %s298 = smul.u32 8, %s23
      %p299 = scmp.lt.s32.totalorder %s22, 1
      %s300 = scalar_select %p299, %s22, 1
      %p301 = scmp.lt.s32.totalorder %s298, 15
      %s302 = scalar_select %p301, %s298, 15
      %s303 = smul.addr %s300, 16
      %s304 = sadd.s32 %s302, %s303
      %s305 = smul.addr %s304, 8
      %s306 = scalar_lea.vmem %s0, %s305
      %s307 = smul.u32 8, %s23
      %s308 = smul.u32 8, %s23
      %p309 = scmp.lt.s32.totalorder %s22, 1
      %s310 = scalar_select %p309, %s22, 1
      %p311 = scmp.lt.s32.totalorder %s308, 15
      %s312 = scalar_select %p311, %s308, 15
      %s313 = smul.addr %s310, 16
      %s314 = sadd.s32 %s312, %s313
      %s315 = smul.addr %s314, 8
      %s316 = scalar_lea.vmem %s7, %s315
      %s317 = smul.u32 8, %s23
      %p319 = scmp.eq.s32.totalorder %s23, 0
      // Predicated region
      $region49: #{tpu_custom_call.1} parent=47 // pred_check
        %p320 = pneg %p319
      $region50: #{tpu_custom_call.1} parent=47 // pred_check_branch
        %322 = sbr.rel (%p320) target = $region52
      $region51: #{tpu_custom_call.1} parent=47 // pred_region
        %vm323 = vcmask 64512
        %324 = vst.msk [vmem:[#allocation3] sm:$0xff] %vm323, 0.0
        %325 = vst.msk [vmem:[#allocation3 + $0x8] sm:$0xff] %vm323, 0.0
        %326 = vst.msk [vmem:[#allocation3 + $0x10] sm:$0xff] %vm323, 0.0
        %327 = vst.msk [vmem:[#allocation3 + $0x18] sm:$0xff] %vm323, 0.0
        %328 = vst.msk [vmem:[#allocation3 + $0x20] sm:$0xff] %vm323, 0.0
        %329 = vst.msk [vmem:[#allocation3 + $0x28] sm:$0xff] %vm323, 0.0
        %330 = vst.msk [vmem:[#allocation3 + $0x30] sm:$0xff] %vm323, 0.0
        %331 = vst.msk [vmem:[#allocation3 + $0x38] sm:$0xff] %vm323, 0.0
      $region52: #{tpu_custom_call.1} parent=47 // pred_fallthru
        _
      %v332 = vld [vmem:[%s306] sm:$0xff]
      %v333 = vld [vmem:[%s306 + $0x8] sm:$0xff]
      %v334 = vld [vmem:[%s306 + $0x10] sm:$0xff]
      %v335 = vld [vmem:[%s306 + $0x18] sm:$0xff]
      %v336 = vld [vmem:[%s306 + $0x20] sm:$0xff]
      %v337 = vld [vmem:[%s306 + $0x28] sm:$0xff]
      %v338 = vld [vmem:[%s306 + $0x30] sm:$0xff]
      %v339 = vld [vmem:[%s306 + $0x38] sm:$0xff]
      %v340 = vpack.c.bf16 %v333, %v332
      %v341 = vpack.c.bf16 %v335, %v334
      %v342 = vpack.c.bf16 %v337, %v336
      %v343 = vpack.c.bf16 %v339, %v338
      %v344 = vld [vmem:[%s1] sm:$0xff]
      %v345 = vld [vmem:[%s1 + $0x8] sm:$0xff]
      %v346 = vld [vmem:[%s1 + $0x10] sm:$0xff]
      %v347 = vld [vmem:[%s1 + $0x18] sm:$0xff]
      %v352 = vunpack.c.l.b16 %v344
      %v353 = vunpack.c.h.b16 %v344
      %v354 = vunpack.c.l.b16 %v345
      %v355 = vunpack.c.h.b16 %v345
      %v356 = vunpack.c.l.b16 %v346
      %v357 = vunpack.c.h.b16 %v346
      %v358 = vunpack.c.l.b16 %v347
      %v359 = vunpack.c.h.b16 %v347
      %v360 = vpack.c.b16 %v354, %v352
      %v361 = vpack.c.b16 %v355, %v353
      %v362 = vpack.c.b16 %v358, %v356
      %v363 = vpack.c.b16 %v359, %v357
      %vm368 = vcmask 261120
      %v370 = vsel %vm368, %v340, 0
      %v373 = vsel %vm368, %v341, 0
      %v376 = vsel %vm368, %v342, 0
      %v379 = vsel %vm368, %v343, 0
      %381 = vmatprep.subr.bf16.mxu0 0
      %382 = vmatpush1.bf16.msra.mxu0 0
      %383 = vmatprep.subr.bf16.mxu0 0
      %384 = vmatpush1.bf16.msra.mxu0 0
      %385 = vmatprep.subr.bf16.mxu0 0
      %386 = vmatpush1.bf16.msra.mxu0 0
      %387 = vmatprep.subr.bf16.mxu0 0
      %388 = vmatpush1.bf16.msra.mxu0 0
      %389 = vmatprep.subr.bf16.mxu0 0
      %390 = vmatpush1.bf16.msra.mxu0 0
      %391 = vmatprep.subr.bf16.mxu0 0
      %392 = vmatpush1.bf16.msra.mxu0 0
      %393 = vmatprep.subr.bf16.mxu0 %v363
      %394 = vmatpush1.bf16.msra.mxu0 %v362
      %395 = vmatprep.subr.bf16.mxu0 %v361
      %396 = vmatpush1.bf16.msra.mxu0 %v360
      %397 = vmatprep.subr.bf16.mxu0 0
      %398 = vmatpush2.bf16.msra.mxu0 0
      %399 = vmatprep.subr.bf16.mxu0 0
      %400 = vmatpush2.bf16.msra.mxu0 0
      %401 = vmatprep.subr.bf16.mxu0 0
      %402 = vmatpush2.bf16.msra.mxu0 0
      %403 = vmatprep.subr.bf16.mxu0 0
      %404 = vmatpush2.bf16.msra.mxu0 0
      %405 = vmatprep.subr.bf16.mxu0 0
      %406 = vmatpush2.bf16.msra.mxu0 0
      %407 = vmatprep.subr.bf16.mxu0 0
      %408 = vmatpush2.bf16.msra.mxu0 0
      %409 = vmatprep.subr.bf16.mxu0 0
      %410 = vmatpush2.bf16.msra.mxu0 0
      %411 = vmatprep.subr.bf16.mxu0 0
      %412 = vmatpush2.bf16.msra.mxu0 0
      %413 = vmatprep.mubr.bf16.mxu0 0
      %414 = vmatmul.mubr.bf16.gmra.mxu0 %v370
      %v415 = vpop.f32.mrf.mxu0
      %v416 = vadd.f32 0.0, %v415
      %v417 = vpop.f32.mrf.mxu0
      %v418 = vadd.f32 0.0, %v417
      %v419 = vpop.f32.mrf.mxu0
      %v420 = vadd.f32 0.0, %v419
      %v421 = vpop.f32.mrf.mxu0
      %v422 = vadd.f32 0.0, %v421
      %423 = vmatprep.mubr.bf16.mxu0 0
      %424 = vmatmul.mubr.bf16.gmra.mxu0 %v373
      %v425 = vpop.f32.mrf.mxu0
      %v426 = vadd.f32 0.0, %v425
      %v427 = vpop.f32.mrf.mxu0
      %v428 = vadd.f32 0.0, %v427
      %v429 = vpop.f32.mrf.mxu0
      %v430 = vadd.f32 0.0, %v429
      %v431 = vpop.f32.mrf.mxu0
      %v432 = vadd.f32 0.0, %v431
      %433 = vmatprep.mubr.bf16.mxu0 0
      %434 = vmatmul.mubr.bf16.gmra.mxu0 %v376
      %v435 = vpop.f32.mrf.mxu0
      %v436 = vadd.f32 0.0, %v435
      %v437 = vpop.f32.mrf.mxu0
      %v438 = vadd.f32 0.0, %v437
      %v439 = vpop.f32.mrf.mxu0
      %v440 = vadd.f32 0.0, %v439
      %v441 = vpop.f32.mrf.mxu0
      %v442 = vadd.f32 0.0, %v441
      %443 = vmatprep.mubr.bf16.mxu0 0
      %444 = vmatmul.mubr.bf16.gmra.mxu0 %v379
      %v445 = vpop.f32.mrf.mxu0
      %v446 = vadd.f32 0.0, %v445
      %v447 = vpop.f32.mrf.mxu0
      %v448 = vadd.f32 0.0, %v447
      %v449 = vpop.f32.mrf.mxu0
      %v450 = vadd.f32 0.0, %v449
      %v451 = vpop.f32.mrf.mxu0
      %v452 = vadd.f32 0.0, %v451
      %453 = vdwg.mxu0
      %v454 = vpack.c.bf16 %v422, %v418
      %v455 = vpack.c.bf16 %v432, %v428
      %v456 = vpack.c.bf16 %v442, %v438
      %v457 = vpack.c.bf16 %v452, %v448
      %v458 = vld [vmem:[%s2] sm:$0xf]
      %v459 = vld [vmem:[%s2 + $0x4] sm:$0xf]
      %v460 = vld [vmem:[%s3] sm:$0x1]
      %v462 = vlaneseq
      %v463 = vshrl.u32 %v462, 7
      %v464 = vsub.s32 0, %v463
      %v465 = vrot.slane %v460, %v464
      %471 = vrot.lane.b32.xlu0 %v454, 64
      %v472 = vpop.permute.xlu0 %471
      %473 = vrot.lane.b32.xlu0 %v455, 64
      %v474 = vpop.permute.xlu0 %473
      %475 = vrot.lane.b32.xlu0 %v456, 64
      %v476 = vpop.permute.xlu0 %475
      %477 = vrot.lane.b32.xlu0 %v457, 64
      %v478 = vpop.permute.xlu0 %477
      %v481 = vunpack.c.l.b16 %v458
      %v482 = vunpack.c.l.b16 %v459
      %v483 = vpack.c.b16 %v482, %v481
      %vm485 = vcmask 130048
      %v487 = vsel %vm485, %v472, 0
      %v490 = vsel %vm485, %v474, 0
      %v493 = vsel %vm485, %v476, 0
      %v496 = vsel %vm485, %v478, 0
      %498 = vmatprep.subr.bf16.mxu0 0
      %499 = vmatpush1.bf16.msra.mxu0 0
      %500 = vmatprep.subr.bf16.mxu0 0
      %501 = vmatpush1.bf16.msra.mxu0 0
      %502 = vmatprep.subr.bf16.mxu0 0
      %503 = vmatpush1.bf16.msra.mxu0 0
      %504 = vmatprep.subr.bf16.mxu0 0
      %505 = vmatpush1.bf16.msra.mxu0 0
      %506 = vmatprep.subr.bf16.mxu0 0
      %507 = vmatpush1.bf16.msra.mxu0 0
      %508 = vmatprep.subr.bf16.mxu0 0
      %509 = vmatpush1.bf16.msra.mxu0 0
      %510 = vmatprep.subr.bf16.mxu0 0
      %511 = vmatpush1.bf16.msra.mxu0 0
      %512 = vmatprep.subr.bf16.mxu0 0
      %513 = vmatpush1.bf16.msra.mxu0 %v483
      %514 = vmatprep.subr.bf16.mxu0 0
      %515 = vmatpush2.bf16.msra.mxu0 0
      %516 = vmatprep.subr.bf16.mxu0 0
      %517 = vmatpush2.bf16.msra.mxu0 0
      %518 = vmatprep.subr.bf16.mxu0 0
      %519 = vmatpush2.bf16.msra.mxu0 0
      %520 = vmatprep.subr.bf16.mxu0 0
      %521 = vmatpush2.bf16.msra.mxu0 0
      %522 = vmatprep.subr.bf16.mxu0 0
      %523 = vmatpush2.bf16.msra.mxu0 0
      %524 = vmatprep.subr.bf16.mxu0 0
      %525 = vmatpush2.bf16.msra.mxu0 0
      %526 = vmatprep.subr.bf16.mxu0 0
      %527 = vmatpush2.bf16.msra.mxu0 0
      %528 = vmatprep.subr.bf16.mxu0 0
      %529 = vmatpush2.bf16.msra.mxu0 0
      %530 = vmatprep.mubr.bf16.mxu0 0
      %531 = vmatmul.mubr.bf16.gmra.mxu0 %v487
      %v532 = vpop.f32.mrf.mxu0
      %v533 = vadd.f32 %v465, %v532
      %v534 = vpop.f32.mrf.mxu0
      %v535 = vpop.f32.mrf.mxu0
      %v536 = vadd.f32 %v465, %v535
      %v537 = vpop.f32.mrf.mxu0
      %538 = vmatprep.mubr.bf16.mxu0 0
      %539 = vmatmul.mubr.bf16.gmra.mxu0 %v490
      %v540 = vpop.f32.mrf.mxu0
      %v541 = vadd.f32 %v465, %v540
      %v542 = vpop.f32.mrf.mxu0
      %v543 = vpop.f32.mrf.mxu0
      %v544 = vadd.f32 %v465, %v543
      %v545 = vpop.f32.mrf.mxu0
      %546 = vmatprep.mubr.bf16.mxu0 0
      %547 = vmatmul.mubr.bf16.gmra.mxu0 %v493
      %v548 = vpop.f32.mrf.mxu0
      %v549 = vadd.f32 %v465, %v548
      %v550 = vpop.f32.mrf.mxu0
      %v551 = vpop.f32.mrf.mxu0
      %v552 = vadd.f32 %v465, %v551
      %v553 = vpop.f32.mrf.mxu0
      %554 = vmatprep.mubr.bf16.mxu0 0
      %555 = vmatmul.mubr.bf16.gmra.mxu0 %v496
      %v556 = vpop.f32.mrf.mxu0
      %v557 = vadd.f32 %v465, %v556
      %v558 = vpop.f32.mrf.mxu0
      %v559 = vpop.f32.mrf.mxu0
      %v560 = vadd.f32 %v465, %v559
      %v561 = vpop.f32.mrf.mxu0
      %562 = vdwg.mxu0
      %v563 = vmin.f32 %v533, 0.0
      %v564 = vmin.f32 %v536, 0.0
      %v565 = vmin.f32 %v541, 0.0
      %v566 = vmin.f32 %v544, 0.0
      %v567 = vmin.f32 %v549, 0.0
      %v568 = vmin.f32 %v552, 0.0
      %v569 = vmin.f32 %v557, 0.0
      %v570 = vmin.f32 %v560, 0.0
      %v571 = vand.u32 2147483647, %v533
      %v572 = vand.u32 2147483647, %v536
      %v573 = vand.u32 2147483647, %v541
      %v574 = vand.u32 2147483647, %v544
      %v575 = vand.u32 2147483647, %v549
      %v576 = vand.u32 2147483647, %v552
      %v577 = vand.u32 2147483647, %v557
      %v578 = vand.u32 2147483647, %v560
      %v579 = vsub.f32 0.0, %v571
      %v580 = vsub.f32 0.0, %v572
      %v581 = vsub.f32 0.0, %v573
      %v582 = vsub.f32 0.0, %v574
      %v583 = vsub.f32 0.0, %v575
      %v584 = vsub.f32 0.0, %v576
      %v585 = vsub.f32 0.0, %v577
      %v586 = vsub.f32 0.0, %v578
      %v587 = vmul.f32 %v579, 1.442695
      %v588 = vpow.pop %v587
      %v589 = vmul.f32 %v580, 1.442695
      %v590 = vpow.pop %v589
      %v591 = vmul.f32 %v581, 1.442695
      %v592 = vpow.pop %v591
      %v593 = vmul.f32 %v582, 1.442695
      %v594 = vpow.pop %v593
      %v595 = vmul.f32 %v583, 1.442695
      %v596 = vpow.pop %v595
      %v597 = vmul.f32 %v584, 1.442695
      %v598 = vpow.pop %v597
      %v599 = vmul.f32 %v585, 1.442695
      %v600 = vpow.pop %v599
      %v601 = vmul.f32 %v586, 1.442695
      %v602 = vpow.pop %v601
      %v603 = vadd.f32 %v588, 1.0
      %v604 = vadd.f32 %v590, 1.0
      %v605 = vadd.f32 %v592, 1.0
      %v606 = vadd.f32 %v594, 1.0
      %v607 = vadd.f32 %v596, 1.0
      %v608 = vadd.f32 %v598, 1.0
      %v609 = vadd.f32 %v600, 1.0
      %v610 = vadd.f32 %v602, 1.0
      %v611 = vlog2.pop %v603
      %v612 = vmul.f32 %v611, 0.6931472
      %v613 = vlog2.pop %v604
      %v614 = vmul.f32 %v613, 0.6931472
      %v615 = vlog2.pop %v605
      %v616 = vmul.f32 %v615, 0.6931472
      %v617 = vlog2.pop %v606
      %v618 = vmul.f32 %v617, 0.6931472
      %v619 = vlog2.pop %v607
      %v620 = vmul.f32 %v619, 0.6931472
      %v621 = vlog2.pop %v608
      %v622 = vmul.f32 %v621, 0.6931472
      %v623 = vlog2.pop %v609
      %v624 = vmul.f32 %v623, 0.6931472
      %v625 = vlog2.pop %v610
      %v626 = vmul.f32 %v625, 0.6931472
      %v627 = vsub.f32 %v563, %v612
      %v628 = vsub.f32 %v564, %v614
      %v629 = vsub.f32 %v565, %v616
      %v630 = vsub.f32 %v566, %v618
      %v631 = vsub.f32 %v567, %v620
      %v632 = vsub.f32 %v568, %v622
      %v633 = vsub.f32 %v569, %v624
      %v634 = vsub.f32 %v570, %v626
      %v635 = vrcp.pop 16.0
      %v636 = vmul.f32 %v627, %v635
      %v637 = vmul.f32 %v628, %v635
      %v638 = vmul.f32 %v629, %v635
      %v639 = vmul.f32 %v630, %v635
      %v640 = vmul.f32 %v631, %v635
      %v641 = vmul.f32 %v632, %v635
      %v642 = vmul.f32 %v633, %v635
      %v643 = vmul.f32 %v634, %v635
      %v644 = vlaneseq
      %v645 = vshrl.u32 %v644, 7
      %v646 = vadd.s32 %v645, 8
      %v647 = vadd.s32 %v645, 16
      %v648 = vadd.s32 %v645, 24
      %v649 = vadd.s32 %v645, 32
      %v650 = vadd.s32 %v645, 40
      %v651 = vadd.s32 %v645, 48
      %v652 = vadd.s32 %v645, 56
      %v653 = vrot.slane %v636, 7
      %v654 = vrot.slane %v637, 7
      %v655 = vrot.slane %v638, 7
      %v656 = vrot.slane %v639, 7
      %v657 = vrot.slane %v640, 7
      %v658 = vrot.slane %v641, 7
      %v659 = vrot.slane %v642, 7
      %v660 = vrot.slane %v643, 7
      %vm661 = vcmp.lt.s32.totalorder %v645, 1
      %v662 = vsel %vm661, %v659, %v660
      %v663 = vsel %vm661, %v658, %v659
      %v664 = vsel %vm661, %v657, %v658
      %v665 = vsel %vm661, %v656, %v657
      %v666 = vsel %vm661, %v655, %v656
      %v667 = vsel %vm661, %v654, %v655
      %v668 = vsel %vm661, %v653, %v654
      %v669 = vsel %vm661, %v660, %v653
      %vm670 = vcmp.ge.s32.totalorder %v645, 1
      %vm671 = vcmp.ge.s32.totalorder %v646, 1
      %vm672 = vcmp.ge.s32.totalorder %v647, 1
      %vm673 = vcmp.ge.s32.totalorder %v648, 1
      %vm674 = vcmp.ge.s32.totalorder %v649, 1
      %vm675 = vcmp.ge.s32.totalorder %v650, 1
      %vm676 = vcmp.ge.s32.totalorder %v651, 1
      %vm677 = vcmp.ge.s32.totalorder %v652, 1
      %v678 = vsel %vm670, %v669, 0.0
      %v679 = vsel %vm671, %v668, 0.0
      %v680 = vsel %vm672, %v667, 0.0
      %v681 = vsel %vm673, %v666, 0.0
      %v682 = vsel %vm674, %v665, 0.0
      %v683 = vsel %vm675, %v664, 0.0
      %v684 = vsel %vm676, %v663, 0.0
      %v685 = vsel %vm677, %v662, 0.0
      %v686 = vadd.f32 %v636, %v678
      %v687 = vadd.f32 %v637, %v679
      %v688 = vadd.f32 %v638, %v680
      %v689 = vadd.f32 %v639, %v681
      %v690 = vadd.f32 %v640, %v682
      %v691 = vadd.f32 %v641, %v683
      %v692 = vadd.f32 %v642, %v684
      %v693 = vadd.f32 %v643, %v685
      %v694 = vrot.slane %v686, 6
      %v695 = vrot.slane %v687, 6
      %v696 = vrot.slane %v688, 6
      %v697 = vrot.slane %v689, 6
      %v698 = vrot.slane %v690, 6
      %v699 = vrot.slane %v691, 6
      %v700 = vrot.slane %v692, 6
      %v701 = vrot.slane %v693, 6
      %vm702 = vcmp.lt.s32.totalorder %v645, 2
      %v703 = vsel %vm702, %v700, %v701
      %v704 = vsel %vm702, %v699, %v700
      %v705 = vsel %vm702, %v698, %v699
      %v706 = vsel %vm702, %v697, %v698
      %v707 = vsel %vm702, %v696, %v697
      %v708 = vsel %vm702, %v695, %v696
      %v709 = vsel %vm702, %v694, %v695
      %v710 = vsel %vm702, %v701, %v694
      %vm711 = vcmp.ge.s32.totalorder %v645, 2
      %vm712 = vcmp.ge.s32.totalorder %v646, 2
      %vm713 = vcmp.ge.s32.totalorder %v647, 2
      %vm714 = vcmp.ge.s32.totalorder %v648, 2
      %vm715 = vcmp.ge.s32.totalorder %v649, 2
      %vm716 = vcmp.ge.s32.totalorder %v650, 2
      %vm717 = vcmp.ge.s32.totalorder %v651, 2
      %vm718 = vcmp.ge.s32.totalorder %v652, 2
      %v719 = vsel %vm711, %v710, 0.0
      %v720 = vsel %vm712, %v709, 0.0
      %v721 = vsel %vm713, %v708, 0.0
      %v722 = vsel %vm714, %v707, 0.0
      %v723 = vsel %vm715, %v706, 0.0
      %v724 = vsel %vm716, %v705, 0.0
      %v725 = vsel %vm717, %v704, 0.0
      %v726 = vsel %vm718, %v703, 0.0
      %v727 = vadd.f32 %v686, %v719
      %v728 = vadd.f32 %v687, %v720
      %v729 = vadd.f32 %v688, %v721
      %v730 = vadd.f32 %v689, %v722
      %v731 = vadd.f32 %v690, %v723
      %v732 = vadd.f32 %v691, %v724
      %v733 = vadd.f32 %v692, %v725
      %v734 = vadd.f32 %v693, %v726
      %v735 = vrot.slane %v727, 4
      %v736 = vrot.slane %v728, 4
      %v737 = vrot.slane %v729, 4
      %v738 = vrot.slane %v730, 4
      %v739 = vrot.slane %v731, 4
      %v740 = vrot.slane %v732, 4
      %v741 = vrot.slane %v733, 4
      %v742 = vrot.slane %v734, 4
      %vm743 = vcmp.lt.s32.totalorder %v645, 4
      %v744 = vsel %vm743, %v741, %v742
      %v745 = vsel %vm743, %v740, %v741
      %v746 = vsel %vm743, %v739, %v740
      %v747 = vsel %vm743, %v738, %v739
      %v748 = vsel %vm743, %v737, %v738
      %v749 = vsel %vm743, %v736, %v737
      %v750 = vsel %vm743, %v735, %v736
      %v751 = vsel %vm743, %v742, %v735
      %vm752 = vcmp.ge.s32.totalorder %v645, 4
      %vm753 = vcmp.ge.s32.totalorder %v646, 4
      %vm754 = vcmp.ge.s32.totalorder %v647, 4
      %vm755 = vcmp.ge.s32.totalorder %v648, 4
      %vm756 = vcmp.ge.s32.totalorder %v649, 4
      %vm757 = vcmp.ge.s32.totalorder %v650, 4
      %vm758 = vcmp.ge.s32.totalorder %v651, 4
      %vm759 = vcmp.ge.s32.totalorder %v652, 4
      %v760 = vsel %vm752, %v751, 0.0
      %v761 = vsel %vm753, %v750, 0.0
      %v762 = vsel %vm754, %v749, 0.0
      %v763 = vsel %vm755, %v748, 0.0
      %v764 = vsel %vm756, %v747, 0.0
      %v765 = vsel %vm757, %v746, 0.0
      %v766 = vsel %vm758, %v745, 0.0
      %v767 = vsel %vm759, %v744, 0.0
      %v768 = vadd.f32 %v727, %v760
      %v769 = vadd.f32 %v728, %v761
      %v770 = vadd.f32 %v729, %v762
      %v771 = vadd.f32 %v730, %v763
      %v772 = vadd.f32 %v731, %v764
      %v773 = vadd.f32 %v732, %v765
      %v774 = vadd.f32 %v733, %v766
      %v775 = vadd.f32 %v734, %v767
      %vm776 = vcmp.ge.s32.totalorder %v645, 8
      %vm777 = vcmp.ge.s32.totalorder %v646, 8
      %vm778 = vcmp.ge.s32.totalorder %v647, 8
      %vm779 = vcmp.ge.s32.totalorder %v648, 8
      %vm780 = vcmp.ge.s32.totalorder %v649, 8
      %vm781 = vcmp.ge.s32.totalorder %v650, 8
      %vm782 = vcmp.ge.s32.totalorder %v651, 8
      %vm783 = vcmp.ge.s32.totalorder %v652, 8
      %v784 = vsel %vm776, %v775, 0.0
      %v785 = vsel %vm777, %v768, 0.0
      %v786 = vsel %vm778, %v769, 0.0
      %v787 = vsel %vm779, %v770, 0.0
      %v788 = vsel %vm780, %v771, 0.0
      %v789 = vsel %vm781, %v772, 0.0
      %v790 = vsel %vm782, %v773, 0.0
      %v791 = vsel %vm783, %v774, 0.0
      %v792 = vadd.f32 %v768, %v784
      %v793 = vadd.f32 %v769, %v785
      %v794 = vadd.f32 %v770, %v786
      %v795 = vadd.f32 %v771, %v787
      %v796 = vadd.f32 %v772, %v788
      %v797 = vadd.f32 %v773, %v789
      %v798 = vadd.f32 %v774, %v790
      %v799 = vadd.f32 %v775, %v791
      %vm800 = vcmp.ge.s32.totalorder %v645, 16
      %vm801 = vcmp.ge.s32.totalorder %v646, 16
      %vm802 = vcmp.ge.s32.totalorder %v647, 16
      %vm803 = vcmp.ge.s32.totalorder %v648, 16
      %vm804 = vcmp.ge.s32.totalorder %v649, 16
      %vm805 = vcmp.ge.s32.totalorder %v650, 16
      %vm806 = vcmp.ge.s32.totalorder %v651, 16
      %vm807 = vcmp.ge.s32.totalorder %v652, 16
      %v808 = vsel %vm800, %v798, 0.0
      %v809 = vsel %vm801, %v799, 0.0
      %v810 = vsel %vm802, %v792, 0.0
      %v811 = vsel %vm803, %v793, 0.0
      %v812 = vsel %vm804, %v794, 0.0
      %v813 = vsel %vm805, %v795, 0.0
      %v814 = vsel %vm806, %v796, 0.0
      %v815 = vsel %vm807, %v797, 0.0
      %v816 = vadd.f32 %v792, %v808
      %v817 = vadd.f32 %v793, %v809
      %v818 = vadd.f32 %v794, %v810
      %v819 = vadd.f32 %v795, %v811
      %v820 = vadd.f32 %v796, %v812
      %v821 = vadd.f32 %v797, %v813
      %v822 = vadd.f32 %v798, %v814
      %v823 = vadd.f32 %v799, %v815
      %vm824 = vcmp.ge.s32.totalorder %v645, 32
      %vm825 = vcmp.ge.s32.totalorder %v646, 32
      %vm826 = vcmp.ge.s32.totalorder %v647, 32
      %vm827 = vcmp.ge.s32.totalorder %v648, 32
      %vm828 = vcmp.ge.s32.totalorder %v649, 32
      %vm829 = vcmp.ge.s32.totalorder %v650, 32
      %vm830 = vcmp.ge.s32.totalorder %v651, 32
      %vm831 = vcmp.ge.s32.totalorder %v652, 32
      %v832 = vsel %vm824, %v820, 0.0
      %v833 = vsel %vm825, %v821, 0.0
      %v834 = vsel %vm826, %v822, 0.0
      %v835 = vsel %vm827, %v823, 0.0
      %v836 = vsel %vm828, %v816, 0.0
      %v837 = vsel %vm829, %v817, 0.0
      %v838 = vsel %vm830, %v818, 0.0
      %v839 = vsel %vm831, %v819, 0.0
      %v840 = vadd.f32 %v816, %v832
      %v841 = vadd.f32 %v817, %v833
      %v842 = vadd.f32 %v818, %v834
      %v843 = vadd.f32 %v819, %v835
      %v844 = vadd.f32 %v820, %v836
      %v845 = vadd.f32 %v821, %v837
      %v846 = vadd.f32 %v822, %v838
      %v847 = vadd.f32 %v823, %v839
      %v848 = vmul.f32 %v840, 1.442695
      %v849 = vpow.pop %v848
      %v850 = vmul.f32 %v841, 1.442695
      %v851 = vpow.pop %v850
      %v852 = vmul.f32 %v842, 1.442695
      %v853 = vpow.pop %v852
      %v854 = vmul.f32 %v843, 1.442695
      %v855 = vpow.pop %v854
      %v856 = vmul.f32 %v844, 1.442695
      %v857 = vpow.pop %v856
      %v858 = vmul.f32 %v845, 1.442695
      %v859 = vpow.pop %v858
      %v860 = vmul.f32 %v846, 1.442695
      %v861 = vpow.pop %v860
      %v862 = vmul.f32 %v847, 1.442695
      %v863 = vpow.pop %v862
      %v864 = vrcp.pop %v849
      %v865 = vrcp.pop %v851
      %v866 = vrcp.pop %v853
      %v867 = vrcp.pop %v855
      %v868 = vrcp.pop %v857
      %v869 = vrcp.pop %v859
      %v870 = vrcp.pop %v861
      %v871 = vrcp.pop %v863
      %v872 = vmul.f32 %v416, %v849
      %v873 = vmul.f32 %v420, %v851
      %v874 = vmul.f32 %v426, %v853
      %v875 = vmul.f32 %v430, %v855
      %v876 = vmul.f32 %v436, %v857
      %v877 = vmul.f32 %v440, %v859
      %v878 = vmul.f32 %v446, %v861
      %v879 = vmul.f32 %v450, %v863
      %v880 = vmul.f32 %v872, 0.35355338
      %v881 = vmul.f32 %v873, 0.35355338
      %v882 = vmul.f32 %v874, 0.35355338
      %v883 = vmul.f32 %v875, 0.35355338
      %v884 = vmul.f32 %v876, 0.35355338
      %v885 = vmul.f32 %v877, 0.35355338
      %v886 = vmul.f32 %v878, 0.35355338
      %v887 = vmul.f32 %v879, 0.35355338
      %v888 = vpack.c.bf16 %v881, %v880
      %v889 = vpack.c.bf16 %v883, %v882
      %v890 = vpack.c.bf16 %v885, %v884
      %v891 = vpack.c.bf16 %v887, %v886
      %900 = vrot.lane.b32.xlu0 %v864, 32
      %v901 = vpop.permute.xlu0 %900
      %902 = vrot.lane.b32.xlu0 %v865, 32
      %v903 = vpop.permute.xlu0 %902
      %904 = vrot.lane.b32.xlu0 %v866, 32
      %v905 = vpop.permute.xlu0 %904
      %906 = vrot.lane.b32.xlu0 %v867, 32
      %v907 = vpop.permute.xlu0 %906
      %908 = vrot.lane.b32.xlu0 %v868, 32
      %v909 = vpop.permute.xlu0 %908
      %910 = vrot.lane.b32.xlu0 %v869, 32
      %v911 = vpop.permute.xlu0 %910
      %912 = vrot.lane.b32.xlu0 %v870, 32
      %v913 = vpop.permute.xlu0 %912
      %914 = vrot.lane.b32.xlu0 %v871, 32
      %v915 = vpop.permute.xlu0 %914
      %v924 = vmul.f32 %v416, %v901
      %v925 = vmul.f32 %v420, %v903
      %v926 = vmul.f32 %v426, %v905
      %v927 = vmul.f32 %v430, %v907
      %v928 = vmul.f32 %v436, %v909
      %v929 = vmul.f32 %v440, %v911
      %v930 = vmul.f32 %v446, %v913
      %v931 = vmul.f32 %v450, %v915
      %v932 = vpack.c.bf16 %v925, %v924
      %v933 = vpack.c.bf16 %v927, %v926
      %v934 = vpack.c.bf16 %v929, %v928
      %v935 = vpack.c.bf16 %v931, %v930
      %v936 = vlaneseq
      %v937 = vshrl.u32 %v936, 7
      %v938 = vsub.s32 7, %v937
      %v939 = vrot.slane %v863, %v938
      %941 = vrot.lane.b32.xlu0 %v939, 32
      %v942 = vpop.permute.xlu0 %941
      %v944 = vmul.f32 %v924, %v942
      %v945 = vmul.f32 %v925, %v942
      %v946 = vmul.f32 %v926, %v942
      %v947 = vmul.f32 %v927, %v942
      %v948 = vmul.f32 %v928, %v942
      %v949 = vmul.f32 %v929, %v942
      %v950 = vmul.f32 %v930, %v942
      %v951 = vmul.f32 %v931, %v942
      %v952 = vpack.c.bf16 %v945, %v944
      %v953 = vpack.c.bf16 %v947, %v946
      %v954 = vpack.c.bf16 %v949, %v948
      %v955 = vpack.c.bf16 %v951, %v950
      %v956 = vpack.c.bf16 %v420, %v416
      %v957 = vpack.c.bf16 %v430, %v426
      %v958 = vpack.c.bf16 %v440, %v436
      %v959 = vpack.c.bf16 %v450, %v446
      %v960 = vld [vmem:[%s6] sm:$0xff]
      %v961 = vld [vmem:[%s6 + $0x8] sm:$0xff]
      %v962 = vld [vmem:[%s6 + $0x10] sm:$0xff]
      %v963 = vld [vmem:[%s6 + $0x18] sm:$0xff]
      %v964 = vld [vmem:[%s6 + $0x20] sm:$0xff]
      %v965 = vld [vmem:[%s6 + $0x28] sm:$0xff]
      %v966 = vld [vmem:[%s6 + $0x30] sm:$0xff]
      %v967 = vld [vmem:[%s6 + $0x38] sm:$0xff]
      %vm968 = vcmp.ne.f32.partialorder %v960, 0.0
      %vm969 = vcmp.ne.f32.partialorder %v961, 0.0
      %vm970 = vcmp.ne.f32.partialorder %v962, 0.0
      %vm971 = vcmp.ne.f32.partialorder %v963, 0.0
      %vm972 = vcmp.ne.f32.partialorder %v964, 0.0
      %vm973 = vcmp.ne.f32.partialorder %v965, 0.0
      %vm974 = vcmp.ne.f32.partialorder %v966, 0.0
      %vm975 = vcmp.ne.f32.partialorder %v967, 0.0
      %v976 = vld [vmem:[#allocation3] sm:$0xff]
      %v977 = vld [vmem:[#allocation3 + $0x8] sm:$0xff]
      %v978 = vpack.c.bf16 %v977, %v976
      %983 = vrot.lane.b32.xlu0 %v932, 96
      %v984 = vpop.permute.xlu0 %983
      %985 = vrot.lane.b32.xlu0 %v933, 96
      %v986 = vpop.permute.xlu0 %985
      %987 = vrot.lane.b32.xlu0 %v934, 96
      %v988 = vpop.permute.xlu0 %987
      %989 = vrot.lane.b32.xlu0 %v935, 96
      %v990 = vpop.permute.xlu0 %989
      %vm991 = vcmask 64512
      %v993 = vsel %vm991, %v888, 0
      %v996 = vsel %vm991, %v889, 0
      %v999 = vsel %vm991, %v890, 0
      %v1002 = vsel %vm991, %v891, 0
      %v1005 = vsel %vm991, %v984, 0
      %v1008 = vsel %vm991, %v986, 0
      %v1011 = vsel %vm991, %v988, 0
      %v1014 = vsel %vm991, %v990, 0
      %1016 = vmatprep.subr.bf16.mxu0 0
      %1017 = vmatpush1.bf16.xpose.msra.mxu0 0
      %1018 = vmatprep.subr.bf16.mxu0 0
      %1019 = vmatpush1.bf16.xpose.msra.mxu0 0
      %1020 = vmatprep.subr.bf16.mxu0 0
      %1021 = vmatpush1.bf16.xpose.msra.mxu0 0
      %1022 = vmatprep.subr.bf16.mxu0 0
      %1023 = vmatpush1.bf16.xpose.msra.mxu0 0
      %1024 = vmatprep.subr.bf16.mxu0 0
      %1025 = vmatpush1.bf16.xpose.msra.mxu0 %v1014
      %1026 = vmatprep.subr.bf16.mxu0 0
      %1027 = vmatpush1.bf16.xpose.msra.mxu0 %v1011
      %1028 = vmatprep.subr.bf16.mxu0 0
      %1029 = vmatpush1.bf16.xpose.msra.mxu0 %v1008
      %1030 = vmatprep.subr.bf16.mxu0 0
      %1031 = vmatpush1.bf16.xpose.msra.mxu0 %v1005
      %1032 = vmatprep.subr.bf16.mxu0 0
      %1033 = vmatpush2.bf16.xpose.msra.mxu0 0
      %1034 = vmatprep.subr.bf16.mxu0 0
      %1035 = vmatpush2.bf16.xpose.msra.mxu0 0
      %1036 = vmatprep.subr.bf16.mxu0 0
      %1037 = vmatpush2.bf16.xpose.msra.mxu0 0
      %1038 = vmatprep.subr.bf16.mxu0 0
      %1039 = vmatpush2.bf16.xpose.msra.mxu0 0
      %1040 = vmatprep.subr.bf16.mxu0 0
      %1041 = vmatpush2.bf16.xpose.msra.mxu0 0
      %1042 = vmatprep.subr.bf16.mxu0 0
      %1043 = vmatpush2.bf16.xpose.msra.mxu0 0
      %1044 = vmatprep.subr.bf16.mxu0 0
      %1045 = vmatpush2.bf16.xpose.msra.mxu0 0
      %1046 = vmatprep.subr.bf16.mxu0 0
      %1047 = vmatpush2.bf16.xpose.msra.mxu0 0
      %1048 = vmatprep.mubr.bf16.mxu0 0
      %1049 = vmatmul.mubr.bf16.gmra.mxu0 %v993
      %v1050 = vpop.f32.mrf.mxu0
      %v1051 = vadd.f32 0.0, %v1050
      %v1052 = vpop.f32.mrf.mxu0
      %v1053 = vpop.f32.mrf.mxu0
      %v1054 = vadd.f32 0.0, %v1053
      %v1055 = vpop.f32.mrf.mxu0
      %1056 = vmatprep.mubr.bf16.mxu0 0
      %1057 = vmatmul.mubr.bf16.gmra.mxu0 %v996
      %v1058 = vpop.f32.mrf.mxu0
      %v1059 = vadd.f32 0.0, %v1058
      %v1060 = vpop.f32.mrf.mxu0
      %v1061 = vpop.f32.mrf.mxu0
      %v1062 = vadd.f32 0.0, %v1061
      %v1063 = vpop.f32.mrf.mxu0
      %1064 = vmatprep.mubr.bf16.mxu0 0
      %1065 = vmatmul.mubr.bf16.gmra.mxu0 %v999
      %v1066 = vpop.f32.mrf.mxu0
      %v1067 = vadd.f32 0.0, %v1066
      %v1068 = vpop.f32.mrf.mxu0
      %v1069 = vpop.f32.mrf.mxu0
      %v1070 = vadd.f32 0.0, %v1069
      %v1071 = vpop.f32.mrf.mxu0
      %1072 = vmatprep.mubr.bf16.mxu0 0
      %1073 = vmatmul.mubr.bf16.gmra.mxu0 %v1002
      %v1074 = vpop.f32.mrf.mxu0
      %v1075 = vadd.f32 0.0, %v1074
      %v1076 = vpop.f32.mrf.mxu0
      %v1077 = vpop.f32.mrf.mxu0
      %v1078 = vadd.f32 0.0, %v1077
      %v1079 = vpop.f32.mrf.mxu0
      %1080 = vdwg.mxu0
      %v1081 = vsel %vm968, %v1051, 0.0
      %v1082 = vsel %vm969, %v1054, 0.0
      %v1083 = vsel %vm970, %v1059, 0.0
      %v1084 = vsel %vm971, %v1062, 0.0
      %v1085 = vsel %vm972, %v1067, 0.0
      %v1086 = vsel %vm973, %v1070, 0.0
      %v1087 = vsel %vm974, %v1075, 0.0
      %v1088 = vsel %vm975, %v1078, 0.0
      %v1089 = vpack.c.bf16 %v1082, %v1081
      %v1090 = vpack.c.bf16 %v1084, %v1083
      %v1091 = vpack.c.bf16 %v1086, %v1085
      %v1092 = vpack.c.bf16 %v1088, %v1087
      %1097 = vrot.lane.b32.xlu0 %v956, 64
      %v1098 = vpop.permute.xlu0 %1097
      %1099 = vrot.lane.b32.xlu0 %v957, 64
      %v1100 = vpop.permute.xlu0 %1099
      %1101 = vrot.lane.b32.xlu0 %v958, 64
      %v1102 = vpop.permute.xlu0 %1101
      %1103 = vrot.lane.b32.xlu0 %v959, 64
      %v1104 = vpop.permute.xlu0 %1103
      %vm1109 = vcmask 523264
      %v1111 = vsel %vm1109, %v1089, 0
      %v1114 = vsel %vm1109, %v1090, 0
      %v1117 = vsel %vm1109, %v1091, 0
      %v1120 = vsel %vm1109, %v1092, 0
      %1122 = vmatprep.subr.bf16.mxu0 0
      %1123 = vmatpush1.bf16.msra.mxu0 0
      %1124 = vmatprep.subr.bf16.mxu0 0
      %1125 = vmatpush1.bf16.msra.mxu0 0
      %1126 = vmatprep.subr.bf16.mxu0 0
      %1127 = vmatpush1.bf16.msra.mxu0 0
      %1128 = vmatprep.subr.bf16.mxu0 0
      %1129 = vmatpush1.bf16.msra.mxu0 0
      %1130 = vmatprep.subr.bf16.mxu0 0
      %1131 = vmatpush1.bf16.msra.mxu0 %v1104
      %1132 = vmatprep.subr.bf16.mxu0 0
      %1133 = vmatpush1.bf16.msra.mxu0 %v1102
      %1134 = vmatprep.subr.bf16.mxu0 0
      %1135 = vmatpush1.bf16.msra.mxu0 %v1100
      %1136 = vmatprep.subr.bf16.mxu0 0
      %1137 = vmatpush1.bf16.msra.mxu0 %v1098
      %1138 = vmatprep.subr.bf16.mxu0 0
      %1139 = vmatpush2.bf16.msra.mxu0 0
      %1140 = vmatprep.subr.bf16.mxu0 0
      %1141 = vmatpush2.bf16.msra.mxu0 0
      %1142 = vmatprep.subr.bf16.mxu0 0
      %1143 = vmatpush2.bf16.msra.mxu0 0
      %1144 = vmatprep.subr.bf16.mxu0 0
      %1145 = vmatpush2.bf16.msra.mxu0 0
      %1146 = vmatprep.subr.bf16.mxu0 0
      %1147 = vmatpush2.bf16.msra.mxu0 0
      %1148 = vmatprep.subr.bf16.mxu0 0
      %1149 = vmatpush2.bf16.msra.mxu0 0
      %1150 = vmatprep.subr.bf16.mxu0 0
      %1151 = vmatpush2.bf16.msra.mxu0 0
      %1152 = vmatprep.subr.bf16.mxu0 0
      %1153 = vmatpush2.bf16.msra.mxu0 0
      %1154 = vmatprep.mubr.bf16.mxu0 0
      %1155 = vmatmul.mubr.bf16.gmra.mxu0 %v1111
      %v1156 = vpop.f32.mrf.mxu0
      %v1157 = vadd.f32 0.0, %v1156
      %v1158 = vpop.f32.mrf.mxu0
      %v1159 = vpop.f32.mrf.mxu0
      %v1160 = vadd.f32 0.0, %v1159
      %v1161 = vpop.f32.mrf.mxu0
      %1162 = vmatprep.mubr.bf16.mxu0 0
      %1163 = vmatmul.mubr.bf16.gmra.mxu0 %v1114
      %v1164 = vpop.f32.mrf.mxu0
      %v1165 = vadd.f32 0.0, %v1164
      %v1166 = vpop.f32.mrf.mxu0
      %v1167 = vpop.f32.mrf.mxu0
      %v1168 = vadd.f32 0.0, %v1167
      %v1169 = vpop.f32.mrf.mxu0
      %1170 = vmatprep.mubr.bf16.mxu0 0
      %1171 = vmatmul.mubr.bf16.gmra.mxu0 %v1117
      %v1172 = vpop.f32.mrf.mxu0
      %v1173 = vadd.f32 0.0, %v1172
      %v1174 = vpop.f32.mrf.mxu0
      %v1175 = vpop.f32.mrf.mxu0
      %v1176 = vadd.f32 0.0, %v1175
      %v1177 = vpop.f32.mrf.mxu0
      %1178 = vmatprep.mubr.bf16.mxu0 0
      %1179 = vmatmul.mubr.bf16.gmra.mxu0 %v1120
      %v1180 = vpop.f32.mrf.mxu0
      %v1181 = vadd.f32 0.0, %v1180
      %v1182 = vpop.f32.mrf.mxu0
      %v1183 = vpop.f32.mrf.mxu0
      %v1184 = vadd.f32 0.0, %v1183
      %v1185 = vpop.f32.mrf.mxu0
      %1186 = vdwg.mxu0
      %v1188 = vsel %vm991, %v978, 0
      %1190 = vmatprep.subr.bf16.mxu0 0
      %1191 = vmatpush1.bf16.xpose.msra.mxu0 0
      %1192 = vmatprep.subr.bf16.mxu0 0
      %1193 = vmatpush1.bf16.xpose.msra.mxu0 0
      %1194 = vmatprep.subr.bf16.mxu0 0
      %1195 = vmatpush1.bf16.xpose.msra.mxu0 0
      %1196 = vmatprep.subr.bf16.mxu0 0
      %1197 = vmatpush1.bf16.xpose.msra.mxu0 0
      %1198 = vmatprep.subr.bf16.mxu0 0
      %1199 = vmatpush1.bf16.xpose.msra.mxu0 0
      %1200 = vmatprep.subr.bf16.mxu0 0
      %1201 = vmatpush1.bf16.xpose.msra.mxu0 0
      %1202 = vmatprep.subr.bf16.mxu0 0
      %1203 = vmatpush1.bf16.xpose.msra.mxu0 0
      %1204 = vmatprep.subr.bf16.mxu0 0
      %1205 = vmatpush1.bf16.xpose.msra.mxu0 %v1188
      %1206 = vmatprep.subr.bf16.mxu0 0
      %1207 = vmatpush2.bf16.xpose.msra.mxu0 0
      %1208 = vmatprep.subr.bf16.mxu0 0
      %1209 = vmatpush2.bf16.xpose.msra.mxu0 0
      %1210 = vmatprep.subr.bf16.mxu0 0
      %1211 = vmatpush2.bf16.xpose.msra.mxu0 0
      %1212 = vmatprep.subr.bf16.mxu0 0
      %1213 = vmatpush2.bf16.xpose.msra.mxu0 0
      %1214 = vmatprep.subr.bf16.mxu0 0
      %1215 = vmatpush2.bf16.xpose.msra.mxu0 0
      %1216 = vmatprep.subr.bf16.mxu0 0
      %1217 = vmatpush2.bf16.xpose.msra.mxu0 0
      %1218 = vmatprep.subr.bf16.mxu0 0
      %1219 = vmatpush2.bf16.xpose.msra.mxu0 0
      %1220 = vmatprep.subr.bf16.mxu0 0
      %1221 = vmatpush2.bf16.xpose.msra.mxu0 0
      %1222 = vmatprep.mubr.bf16.mxu0 0
      %1223 = vmatmul.mubr.bf16.gmra.mxu0 %v993
      %v1224 = vpop.f32.mrf.mxu0
      %v1225 = vadd.f32 %v1157, %v1224
      %v1226 = vpop.f32.mrf.mxu0
      %v1227 = vpop.f32.mrf.mxu0
      %v1228 = vadd.f32 %v1160, %v1227
      %v1229 = vpop.f32.mrf.mxu0
      %1230 = vmatprep.mubr.bf16.mxu0 0
      %1231 = vmatmul.mubr.bf16.gmra.mxu0 %v996
      %v1232 = vpop.f32.mrf.mxu0
      %v1233 = vadd.f32 %v1165, %v1232
      %v1234 = vpop.f32.mrf.mxu0
      %v1235 = vpop.f32.mrf.mxu0
      %v1236 = vadd.f32 %v1168, %v1235
      %v1237 = vpop.f32.mrf.mxu0
      %1238 = vmatprep.mubr.bf16.mxu0 0
      %1239 = vmatmul.mubr.bf16.gmra.mxu0 %v999
      %v1240 = vpop.f32.mrf.mxu0
      %v1241 = vadd.f32 %v1173, %v1240
      %v1242 = vpop.f32.mrf.mxu0
      %v1243 = vpop.f32.mrf.mxu0
      %v1244 = vadd.f32 %v1176, %v1243
      %v1245 = vpop.f32.mrf.mxu0
      %1246 = vmatprep.mubr.bf16.mxu0 0
      %1247 = vmatmul.mubr.bf16.gmra.mxu0 %v1002
      %v1248 = vpop.f32.mrf.mxu0
      %v1249 = vadd.f32 %v1181, %v1248
      %v1250 = vpop.f32.mrf.mxu0
      %v1251 = vpop.f32.mrf.mxu0
      %v1252 = vadd.f32 %v1184, %v1251
      %v1253 = vpop.f32.mrf.mxu0
      %1254 = vdwg.mxu0
      %v1255 = vmul.f32 %v976, %v939
      %v1256 = vmul.f32 %v977, %v939
      %1257 = vxpose.xlu0.c.b16.start [1/8] %v1098, 128
      %1258 = vxpose.xlu0.c.b16.cont [2/8] %v1100, 128
      %1259 = vxpose.xlu0.c.b16.cont [3/8] %v1102, 128
      %1260 = vxpose.xlu0.c.b16.cont [4/8] %v1104, 128
      %1261 = vxpose.xlu0.c.b16.cont [5/8] 0, 128
      %1262 = vxpose.xlu0.c.b16.cont [6/8] 0, 128
      %1263 = vxpose.xlu0.c.b16.cont [7/8] 0, 128
      %1264 = vxpose.xlu0.c.b16.end [8/8] 0, 128
      %v1265 = vpop.trf.xlu0
      %v1266 = vpop.trf.xlu0
      %v1267 = vpop.trf.xlu0
      %v1268 = vpop.trf.xlu0
      %v1269 = vpop.trf.xlu0
      %v1270 = vpop.trf.xlu0
      %v1271 = vpop.trf.xlu0
      %v1272 = vpop.trf.xlu0
      %1277 = vrot.lane.b32.xlu0 %v952, 96
      %v1278 = vpop.permute.xlu0 %1277
      %1279 = vrot.lane.b32.xlu0 %v953, 96
      %v1280 = vpop.permute.xlu0 %1279
      %1281 = vrot.lane.b32.xlu0 %v954, 96
      %v1282 = vpop.permute.xlu0 %1281
      %1283 = vrot.lane.b32.xlu0 %v955, 96
      %v1284 = vpop.permute.xlu0 %1283
      %v1290 = vsel %vm1109, %v1265, 0
      %1292 = vmatprep.subr.bf16.mxu0 0
      %1293 = vmatpush1.bf16.msra.mxu0 0
      %1294 = vmatprep.subr.bf16.mxu0 0
      %1295 = vmatpush1.bf16.msra.mxu0 0
      %1296 = vmatprep.subr.bf16.mxu0 0
      %1297 = vmatpush1.bf16.msra.mxu0 0
      %1298 = vmatprep.subr.bf16.mxu0 0
      %1299 = vmatpush1.bf16.msra.mxu0 0
      %1300 = vmatprep.subr.bf16.mxu0 0
      %1301 = vmatpush1.bf16.msra.mxu0 %v1284
      %1302 = vmatprep.subr.bf16.mxu0 0
      %1303 = vmatpush1.bf16.msra.mxu0 %v1282
      %1304 = vmatprep.subr.bf16.mxu0 0
      %1305 = vmatpush1.bf16.msra.mxu0 %v1280
      %1306 = vmatprep.subr.bf16.mxu0 0
      %1307 = vmatpush1.bf16.msra.mxu0 %v1278
      %1308 = vmatprep.subr.bf16.mxu0 0
      %1309 = vmatpush2.bf16.msra.mxu0 0
      %1310 = vmatprep.subr.bf16.mxu0 0
      %1311 = vmatpush2.bf16.msra.mxu0 0
      %1312 = vmatprep.subr.bf16.mxu0 0
      %1313 = vmatpush2.bf16.msra.mxu0 0
      %1314 = vmatprep.subr.bf16.mxu0 0
      %1315 = vmatpush2.bf16.msra.mxu0 0
      %1316 = vmatprep.subr.bf16.mxu0 0
      %1317 = vmatpush2.bf16.msra.mxu0 0
      %1318 = vmatprep.subr.bf16.mxu0 0
      %1319 = vmatpush2.bf16.msra.mxu0 0
      %1320 = vmatprep.subr.bf16.mxu0 0
      %1321 = vmatpush2.bf16.msra.mxu0 0
      %1322 = vmatprep.subr.bf16.mxu0 0
      %1323 = vmatpush2.bf16.msra.mxu0 0
      %1324 = vmatprep.mubr.bf16.mxu0 0
      %1325 = vmatmul.mubr.bf16.gmra.mxu0 %v1290
      %v1326 = vpop.f32.mrf.mxu0
      %v1327 = vadd.f32 0.0, %v1326
      %v1328 = vpop.f32.mrf.mxu0
      %v1329 = vpop.f32.mrf.mxu0
      %v1330 = vadd.f32 0.0, %v1329
      %v1331 = vpop.f32.mrf.mxu0
      %1332 = vdwg.mxu0
      %v1333 = vadd.f32 %v1255, %v1327
      %v1334 = vadd.f32 %v1256, %v1330
      %1335 = vst.msk [vmem:[#allocation3] sm:$0xff] %vm991, %v1333
      %1336 = vst.msk [vmem:[#allocation3 + $0x8] sm:$0xff] %vm991, %v1334
      %v1337 = vmul.f32 %v1225, %v1225
      %v1338 = vmul.f32 %v1228, %v1228
      %v1339 = vmul.f32 %v1233, %v1233
      %v1340 = vmul.f32 %v1236, %v1236
      %v1341 = vmul.f32 %v1241, %v1241
      %v1342 = vmul.f32 %v1244, %v1244
      %v1343 = vmul.f32 %v1249, %v1249
      %v1344 = vmul.f32 %v1252, %v1252
      %v1345 = vsel %vm485, %v1337, 0.0
      %1346 = vadd.xlane.f32.xlu0 %v1345
      %v1347 = vpop.xlane.xlu0 %1346
      %v1348 = vsel %vm485, %v1338, 0.0
      %1349 = vadd.xlane.f32.xlu0 %v1348
      %v1350 = vpop.xlane.xlu0 %1349
      %v1351 = vsel %vm485, %v1339, 0.0
      %1352 = vadd.xlane.f32.xlu0 %v1351
      %v1353 = vpop.xlane.xlu0 %1352
      %v1354 = vsel %vm485, %v1340, 0.0
      %1355 = vadd.xlane.f32.xlu0 %v1354
      %v1356 = vpop.xlane.xlu0 %1355
      %v1357 = vsel %vm485, %v1341, 0.0
      %1358 = vadd.xlane.f32.xlu0 %v1357
      %v1359 = vpop.xlane.xlu0 %1358
      %v1360 = vsel %vm485, %v1342, 0.0
      %1361 = vadd.xlane.f32.xlu0 %v1360
      %v1362 = vpop.xlane.xlu0 %1361
      %v1363 = vsel %vm485, %v1343, 0.0
      %1364 = vadd.xlane.f32.xlu0 %v1363
      %v1365 = vpop.xlane.xlu0 %1364
      %v1366 = vsel %vm485, %v1344, 0.0
      %1367 = vadd.xlane.f32.xlu0 %v1366
      %v1368 = vpop.xlane.xlu0 %1367
      %v1369 = vmul.f32 %v1347, %v635
      %v1370 = vmul.f32 %v1350, %v635
      %v1371 = vmul.f32 %v1353, %v635
      %v1372 = vmul.f32 %v1356, %v635
      %v1373 = vmul.f32 %v1359, %v635
      %v1374 = vmul.f32 %v1362, %v635
      %v1375 = vmul.f32 %v1365, %v635
      %v1376 = vmul.f32 %v1368, %v635
      %v1377 = vadd.f32 %v1369, 1e-05
      %v1378 = vadd.f32 %v1370, 1e-05
      %v1379 = vadd.f32 %v1371, 1e-05
      %v1380 = vadd.f32 %v1372, 1e-05
      %v1381 = vadd.f32 %v1373, 1e-05
      %v1382 = vadd.f32 %v1374, 1e-05
      %v1383 = vadd.f32 %v1375, 1e-05
      %v1384 = vadd.f32 %v1376, 1e-05
      %v1385 = vrsqrt.pop %v1377
      %v1386 = vrsqrt.pop %v1378
      %v1387 = vrsqrt.pop %v1379
      %v1388 = vrsqrt.pop %v1380
      %v1389 = vrsqrt.pop %v1381
      %v1390 = vrsqrt.pop %v1382
      %v1391 = vrsqrt.pop %v1383
      %v1392 = vrsqrt.pop %v1384
      %v1393 = vmul.f32 %v1225, %v1385
      %v1394 = vmul.f32 %v1228, %v1386
      %v1395 = vmul.f32 %v1233, %v1387
      %v1396 = vmul.f32 %v1236, %v1388
      %v1397 = vmul.f32 %v1241, %v1389
      %v1398 = vmul.f32 %v1244, %v1390
      %v1399 = vmul.f32 %v1249, %v1391
      %v1400 = vmul.f32 %v1252, %v1392
      %1401 = vst.msk [vmem:[#allocation2] sm:$0xff] %vm485, %v1393
      %1402 = vst.msk [vmem:[#allocation2 + $0x8] sm:$0xff] %vm485, %v1394
      %1403 = vst.msk [vmem:[#allocation2 + $0x10] sm:$0xff] %vm485, %v1395
      %1404 = vst.msk [vmem:[#allocation2 + $0x18] sm:$0xff] %vm485, %v1396
      %1405 = vst.msk [vmem:[#allocation2 + $0x20] sm:$0xff] %vm485, %v1397
      %1406 = vst.msk [vmem:[#allocation2 + $0x28] sm:$0xff] %vm485, %v1398
      %1407 = vst.msk [vmem:[#allocation2 + $0x30] sm:$0xff] %vm485, %v1399
      %1408 = vst.msk [vmem:[#allocation2 + $0x38] sm:$0xff] %vm485, %v1400
      %s1409 = scalar_lea.vmem [#allocation3], 16
      %v1410 = vld [vmem:[%s1409] sm:$0xff]
      %v1411 = vld [vmem:[%s1409 + $0x8] sm:$0xff]
      %v1412 = vpack.c.bf16 %v1411, %v1410
      %1417 = vrot.lane.b32.xlu0 %v888, 120
      %v1418 = vpop.permute.xlu0 %1417
      %1419 = vrot.lane.b32.xlu0 %v889, 120
      %v1420 = vpop.permute.xlu0 %1419
      %1421 = vrot.lane.b32.xlu0 %v890, 120
      %v1422 = vpop.permute.xlu0 %1421
      %1423 = vrot.lane.b32.xlu0 %v891, 120
      %v1424 = vpop.permute.xlu0 %1423
      %1425 = vrot.lane.b32.xlu0 %v932, 88
      %v1426 = vpop.permute.xlu0 %1425
      %1427 = vrot.lane.b32.xlu0 %v933, 88
      %v1428 = vpop.permute.xlu0 %1427
      %1429 = vrot.lane.b32.xlu0 %v934, 88
      %v1430 = vpop.permute.xlu0 %1429
      %1431 = vrot.lane.b32.xlu0 %v935, 88
      %v1432 = vpop.permute.xlu0 %1431
      %v1434 = vsel %vm991, %v1418, 0
      %v1437 = vsel %vm991, %v1420, 0
      %v1440 = vsel %vm991, %v1422, 0
      %v1443 = vsel %vm991, %v1424, 0
      %v1446 = vsel %vm991, %v1426, 0
      %v1449 = vsel %vm991, %v1428, 0
      %v1452 = vsel %vm991, %v1430, 0
      %v1455 = vsel %vm991, %v1432, 0
      %1457 = vmatprep.subr.bf16.mxu0 0
      %1458 = vmatpush1.bf16.xpose.msra.mxu0 0
      %1459 = vmatprep.subr.bf16.mxu0 0
      %1460 = vmatpush1.bf16.xpose.msra.mxu0 0
      %1461 = vmatprep.subr.bf16.mxu0 0
      %1462 = vmatpush1.bf16.xpose.msra.mxu0 0
      %1463 = vmatprep.subr.bf16.mxu0 0
      %1464 = vmatpush1.bf16.xpose.msra.mxu0 0
      %1465 = vmatprep.subr.bf16.mxu0 0
      %1466 = vmatpush1.bf16.xpose.msra.mxu0 %v1455
      %1467 = vmatprep.subr.bf16.mxu0 0
      %1468 = vmatpush1.bf16.xpose.msra.mxu0 %v1452
      %1469 = vmatprep.subr.bf16.mxu0 0
      %1470 = vmatpush1.bf16.xpose.msra.mxu0 %v1449
      %1471 = vmatprep.subr.bf16.mxu0 0
      %1472 = vmatpush1.bf16.xpose.msra.mxu0 %v1446
      %1473 = vmatprep.subr.bf16.mxu0 0
      %1474 = vmatpush2.bf16.xpose.msra.mxu0 0
      %1475 = vmatprep.subr.bf16.mxu0 0
      %1476 = vmatpush2.bf16.xpose.msra.mxu0 0
      %1477 = vmatprep.subr.bf16.mxu0 0
      %1478 = vmatpush2.bf16.xpose.msra.mxu0 0
      %1479 = vmatprep.subr.bf16.mxu0 0
      %1480 = vmatpush2.bf16.xpose.msra.mxu0 0
      %1481 = vmatprep.subr.bf16.mxu0 0
      %1482 = vmatpush2.bf16.xpose.msra.mxu0 0
      %1483 = vmatprep.subr.bf16.mxu0 0
      %1484 = vmatpush2.bf16.xpose.msra.mxu0 0
      %1485 = vmatprep.subr.bf16.mxu0 0
      %1486 = vmatpush2.bf16.xpose.msra.mxu0 0
      %1487 = vmatprep.subr.bf16.mxu0 0
      %1488 = vmatpush2.bf16.xpose.msra.mxu0 0
      %1489 = vmatprep.mubr.bf16.mxu0 0
      %1490 = vmatmul.mubr.bf16.gmra.mxu0 %v1434
      %v1491 = vpop.f32.mrf.mxu0
      %v1492 = vadd.f32 0.0, %v1491
      %v1493 = vpop.f32.mrf.mxu0
      %v1494 = vpop.f32.mrf.mxu0
      %v1495 = vadd.f32 0.0, %v1494
      %v1496 = vpop.f32.mrf.mxu0
      %1497 = vmatprep.mubr.bf16.mxu0 0
      %1498 = vmatmul.mubr.bf16.gmra.mxu0 %v1437
      %v1499 = vpop.f32.mrf.mxu0
      %v1500 = vadd.f32 0.0, %v1499
      %v1501 = vpop.f32.mrf.mxu0
      %v1502 = vpop.f32.mrf.mxu0
      %v1503 = vadd.f32 0.0, %v1502
      %v1504 = vpop.f32.mrf.mxu0
      %1505 = vmatprep.mubr.bf16.mxu0 0
      %1506 = vmatmul.mubr.bf16.gmra.mxu0 %v1440
      %v1507 = vpop.f32.mrf.mxu0
      %v1508 = vadd.f32 0.0, %v1507
      %v1509 = vpop.f32.mrf.mxu0
      %v1510 = vpop.f32.mrf.mxu0
      %v1511 = vadd.f32 0.0, %v1510
      %v1512 = vpop.f32.mrf.mxu0
      %1513 = vmatprep.mubr.bf16.mxu0 0
      %1514 = vmatmul.mubr.bf16.gmra.mxu0 %v1443
      %v1515 = vpop.f32.mrf.mxu0
      %v1516 = vadd.f32 0.0, %v1515
      %v1517 = vpop.f32.mrf.mxu0
      %v1518 = vpop.f32.mrf.mxu0
      %v1519 = vadd.f32 0.0, %v1518
      %v1520 = vpop.f32.mrf.mxu0
      %1521 = vdwg.mxu0
      %v1522 = vsel %vm968, %v1492, 0.0
      %v1523 = vsel %vm969, %v1495, 0.0
      %v1524 = vsel %vm970, %v1500, 0.0
      %v1525 = vsel %vm971, %v1503, 0.0
      %v1526 = vsel %vm972, %v1508, 0.0
      %v1527 = vsel %vm973, %v1511, 0.0
      %v1528 = vsel %vm974, %v1516, 0.0
      %v1529 = vsel %vm975, %v1519, 0.0
      %v1530 = vpack.c.bf16 %v1523, %v1522
      %v1531 = vpack.c.bf16 %v1525, %v1524
      %v1532 = vpack.c.bf16 %v1527, %v1526
      %v1533 = vpack.c.bf16 %v1529, %v1528
      %1534 = vrot.lane.b32.xlu0 %v956, 48
      %v1535 = vpop.permute.xlu0 %1534
      %1536 = vrot.lane.b32.xlu0 %v957, 48
      %v1537 = vpop.permute.xlu0 %1536
      %1538 = vrot.lane.b32.xlu0 %v958, 48
      %v1539 = vpop.permute.xlu0 %1538
      %1540 = vrot.lane.b32.xlu0 %v959, 48
      %v1541 = vpop.permute.xlu0 %1540
      %v1547 = vsel %vm1109, %v1530, 0
      %v1550 = vsel %vm1109, %v1531, 0
      %v1553 = vsel %vm1109, %v1532, 0
      %v1556 = vsel %vm1109, %v1533, 0
      %1558 = vmatprep.subr.bf16.mxu0 0
      %1559 = vmatpush1.bf16.msra.mxu0 0
      %1560 = vmatprep.subr.bf16.mxu0 0
      %1561 = vmatpush1.bf16.msra.mxu0 0
      %1562 = vmatprep.subr.bf16.mxu0 0
      %1563 = vmatpush1.bf16.msra.mxu0 0
      %1564 = vmatprep.subr.bf16.mxu0 0
      %1565 = vmatpush1.bf16.msra.mxu0 0
      %1566 = vmatprep.subr.bf16.mxu0 0
      %1567 = vmatpush1.bf16.msra.mxu0 %v1541
      %1568 = vmatprep.subr.bf16.mxu0 0
      %1569 = vmatpush1.bf16.msra.mxu0 %v1539
      %1570 = vmatprep.subr.bf16.mxu0 0
      %1571 = vmatpush1.bf16.msra.mxu0 %v1537
      %1572 = vmatprep.subr.bf16.mxu0 0
      %1573 = vmatpush1.bf16.msra.mxu0 %v1535
      %1574 = vmatprep.subr.bf16.mxu0 0
      %1575 = vmatpush2.bf16.msra.mxu0 0
      %1576 = vmatprep.subr.bf16.mxu0 0
      %1577 = vmatpush2.bf16.msra.mxu0 0
      %1578 = vmatprep.subr.bf16.mxu0 0
      %1579 = vmatpush2.bf16.msra.mxu0 0
      %1580 = vmatprep.subr.bf16.mxu0 0
      %1581 = vmatpush2.bf16.msra.mxu0 0
      %1582 = vmatprep.subr.bf16.mxu0 0
      %1583 = vmatpush2.bf16.msra.mxu0 0
      %1584 = vmatprep.subr.bf16.mxu0 0
      %1585 = vmatpush2.bf16.msra.mxu0 0
      %1586 = vmatprep.subr.bf16.mxu0 0
      %1587 = vmatpush2.bf16.msra.mxu0 0
      %1588 = vmatprep.subr.bf16.mxu0 0
      %1589 = vmatpush2.bf16.msra.mxu0 0
      %1590 = vmatprep.mubr.bf16.mxu0 0
      %1591 = vmatmul.mubr.bf16.gmra.mxu0 %v1547
      %v1592 = vpop.f32.mrf.mxu0
      %v1593 = vadd.f32 0.0, %v1592
      %v1594 = vpop.f32.mrf.mxu0
      %v1595 = vpop.f32.mrf.mxu0
      %v1596 = vadd.f32 0.0, %v1595
      %v1597 = vpop.f32.mrf.mxu0
      %1598 = vmatprep.mubr.bf16.mxu0 0
      %1599 = vmatmul.mubr.bf16.gmra.mxu0 %v1550
      %v1600 = vpop.f32.mrf.mxu0
      %v1601 = vadd.f32 0.0, %v1600
      %v1602 = vpop.f32.mrf.mxu0
      %v1603 = vpop.f32.mrf.mxu0
      %v1604 = vadd.f32 0.0, %v1603
      %v1605 = vpop.f32.mrf.mxu0
      %1606 = vmatprep.mubr.bf16.mxu0 0
      %1607 = vmatmul.mubr.bf16.gmra.mxu0 %v1553
      %v1608 = vpop.f32.mrf.mxu0
      %v1609 = vadd.f32 0.0, %v1608
      %v1610 = vpop.f32.mrf.mxu0
      %v1611 = vpop.f32.mrf.mxu0
      %v1612 = vadd.f32 0.0, %v1611
      %v1613 = vpop.f32.mrf.mxu0
      %1614 = vmatprep.mubr.bf16.mxu0 0
      %1615 = vmatmul.mubr.bf16.gmra.mxu0 %v1556
      %v1616 = vpop.f32.mrf.mxu0
      %v1617 = vadd.f32 0.0, %v1616
      %v1618 = vpop.f32.mrf.mxu0
      %v1619 = vpop.f32.mrf.mxu0
      %v1620 = vadd.f32 0.0, %v1619
      %v1621 = vpop.f32.mrf.mxu0
      %1622 = vdwg.mxu0
      %v1624 = vsel %vm991, %v1412, 0
      %1626 = vmatprep.subr.bf16.mxu0 0
      %1627 = vmatpush1.bf16.xpose.msra.mxu0 0
      %1628 = vmatprep.subr.bf16.mxu0 0
      %1629 = vmatpush1.bf16.xpose.msra.mxu0 0
      %1630 = vmatprep.subr.bf16.mxu0 0
      %1631 = vmatpush1.bf16.xpose.msra.mxu0 0
      %1632 = vmatprep.subr.bf16.mxu0 0
      %1633 = vmatpush1.bf16.xpose.msra.mxu0 0
      %1634 = vmatprep.subr.bf16.mxu0 0
      %1635 = vmatpush1.bf16.xpose.msra.mxu0 0
      %1636 = vmatprep.subr.bf16.mxu0 0
      %1637 = vmatpush1.bf16.xpose.msra.mxu0 0
      %1638 = vmatprep.subr.bf16.mxu0 0
      %1639 = vmatpush1.bf16.xpose.msra.mxu0 0
      %1640 = vmatprep.subr.bf16.mxu0 0
      %1641 = vmatpush1.bf16.xpose.msra.mxu0 %v1624
      %1642 = vmatprep.subr.bf16.mxu0 0
      %1643 = vmatpush2.bf16.xpose.msra.mxu0 0
      %1644 = vmatprep.subr.bf16.mxu0 0
      %1645 = vmatpush2.bf16.xpose.msra.mxu0 0
      %1646 = vmatprep.subr.bf16.mxu0 0
      %1647 = vmatpush2.bf16.xpose.msra.mxu0 0
      %1648 = vmatprep.subr.bf16.mxu0 0
      %1649 = vmatpush2.bf16.xpose.msra.mxu0 0
      %1650 = vmatprep.subr.bf16.mxu0 0
      %1651 = vmatpush2.bf16.xpose.msra.mxu0 0
      %1652 = vmatprep.subr.bf16.mxu0 0
      %1653 = vmatpush2.bf16.xpose.msra.mxu0 0
      %1654 = vmatprep.subr.bf16.mxu0 0
      %1655 = vmatpush2.bf16.xpose.msra.mxu0 0
      %1656 = vmatprep.subr.bf16.mxu0 0
      %1657 = vmatpush2.bf16.xpose.msra.mxu0 0
      %1658 = vmatprep.mubr.bf16.mxu0 0
      %1659 = vmatmul.mubr.bf16.gmra.mxu0 %v1434
      %v1660 = vpop.f32.mrf.mxu0
      %v1661 = vadd.f32 %v1593, %v1660
      %v1662 = vpop.f32.mrf.mxu0
      %v1663 = vpop.f32.mrf.mxu0
      %v1664 = vadd.f32 %v1596, %v1663
      %v1665 = vpop.f32.mrf.mxu0
      %1666 = vmatprep.mubr.bf16.mxu0 0
      %1667 = vmatmul.mubr.bf16.gmra.mxu0 %v1437
      %v1668 = vpop.f32.mrf.mxu0
      %v1669 = vadd.f32 %v1601, %v1668
      %v1670 = vpop.f32.mrf.mxu0
      %v1671 = vpop.f32.mrf.mxu0
      %v1672 = vadd.f32 %v1604, %v1671
      %v1673 = vpop.f32.mrf.mxu0
      %1674 = vmatprep.mubr.bf16.mxu0 0
      %1675 = vmatmul.mubr.bf16.gmra.mxu0 %v1440
      %v1676 = vpop.f32.mrf.mxu0
      %v1677 = vadd.f32 %v1609, %v1676
      %v1678 = vpop.f32.mrf.mxu0
      %v1679 = vpop.f32.mrf.mxu0
      %v1680 = vadd.f32 %v1612, %v1679
      %v1681 = vpop.f32.mrf.mxu0
      %1682 = vmatprep.mubr.bf16.mxu0 0
      %1683 = vmatmul.mubr.bf16.gmra.mxu0 %v1443
      %v1684 = vpop.f32.mrf.mxu0
      %v1685 = vadd.f32 %v1617, %v1684
      %v1686 = vpop.f32.mrf.mxu0
      %v1687 = vpop.f32.mrf.mxu0
      %v1688 = vadd.f32 %v1620, %v1687
      %v1689 = vpop.f32.mrf.mxu0
      %1690 = vdwg.mxu0
      %1691 = vrot.lane.b32.xlu0 %v939, 120
      %v1692 = vpop.permute.xlu0 %1691
      %v1694 = vmul.f32 %v1410, %v1692
      %v1695 = vmul.f32 %v1411, %v1692
      %1696 = vxpose.xlu0.c.b16.start [1/8] %v1535, 128
      %1697 = vxpose.xlu0.c.b16.cont [2/8] %v1537, 128
      %1698 = vxpose.xlu0.c.b16.cont [3/8] %v1539, 128
      %1699 = vxpose.xlu0.c.b16.cont [4/8] %v1541, 128
      %1700 = vxpose.xlu0.c.b16.cont [5/8] 0, 128
      %1701 = vxpose.xlu0.c.b16.cont [6/8] 0, 128
      %1702 = vxpose.xlu0.c.b16.cont [7/8] 0, 128
      %1703 = vxpose.xlu0.c.b16.end [8/8] 0, 128
      %v1704 = vpop.trf.xlu0
      %v1705 = vpop.trf.xlu0
      %v1706 = vpop.trf.xlu0
      %v1707 = vpop.trf.xlu0
      %v1708 = vpop.trf.xlu0
      %v1709 = vpop.trf.xlu0
      %v1710 = vpop.trf.xlu0
      %v1711 = vpop.trf.xlu0
      %1712 = vrot.lane.b32.xlu0 %v952, 88
      %v1713 = vpop.permute.xlu0 %1712
      %1714 = vrot.lane.b32.xlu0 %v953, 88
      %v1715 = vpop.permute.xlu0 %1714
      %1716 = vrot.lane.b32.xlu0 %v954, 88
      %v1717 = vpop.permute.xlu0 %1716
      %1718 = vrot.lane.b32.xlu0 %v955, 88
      %v1719 = vpop.permute.xlu0 %1718
      %v1725 = vsel %vm1109, %v1704, 0
      %1727 = vmatprep.subr.bf16.mxu0 0
      %1728 = vmatpush1.bf16.msra.mxu0 0
      %1729 = vmatprep.subr.bf16.mxu0 0
      %1730 = vmatpush1.bf16.msra.mxu0 0
      %1731 = vmatprep.subr.bf16.mxu0 0
      %1732 = vmatpush1.bf16.msra.mxu0 0
      %1733 = vmatprep.subr.bf16.mxu0 0
      %1734 = vmatpush1.bf16.msra.mxu0 0
      %1735 = vmatprep.subr.bf16.mxu0 0
      %1736 = vmatpush1.bf16.msra.mxu0 %v1719
      %1737 = vmatprep.subr.bf16.mxu0 0
      %1738 = vmatpush1.bf16.msra.mxu0 %v1717
      %1739 = vmatprep.subr.bf16.mxu0 0
      %1740 = vmatpush1.bf16.msra.mxu0 %v1715
      %1741 = vmatprep.subr.bf16.mxu0 0
      %1742 = vmatpush1.bf16.msra.mxu0 %v1713
      %1743 = vmatprep.subr.bf16.mxu0 0
      %1744 = vmatpush2.bf16.msra.mxu0 0
      %1745 = vmatprep.subr.bf16.mxu0 0
      %1746 = vmatpush2.bf16.msra.mxu0 0
      %1747 = vmatprep.subr.bf16.mxu0 0
      %1748 = vmatpush2.bf16.msra.mxu0 0
      %1749 = vmatprep.subr.bf16.mxu0 0
      %1750 = vmatpush2.bf16.msra.mxu0 0
      %1751 = vmatprep.subr.bf16.mxu0 0
      %1752 = vmatpush2.bf16.msra.mxu0 0
      %1753 = vmatprep.subr.bf16.mxu0 0
      %1754 = vmatpush2.bf16.msra.mxu0 0
      %1755 = vmatprep.subr.bf16.mxu0 0
      %1756 = vmatpush2.bf16.msra.mxu0 0
      %1757 = vmatprep.subr.bf16.mxu0 0
      %1758 = vmatpush2.bf16.msra.mxu0 0
      %1759 = vmatprep.mubr.bf16.mxu0 0
      %1760 = vmatmul.mubr.bf16.gmra.mxu0 %v1725
      %v1761 = vpop.f32.mrf.mxu0
      %v1762 = vadd.f32 0.0, %v1761
      %v1763 = vpop.f32.mrf.mxu0
      %v1764 = vpop.f32.mrf.mxu0
      %v1765 = vadd.f32 0.0, %v1764
      %v1766 = vpop.f32.mrf.mxu0
      %1767 = vdwg.mxu0
      %v1768 = vadd.f32 %v1694, %v1762
      %v1769 = vadd.f32 %v1695, %v1765
      %1770 = vst.msk [vmem:[%s1409] sm:$0xff] %vm991, %v1768
      %1771 = vst.msk [vmem:[%s1409 + $0x8] sm:$0xff] %vm991, %v1769
      %v1772 = vmul.f32 %v1661, %v1661
      %v1773 = vmul.f32 %v1664, %v1664
      %v1774 = vmul.f32 %v1669, %v1669
      %v1775 = vmul.f32 %v1672, %v1672
      %v1776 = vmul.f32 %v1677, %v1677
      %v1777 = vmul.f32 %v1680, %v1680
      %v1778 = vmul.f32 %v1685, %v1685
      %v1779 = vmul.f32 %v1688, %v1688
      %v1780 = vsel %vm485, %v1772, 0.0
      %1781 = vadd.xlane.f32.xlu0 %v1780
      %v1782 = vpop.xlane.xlu0 %1781
      %v1783 = vsel %vm485, %v1773, 0.0
      %1784 = vadd.xlane.f32.xlu0 %v1783
      %v1785 = vpop.xlane.xlu0 %1784
      %v1786 = vsel %vm485, %v1774, 0.0
      %1787 = vadd.xlane.f32.xlu0 %v1786
      %v1788 = vpop.xlane.xlu0 %1787
      %v1789 = vsel %vm485, %v1775, 0.0
      %1790 = vadd.xlane.f32.xlu0 %v1789
      %v1791 = vpop.xlane.xlu0 %1790
      %v1792 = vsel %vm485, %v1776, 0.0
      %1793 = vadd.xlane.f32.xlu0 %v1792
      %v1794 = vpop.xlane.xlu0 %1793
      %v1795 = vsel %vm485, %v1777, 0.0
      %1796 = vadd.xlane.f32.xlu0 %v1795
      %v1797 = vpop.xlane.xlu0 %1796
      %v1798 = vsel %vm485, %v1778, 0.0
      %1799 = vadd.xlane.f32.xlu0 %v1798
      %v1800 = vpop.xlane.xlu0 %1799
      %v1801 = vsel %vm485, %v1779, 0.0
      %1802 = vadd.xlane.f32.xlu0 %v1801
      %v1803 = vpop.xlane.xlu0 %1802
      %v1804 = vmul.f32 %v1782, %v635
      %v1805 = vmul.f32 %v1785, %v635
      %v1806 = vmul.f32 %v1788, %v635
      %v1807 = vmul.f32 %v1791, %v635
      %v1808 = vmul.f32 %v1794, %v635
      %v1809 = vmul.f32 %v1797, %v635
      %v1810 = vmul.f32 %v1800, %v635
      %v1811 = vmul.f32 %v1803, %v635
      %v1812 = vadd.f32 %v1804, 1e-05
      %v1813 = vadd.f32 %v1805, 1e-05
      %v1814 = vadd.f32 %v1806, 1e-05
      %v1815 = vadd.f32 %v1807, 1e-05
      %v1816 = vadd.f32 %v1808, 1e-05
      %v1817 = vadd.f32 %v1809, 1e-05
      %v1818 = vadd.f32 %v1810, 1e-05
      %v1819 = vadd.f32 %v1811, 1e-05
      %v1820 = vrsqrt.pop %v1812
      %v1821 = vrsqrt.pop %v1813
      %v1822 = vrsqrt.pop %v1814
      %v1823 = vrsqrt.pop %v1815
      %v1824 = vrsqrt.pop %v1816
      %v1825 = vrsqrt.pop %v1817
      %v1826 = vrsqrt.pop %v1818
      %v1827 = vrsqrt.pop %v1819
      %v1828 = vmul.f32 %v1661, %v1820
      %v1829 = vmul.f32 %v1664, %v1821
      %v1830 = vmul.f32 %v1669, %v1822
      %v1831 = vmul.f32 %v1672, %v1823
      %v1832 = vmul.f32 %v1677, %v1824
      %v1833 = vmul.f32 %v1680, %v1825
      %v1834 = vmul.f32 %v1685, %v1826
      %v1835 = vmul.f32 %v1688, %v1827
      %1844 = vrot.lane.b32.xlu0 %v1828, 16
      %v1845 = vpop.permute.xlu0 %1844
      %1846 = vrot.lane.b32.xlu0 %v1829, 16
      %v1847 = vpop.permute.xlu0 %1846
      %1848 = vrot.lane.b32.xlu0 %v1830, 16
      %v1849 = vpop.permute.xlu0 %1848
      %1850 = vrot.lane.b32.xlu0 %v1831, 16
      %v1851 = vpop.permute.xlu0 %1850
      %1852 = vrot.lane.b32.xlu0 %v1832, 16
      %v1853 = vpop.permute.xlu0 %1852
      %1854 = vrot.lane.b32.xlu0 %v1833, 16
      %v1855 = vpop.permute.xlu0 %1854
      %1856 = vrot.lane.b32.xlu0 %v1834, 16
      %v1857 = vpop.permute.xlu0 %1856
      %1858 = vrot.lane.b32.xlu0 %v1835, 16
      %v1859 = vpop.permute.xlu0 %1858
      %vm1868 = vcmask 261248
      %1869 = vst.msk [vmem:[#allocation2] sm:$0xff] %vm1868, %v1845
      %1870 = vst.msk [vmem:[#allocation2 + $0x8] sm:$0xff] %vm1868, %v1847
      %1871 = vst.msk [vmem:[#allocation2 + $0x10] sm:$0xff] %vm1868, %v1849
      %1872 = vst.msk [vmem:[#allocation2 + $0x18] sm:$0xff] %vm1868, %v1851
      %1873 = vst.msk [vmem:[#allocation2 + $0x20] sm:$0xff] %vm1868, %v1853
      %1874 = vst.msk [vmem:[#allocation2 + $0x28] sm:$0xff] %vm1868, %v1855
      %1875 = vst.msk [vmem:[#allocation2 + $0x30] sm:$0xff] %vm1868, %v1857
      %1876 = vst.msk [vmem:[#allocation2 + $0x38] sm:$0xff] %vm1868, %v1859
      %s1877 = scalar_lea.vmem [#allocation3], 32
      %v1878 = vld [vmem:[%s1877] sm:$0xff]
      %v1879 = vld [vmem:[%s1877 + $0x8] sm:$0xff]
      %v1880 = vpack.c.bf16 %v1879, %v1878
      %1881 = vrot.lane.b32.xlu0 %v888, 112
      %v1882 = vpop.permute.xlu0 %1881
      %1883 = vrot.lane.b32.xlu0 %v889, 112
      %v1884 = vpop.permute.xlu0 %1883
      %1885 = vrot.lane.b32.xlu0 %v890, 112
      %v1886 = vpop.permute.xlu0 %1885
      %1887 = vrot.lane.b32.xlu0 %v891, 112
      %v1888 = vpop.permute.xlu0 %1887
      %1889 = vrot.lane.b32.xlu0 %v932, 80
      %v1890 = vpop.permute.xlu0 %1889
      %1891 = vrot.lane.b32.xlu0 %v933, 80
      %v1892 = vpop.permute.xlu0 %1891
      %1893 = vrot.lane.b32.xlu0 %v934, 80
      %v1894 = vpop.permute.xlu0 %1893
      %1895 = vrot.lane.b32.xlu0 %v935, 80
      %v1896 = vpop.permute.xlu0 %1895
      %v1898 = vsel %vm991, %v1882, 0
      %v1901 = vsel %vm991, %v1884, 0
      %v1904 = vsel %vm991, %v1886, 0
      %v1907 = vsel %vm991, %v1888, 0
      %v1910 = vsel %vm991, %v1890, 0
      %v1913 = vsel %vm991, %v1892, 0
      %v1916 = vsel %vm991, %v1894, 0
      %v1919 = vsel %vm991, %v1896, 0
      %1921 = vmatprep.subr.bf16.mxu0 0
      %1922 = vmatpush1.bf16.xpose.msra.mxu0 0
      %1923 = vmatprep.subr.bf16.mxu0 0
      %1924 = vmatpush1.bf16.xpose.msra.mxu0 0
      %1925 = vmatprep.subr.bf16.mxu0 0
      %1926 = vmatpush1.bf16.xpose.msra.mxu0 0
      %1927 = vmatprep.subr.bf16.mxu0 0
      %1928 = vmatpush1.bf16.xpose.msra.mxu0 0
      %1929 = vmatprep.subr.bf16.mxu0 0
      %1930 = vmatpush1.bf16.xpose.msra.mxu0 %v1919
      %1931 = vmatprep.subr.bf16.mxu0 0
      %1932 = vmatpush1.bf16.xpose.msra.mxu0 %v1916
      %1933 = vmatprep.subr.bf16.mxu0 0
      %1934 = vmatpush1.bf16.xpose.msra.mxu0 %v1913
      %1935 = vmatprep.subr.bf16.mxu0 0
      %1936 = vmatpush1.bf16.xpose.msra.mxu0 %v1910
      %1937 = vmatprep.subr.bf16.mxu0 0
      %1938 = vmatpush2.bf16.xpose.msra.mxu0 0
      %1939 = vmatprep.subr.bf16.mxu0 0
      %1940 = vmatpush2.bf16.xpose.msra.mxu0 0
      %1941 = vmatprep.subr.bf16.mxu0 0
      %1942 = vmatpush2.bf16.xpose.msra.mxu0 0
      %1943 = vmatprep.subr.bf16.mxu0 0
      %1944 = vmatpush2.bf16.xpose.msra.mxu0 0
      %1945 = vmatprep.subr.bf16.mxu0 0
      %1946 = vmatpush2.bf16.xpose.msra.mxu0 0
      %1947 = vmatprep.subr.bf16.mxu0 0
      %1948 = vmatpush2.bf16.xpose.msra.mxu0 0
      %1949 = vmatprep.subr.bf16.mxu0 0
      %1950 = vmatpush2.bf16.xpose.msra.mxu0 0
      %1951 = vmatprep.subr.bf16.mxu0 0
      %1952 = vmatpush2.bf16.xpose.msra.mxu0 0
      %1953 = vmatprep.mubr.bf16.mxu0 0
      %1954 = vmatmul.mubr.bf16.gmra.mxu0 %v1898
      %v1955 = vpop.f32.mrf.mxu0
      %v1956 = vadd.f32 0.0, %v1955
      %v1957 = vpop.f32.mrf.mxu0
      %v1958 = vpop.f32.mrf.mxu0
      %v1959 = vadd.f32 0.0, %v1958
      %v1960 = vpop.f32.mrf.mxu0
      %1961 = vmatprep.mubr.bf16.mxu0 0
      %1962 = vmatmul.mubr.bf16.gmra.mxu0 %v1901
      %v1963 = vpop.f32.mrf.mxu0
      %v1964 = vadd.f32 0.0, %v1963
      %v1965 = vpop.f32.mrf.mxu0
      %v1966 = vpop.f32.mrf.mxu0
      %v1967 = vadd.f32 0.0, %v1966
      %v1968 = vpop.f32.mrf.mxu0
      %1969 = vmatprep.mubr.bf16.mxu0 0
      %1970 = vmatmul.mubr.bf16.gmra.mxu0 %v1904
      %v1971 = vpop.f32.mrf.mxu0
      %v1972 = vadd.f32 0.0, %v1971
      %v1973 = vpop.f32.mrf.mxu0
      %v1974 = vpop.f32.mrf.mxu0
      %v1975 = vadd.f32 0.0, %v1974
      %v1976 = vpop.f32.mrf.mxu0
      %1977 = vmatprep.mubr.bf16.mxu0 0
      %1978 = vmatmul.mubr.bf16.gmra.mxu0 %v1907
      %v1979 = vpop.f32.mrf.mxu0
      %v1980 = vadd.f32 0.0, %v1979
      %v1981 = vpop.f32.mrf.mxu0
      %v1982 = vpop.f32.mrf.mxu0
      %v1983 = vadd.f32 0.0, %v1982
      %v1984 = vpop.f32.mrf.mxu0
      %1985 = vdwg.mxu0
      %v1986 = vsel %vm968, %v1956, 0.0
      %v1987 = vsel %vm969, %v1959, 0.0
      %v1988 = vsel %vm970, %v1964, 0.0
      %v1989 = vsel %vm971, %v1967, 0.0
      %v1990 = vsel %vm972, %v1972, 0.0
      %v1991 = vsel %vm973, %v1975, 0.0
      %v1992 = vsel %vm974, %v1980, 0.0
      %v1993 = vsel %vm975, %v1983, 0.0
      %v1994 = vpack.c.bf16 %v1987, %v1986
      %v1995 = vpack.c.bf16 %v1989, %v1988
      %v1996 = vpack.c.bf16 %v1991, %v1990
      %v1997 = vpack.c.bf16 %v1993, %v1992
      %1998 = vrot.lane.b32.xlu0 %v956, 32
      %v1999 = vpop.permute.xlu0 %1998
      %2000 = vrot.lane.b32.xlu0 %v957, 32
      %v2001 = vpop.permute.xlu0 %2000
      %2002 = vrot.lane.b32.xlu0 %v958, 32
      %v2003 = vpop.permute.xlu0 %2002
      %2004 = vrot.lane.b32.xlu0 %v959, 32
      %v2005 = vpop.permute.xlu0 %2004
      %v2011 = vsel %vm1109, %v1994, 0
      %v2014 = vsel %vm1109, %v1995, 0
      %v2017 = vsel %vm1109, %v1996, 0
      %v2020 = vsel %vm1109, %v1997, 0
      %2022 = vmatprep.subr.bf16.mxu0 0
      %2023 = vmatpush1.bf16.msra.mxu0 0
      %2024 = vmatprep.subr.bf16.mxu0 0
      %2025 = vmatpush1.bf16.msra.mxu0 0
      %2026 = vmatprep.subr.bf16.mxu0 0
      %2027 = vmatpush1.bf16.msra.mxu0 0
      %2028 = vmatprep.subr.bf16.mxu0 0
      %2029 = vmatpush1.bf16.msra.mxu0 0
      %2030 = vmatprep.subr.bf16.mxu0 0
      %2031 = vmatpush1.bf16.msra.mxu0 %v2005
      %2032 = vmatprep.subr.bf16.mxu0 0
      %2033 = vmatpush1.bf16.msra.mxu0 %v2003
      %2034 = vmatprep.subr.bf16.mxu0 0
      %2035 = vmatpush1.bf16.msra.mxu0 %v2001
      %2036 = vmatprep.subr.bf16.mxu0 0
      %2037 = vmatpush1.bf16.msra.mxu0 %v1999
      %2038 = vmatprep.subr.bf16.mxu0 0
      %2039 = vmatpush2.bf16.msra.mxu0 0
      %2040 = vmatprep.subr.bf16.mxu0 0
      %2041 = vmatpush2.bf16.msra.mxu0 0
      %2042 = vmatprep.subr.bf16.mxu0 0
      %2043 = vmatpush2.bf16.msra.mxu0 0
      %2044 = vmatprep.subr.bf16.mxu0 0
      %2045 = vmatpush2.bf16.msra.mxu0 0
      %2046 = vmatprep.subr.bf16.mxu0 0
      %2047 = vmatpush2.bf16.msra.mxu0 0
      %2048 = vmatprep.subr.bf16.mxu0 0
      %2049 = vmatpush2.bf16.msra.mxu0 0
      %2050 = vmatprep.subr.bf16.mxu0 0
      %2051 = vmatpush2.bf16.msra.mxu0 0
      %2052 = vmatprep.subr.bf16.mxu0 0
      %2053 = vmatpush2.bf16.msra.mxu0 0
      %2054 = vmatprep.mubr.bf16.mxu0 0
      %2055 = vmatmul.mubr.bf16.gmra.mxu0 %v2011
      %v2056 = vpop.f32.mrf.mxu0
      %v2057 = vadd.f32 0.0, %v2056
      %v2058 = vpop.f32.mrf.mxu0
      %v2059 = vpop.f32.mrf.mxu0
      %v2060 = vadd.f32 0.0, %v2059
      %v2061 = vpop.f32.mrf.mxu0
      %2062 = vmatprep.mubr.bf16.mxu0 0
      %2063 = vmatmul.mubr.bf16.gmra.mxu0 %v2014
      %v2064 = vpop.f32.mrf.mxu0
      %v2065 = vadd.f32 0.0, %v2064
      %v2066 = vpop.f32.mrf.mxu0
      %v2067 = vpop.f32.mrf.mxu0
      %v2068 = vadd.f32 0.0, %v2067
      %v2069 = vpop.f32.mrf.mxu0
      %2070 = vmatprep.mubr.bf16.mxu0 0
      %2071 = vmatmul.mubr.bf16.gmra.mxu0 %v2017
      %v2072 = vpop.f32.mrf.mxu0
      %v2073 = vadd.f32 0.0, %v2072
      %v2074 = vpop.f32.mrf.mxu0
      %v2075 = vpop.f32.mrf.mxu0
      %v2076 = vadd.f32 0.0, %v2075
      %v2077 = vpop.f32.mrf.mxu0
      %2078 = vmatprep.mubr.bf16.mxu0 0
      %2079 = vmatmul.mubr.bf16.gmra.mxu0 %v2020
      %v2080 = vpop.f32.mrf.mxu0
      %v2081 = vadd.f32 0.0, %v2080
      %v2082 = vpop.f32.mrf.mxu0
      %v2083 = vpop.f32.mrf.mxu0
      %v2084 = vadd.f32 0.0, %v2083
      %v2085 = vpop.f32.mrf.mxu0
      %2086 = vdwg.mxu0
      %v2088 = vsel %vm991, %v1880, 0
      %2090 = vmatprep.subr.bf16.mxu0 0
      %2091 = vmatpush1.bf16.xpose.msra.mxu0 0
      %2092 = vmatprep.subr.bf16.mxu0 0
      %2093 = vmatpush1.bf16.xpose.msra.mxu0 0
      %2094 = vmatprep.subr.bf16.mxu0 0
      %2095 = vmatpush1.bf16.xpose.msra.mxu0 0
      %2096 = vmatprep.subr.bf16.mxu0 0
      %2097 = vmatpush1.bf16.xpose.msra.mxu0 0
      %2098 = vmatprep.subr.bf16.mxu0 0
      %2099 = vmatpush1.bf16.xpose.msra.mxu0 0
      %2100 = vmatprep.subr.bf16.mxu0 0
      %2101 = vmatpush1.bf16.xpose.msra.mxu0 0
      %2102 = vmatprep.subr.bf16.mxu0 0
      %2103 = vmatpush1.bf16.xpose.msra.mxu0 0
      %2104 = vmatprep.subr.bf16.mxu0 0
      %2105 = vmatpush1.bf16.xpose.msra.mxu0 %v2088
      %2106 = vmatprep.subr.bf16.mxu0 0
      %2107 = vmatpush2.bf16.xpose.msra.mxu0 0
      %2108 = vmatprep.subr.bf16.mxu0 0
      %2109 = vmatpush2.bf16.xpose.msra.mxu0 0
      %2110 = vmatprep.subr.bf16.mxu0 0
      %2111 = vmatpush2.bf16.xpose.msra.mxu0 0
      %2112 = vmatprep.subr.bf16.mxu0 0
      %2113 = vmatpush2.bf16.xpose.msra.mxu0 0
      %2114 = vmatprep.subr.bf16.mxu0 0
      %2115 = vmatpush2.bf16.xpose.msra.mxu0 0
      %2116 = vmatprep.subr.bf16.mxu0 0
      %2117 = vmatpush2.bf16.xpose.msra.mxu0 0
      %2118 = vmatprep.subr.bf16.mxu0 0
      %2119 = vmatpush2.bf16.xpose.msra.mxu0 0
      %2120 = vmatprep.subr.bf16.mxu0 0
      %2121 = vmatpush2.bf16.xpose.msra.mxu0 0
      %2122 = vmatprep.mubr.bf16.mxu0 0
      %2123 = vmatmul.mubr.bf16.gmra.mxu0 %v1898
      %v2124 = vpop.f32.mrf.mxu0
      %v2125 = vadd.f32 %v2057, %v2124
      %v2126 = vpop.f32.mrf.mxu0
      %v2127 = vpop.f32.mrf.mxu0
      %v2128 = vadd.f32 %v2060, %v2127
      %v2129 = vpop.f32.mrf.mxu0
      %2130 = vmatprep.mubr.bf16.mxu0 0
      %2131 = vmatmul.mubr.bf16.gmra.mxu0 %v1901
      %v2132 = vpop.f32.mrf.mxu0
      %v2133 = vadd.f32 %v2065, %v2132
      %v2134 = vpop.f32.mrf.mxu0
      %v2135 = vpop.f32.mrf.mxu0
      %v2136 = vadd.f32 %v2068, %v2135
      %v2137 = vpop.f32.mrf.mxu0
      %2138 = vmatprep.mubr.bf16.mxu0 0
      %2139 = vmatmul.mubr.bf16.gmra.mxu0 %v1904
      %v2140 = vpop.f32.mrf.mxu0
      %v2141 = vadd.f32 %v2073, %v2140
      %v2142 = vpop.f32.mrf.mxu0
      %v2143 = vpop.f32.mrf.mxu0
      %v2144 = vadd.f32 %v2076, %v2143
      %v2145 = vpop.f32.mrf.mxu0
      %2146 = vmatprep.mubr.bf16.mxu0 0
      %2147 = vmatmul.mubr.bf16.gmra.mxu0 %v1907
      %v2148 = vpop.f32.mrf.mxu0
      %v2149 = vadd.f32 %v2081, %v2148
      %v2150 = vpop.f32.mrf.mxu0
      %v2151 = vpop.f32.mrf.mxu0
      %v2152 = vadd.f32 %v2084, %v2151
      %v2153 = vpop.f32.mrf.mxu0
      %2154 = vdwg.mxu0
      %2155 = vrot.lane.b32.xlu0 %v939, 112
      %v2156 = vpop.permute.xlu0 %2155
      %v2158 = vmul.f32 %v1878, %v2156
      %v2159 = vmul.f32 %v1879, %v2156
      %2160 = vxpose.xlu0.c.b16.start [1/8] %v1999, 128
      %2161 = vxpose.xlu0.c.b16.cont [2/8] %v2001, 128
      %2162 = vxpose.xlu0.c.b16.cont [3/8] %v2003, 128
      %2163 = vxpose.xlu0.c.b16.cont [4/8] %v2005, 128
      %2164 = vxpose.xlu0.c.b16.cont [5/8] 0, 128
      %2165 = vxpose.xlu0.c.b16.cont [6/8] 0, 128
      %2166 = vxpose.xlu0.c.b16.cont [7/8] 0, 128
      %2167 = vxpose.xlu0.c.b16.end [8/8] 0, 128
      %v2168 = vpop.trf.xlu0
      %v2169 = vpop.trf.xlu0
      %v2170 = vpop.trf.xlu0
      %v2171 = vpop.trf.xlu0
      %v2172 = vpop.trf.xlu0
      %v2173 = vpop.trf.xlu0
      %v2174 = vpop.trf.xlu0
      %v2175 = vpop.trf.xlu0
      %2176 = vrot.lane.b32.xlu0 %v952, 80
      %v2177 = vpop.permute.xlu0 %2176
      %2178 = vrot.lane.b32.xlu0 %v953, 80
      %v2179 = vpop.permute.xlu0 %2178
      %2180 = vrot.lane.b32.xlu0 %v954, 80
      %v2181 = vpop.permute.xlu0 %2180
      %2182 = vrot.lane.b32.xlu0 %v955, 80
      %v2183 = vpop.permute.xlu0 %2182
      %v2189 = vsel %vm1109, %v2168, 0
      %2191 = vmatprep.subr.bf16.mxu0 0
      %2192 = vmatpush1.bf16.msra.mxu0 0
      %2193 = vmatprep.subr.bf16.mxu0 0
      %2194 = vmatpush1.bf16.msra.mxu0 0
      %2195 = vmatprep.subr.bf16.mxu0 0
      %2196 = vmatpush1.bf16.msra.mxu0 0
      %2197 = vmatprep.subr.bf16.mxu0 0
      %2198 = vmatpush1.bf16.msra.mxu0 0
      %2199 = vmatprep.subr.bf16.mxu0 0
      %2200 = vmatpush1.bf16.msra.mxu0 %v2183
      %2201 = vmatprep.subr.bf16.mxu0 0
      %2202 = vmatpush1.bf16.msra.mxu0 %v2181
      %2203 = vmatprep.subr.bf16.mxu0 0
      %2204 = vmatpush1.bf16.msra.mxu0 %v2179
      %2205 = vmatprep.subr.bf16.mxu0 0
      %2206 = vmatpush1.bf16.msra.mxu0 %v2177
      %2207 = vmatprep.subr.bf16.mxu0 0
      %2208 = vmatpush2.bf16.msra.mxu0 0
      %2209 = vmatprep.subr.bf16.mxu0 0
      %2210 = vmatpush2.bf16.msra.mxu0 0
      %2211 = vmatprep.subr.bf16.mxu0 0
      %2212 = vmatpush2.bf16.msra.mxu0 0
      %2213 = vmatprep.subr.bf16.mxu0 0
      %2214 = vmatpush2.bf16.msra.mxu0 0
      %2215 = vmatprep.subr.bf16.mxu0 0
      %2216 = vmatpush2.bf16.msra.mxu0 0
      %2217 = vmatprep.subr.bf16.mxu0 0
      %2218 = vmatpush2.bf16.msra.mxu0 0
      %2219 = vmatprep.subr.bf16.mxu0 0
      %2220 = vmatpush2.bf16.msra.mxu0 0
      %2221 = vmatprep.subr.bf16.mxu0 0
      %2222 = vmatpush2.bf16.msra.mxu0 0
      %2223 = vmatprep.mubr.bf16.mxu0 0
      %2224 = vmatmul.mubr.bf16.gmra.mxu0 %v2189
      %v2225 = vpop.f32.mrf.mxu0
      %v2226 = vadd.f32 0.0, %v2225
      %v2227 = vpop.f32.mrf.mxu0
      %v2228 = vpop.f32.mrf.mxu0
      %v2229 = vadd.f32 0.0, %v2228
      %v2230 = vpop.f32.mrf.mxu0
      %2231 = vdwg.mxu0
      %v2232 = vadd.f32 %v2158, %v2226
      %v2233 = vadd.f32 %v2159, %v2229
      %2234 = vst.msk [vmem:[%s1877] sm:$0xff] %vm991, %v2232
      %2235 = vst.msk [vmem:[%s1877 + $0x8] sm:$0xff] %vm991, %v2233
      %v2236 = vmul.f32 %v2125, %v2125
      %v2237 = vmul.f32 %v2128, %v2128
      %v2238 = vmul.f32 %v2133, %v2133
      %v2239 = vmul.f32 %v2136, %v2136
      %v2240 = vmul.f32 %v2141, %v2141
      %v2241 = vmul.f32 %v2144, %v2144
      %v2242 = vmul.f32 %v2149, %v2149
      %v2243 = vmul.f32 %v2152, %v2152
      %v2244 = vsel %vm485, %v2236, 0.0
      %2245 = vadd.xlane.f32.xlu0 %v2244
      %v2246 = vpop.xlane.xlu0 %2245
      %v2247 = vsel %vm485, %v2237, 0.0
      %2248 = vadd.xlane.f32.xlu0 %v2247
      %v2249 = vpop.xlane.xlu0 %2248
      %v2250 = vsel %vm485, %v2238, 0.0
      %2251 = vadd.xlane.f32.xlu0 %v2250
      %v2252 = vpop.xlane.xlu0 %2251
      %v2253 = vsel %vm485, %v2239, 0.0
      %2254 = vadd.xlane.f32.xlu0 %v2253
      %v2255 = vpop.xlane.xlu0 %2254
      %v2256 = vsel %vm485, %v2240, 0.0
      %2257 = vadd.xlane.f32.xlu0 %v2256
      %v2258 = vpop.xlane.xlu0 %2257
      %v2259 = vsel %vm485, %v2241, 0.0
      %2260 = vadd.xlane.f32.xlu0 %v2259
      %v2261 = vpop.xlane.xlu0 %2260
      %v2262 = vsel %vm485, %v2242, 0.0
      %2263 = vadd.xlane.f32.xlu0 %v2262
      %v2264 = vpop.xlane.xlu0 %2263
      %v2265 = vsel %vm485, %v2243, 0.0
      %2266 = vadd.xlane.f32.xlu0 %v2265
      %v2267 = vpop.xlane.xlu0 %2266
      %v2268 = vmul.f32 %v2246, %v635
      %v2269 = vmul.f32 %v2249, %v635
      %v2270 = vmul.f32 %v2252, %v635
      %v2271 = vmul.f32 %v2255, %v635
      %v2272 = vmul.f32 %v2258, %v635
      %v2273 = vmul.f32 %v2261, %v635
      %v2274 = vmul.f32 %v2264, %v635
      %v2275 = vmul.f32 %v2267, %v635
      %v2276 = vadd.f32 %v2268, 1e-05
      %v2277 = vadd.f32 %v2269, 1e-05
      %v2278 = vadd.f32 %v2270, 1e-05
      %v2279 = vadd.f32 %v2271, 1e-05
      %v2280 = vadd.f32 %v2272, 1e-05
      %v2281 = vadd.f32 %v2273, 1e-05
      %v2282 = vadd.f32 %v2274, 1e-05
      %v2283 = vadd.f32 %v2275, 1e-05
      %v2284 = vrsqrt.pop %v2276
      %v2285 = vrsqrt.pop %v2277
      %v2286 = vrsqrt.pop %v2278
      %v2287 = vrsqrt.pop %v2279
      %v2288 = vrsqrt.pop %v2280
      %v2289 = vrsqrt.pop %v2281
      %v2290 = vrsqrt.pop %v2282
      %v2291 = vrsqrt.pop %v2283
      %v2292 = vmul.f32 %v2125, %v2284
      %v2293 = vmul.f32 %v2128, %v2285
      %v2294 = vmul.f32 %v2133, %v2286
      %v2295 = vmul.f32 %v2136, %v2287
      %v2296 = vmul.f32 %v2141, %v2288
      %v2297 = vmul.f32 %v2144, %v2289
      %v2298 = vmul.f32 %v2149, %v2290
      %v2299 = vmul.f32 %v2152, %v2291
      %2308 = vrot.lane.b32.xlu0 %v2292, 32
      %v2309 = vpop.permute.xlu0 %2308
      %2310 = vrot.lane.b32.xlu0 %v2293, 32
      %v2311 = vpop.permute.xlu0 %2310
      %2312 = vrot.lane.b32.xlu0 %v2294, 32
      %v2313 = vpop.permute.xlu0 %2312
      %2314 = vrot.lane.b32.xlu0 %v2295, 32
      %v2315 = vpop.permute.xlu0 %2314
      %2316 = vrot.lane.b32.xlu0 %v2296, 32
      %v2317 = vpop.permute.xlu0 %2316
      %2318 = vrot.lane.b32.xlu0 %v2297, 32
      %v2319 = vpop.permute.xlu0 %2318
      %2320 = vrot.lane.b32.xlu0 %v2298, 32
      %v2321 = vpop.permute.xlu0 %2320
      %2322 = vrot.lane.b32.xlu0 %v2299, 32
      %v2323 = vpop.permute.xlu0 %2322
      %vm2332 = vcmask 392448
      %2333 = vst.msk [vmem:[#allocation2] sm:$0xff] %vm2332, %v2309
      %2334 = vst.msk [vmem:[#allocation2 + $0x8] sm:$0xff] %vm2332, %v2311
      %2335 = vst.msk [vmem:[#allocation2 + $0x10] sm:$0xff] %vm2332, %v2313
      %2336 = vst.msk [vmem:[#allocation2 + $0x18] sm:$0xff] %vm2332, %v2315
      %2337 = vst.msk [vmem:[#allocation2 + $0x20] sm:$0xff] %vm2332, %v2317
      %2338 = vst.msk [vmem:[#allocation2 + $0x28] sm:$0xff] %vm2332, %v2319
      %2339 = vst.msk [vmem:[#allocation2 + $0x30] sm:$0xff] %vm2332, %v2321
      %2340 = vst.msk [vmem:[#allocation2 + $0x38] sm:$0xff] %vm2332, %v2323
      %s2341 = scalar_lea.vmem [#allocation3], 48
      %v2342 = vld [vmem:[%s2341] sm:$0xff]
      %v2343 = vld [vmem:[%s2341 + $0x8] sm:$0xff]
      %v2344 = vpack.c.bf16 %v2343, %v2342
      %2345 = vrot.lane.b32.xlu0 %v888, 104
      %v2346 = vpop.permute.xlu0 %2345
      %2347 = vrot.lane.b32.xlu0 %v889, 104
      %v2348 = vpop.permute.xlu0 %2347
      %2349 = vrot.lane.b32.xlu0 %v890, 104
      %v2350 = vpop.permute.xlu0 %2349
      %2351 = vrot.lane.b32.xlu0 %v891, 104
      %v2352 = vpop.permute.xlu0 %2351
      %2353 = vrot.lane.b32.xlu0 %v932, 72
      %v2354 = vpop.permute.xlu0 %2353
      %2355 = vrot.lane.b32.xlu0 %v933, 72
      %v2356 = vpop.permute.xlu0 %2355
      %2357 = vrot.lane.b32.xlu0 %v934, 72
      %v2358 = vpop.permute.xlu0 %2357
      %2359 = vrot.lane.b32.xlu0 %v935, 72
      %v2360 = vpop.permute.xlu0 %2359
      %v2362 = vsel %vm991, %v2346, 0
      %v2365 = vsel %vm991, %v2348, 0
      %v2368 = vsel %vm991, %v2350, 0
      %v2371 = vsel %vm991, %v2352, 0
      %v2374 = vsel %vm991, %v2354, 0
      %v2377 = vsel %vm991, %v2356, 0
      %v2380 = vsel %vm991, %v2358, 0
      %v2383 = vsel %vm991, %v2360, 0
      %2385 = vmatprep.subr.bf16.mxu0 0
      %2386 = vmatpush1.bf16.xpose.msra.mxu0 0
      %2387 = vmatprep.subr.bf16.mxu0 0
      %2388 = vmatpush1.bf16.xpose.msra.mxu0 0
      %2389 = vmatprep.subr.bf16.mxu0 0
      %2390 = vmatpush1.bf16.xpose.msra.mxu0 0
      %2391 = vmatprep.subr.bf16.mxu0 0
      %2392 = vmatpush1.bf16.xpose.msra.mxu0 0
      %2393 = vmatprep.subr.bf16.mxu0 0
      %2394 = vmatpush1.bf16.xpose.msra.mxu0 %v2383
      %2395 = vmatprep.subr.bf16.mxu0 0
      %2396 = vmatpush1.bf16.xpose.msra.mxu0 %v2380
      %2397 = vmatprep.subr.bf16.mxu0 0
      %2398 = vmatpush1.bf16.xpose.msra.mxu0 %v2377
      %2399 = vmatprep.subr.bf16.mxu0 0
      %2400 = vmatpush1.bf16.xpose.msra.mxu0 %v2374
      %2401 = vmatprep.subr.bf16.mxu0 0
      %2402 = vmatpush2.bf16.xpose.msra.mxu0 0
      %2403 = vmatprep.subr.bf16.mxu0 0
      %2404 = vmatpush2.bf16.xpose.msra.mxu0 0
      %2405 = vmatprep.subr.bf16.mxu0 0
      %2406 = vmatpush2.bf16.xpose.msra.mxu0 0
      %2407 = vmatprep.subr.bf16.mxu0 0
      %2408 = vmatpush2.bf16.xpose.msra.mxu0 0
      %2409 = vmatprep.subr.bf16.mxu0 0
      %2410 = vmatpush2.bf16.xpose.msra.mxu0 0
      %2411 = vmatprep.subr.bf16.mxu0 0
      %2412 = vmatpush2.bf16.xpose.msra.mxu0 0
      %2413 = vmatprep.subr.bf16.mxu0 0
      %2414 = vmatpush2.bf16.xpose.msra.mxu0 0
      %2415 = vmatprep.subr.bf16.mxu0 0
      %2416 = vmatpush2.bf16.xpose.msra.mxu0 0
      %2417 = vmatprep.mubr.bf16.mxu0 0
      %2418 = vmatmul.mubr.bf16.gmra.mxu0 %v2362
      %v2419 = vpop.f32.mrf.mxu0
      %v2420 = vadd.f32 0.0, %v2419
      %v2421 = vpop.f32.mrf.mxu0
      %v2422 = vpop.f32.mrf.mxu0
      %v2423 = vadd.f32 0.0, %v2422
      %v2424 = vpop.f32.mrf.mxu0
      %2425 = vmatprep.mubr.bf16.mxu0 0
      %2426 = vmatmul.mubr.bf16.gmra.mxu0 %v2365
      %v2427 = vpop.f32.mrf.mxu0
      %v2428 = vadd.f32 0.0, %v2427
      %v2429 = vpop.f32.mrf.mxu0
      %v2430 = vpop.f32.mrf.mxu0
      %v2431 = vadd.f32 0.0, %v2430
      %v2432 = vpop.f32.mrf.mxu0
      %2433 = vmatprep.mubr.bf16.mxu0 0
      %2434 = vmatmul.mubr.bf16.gmra.mxu0 %v2368
      %v2435 = vpop.f32.mrf.mxu0
      %v2436 = vadd.f32 0.0, %v2435
      %v2437 = vpop.f32.mrf.mxu0
      %v2438 = vpop.f32.mrf.mxu0
      %v2439 = vadd.f32 0.0, %v2438
      %v2440 = vpop.f32.mrf.mxu0
      %2441 = vmatprep.mubr.bf16.mxu0 0
      %2442 = vmatmul.mubr.bf16.gmra.mxu0 %v2371
      %v2443 = vpop.f32.mrf.mxu0
      %v2444 = vadd.f32 0.0, %v2443
      %v2445 = vpop.f32.mrf.mxu0
      %v2446 = vpop.f32.mrf.mxu0
      %v2447 = vadd.f32 0.0, %v2446
      %v2448 = vpop.f32.mrf.mxu0
      %2449 = vdwg.mxu0
      %v2450 = vsel %vm968, %v2420, 0.0
      %v2451 = vsel %vm969, %v2423, 0.0
      %v2452 = vsel %vm970, %v2428, 0.0
      %v2453 = vsel %vm971, %v2431, 0.0
      %v2454 = vsel %vm972, %v2436, 0.0
      %v2455 = vsel %vm973, %v2439, 0.0
      %v2456 = vsel %vm974, %v2444, 0.0
      %v2457 = vsel %vm975, %v2447, 0.0
      %v2458 = vpack.c.bf16 %v2451, %v2450
      %v2459 = vpack.c.bf16 %v2453, %v2452
      %v2460 = vpack.c.bf16 %v2455, %v2454
      %v2461 = vpack.c.bf16 %v2457, %v2456
      %2462 = vrot.lane.b32.xlu0 %v956, 16
      %v2463 = vpop.permute.xlu0 %2462
      %2464 = vrot.lane.b32.xlu0 %v957, 16
      %v2465 = vpop.permute.xlu0 %2464
      %2466 = vrot.lane.b32.xlu0 %v958, 16
      %v2467 = vpop.permute.xlu0 %2466
      %2468 = vrot.lane.b32.xlu0 %v959, 16
      %v2469 = vpop.permute.xlu0 %2468
      %v2475 = vsel %vm1109, %v2458, 0
      %v2478 = vsel %vm1109, %v2459, 0
      %v2481 = vsel %vm1109, %v2460, 0
      %v2484 = vsel %vm1109, %v2461, 0
      %2486 = vmatprep.subr.bf16.mxu0 0
      %2487 = vmatpush1.bf16.msra.mxu0 0
      %2488 = vmatprep.subr.bf16.mxu0 0
      %2489 = vmatpush1.bf16.msra.mxu0 0
      %2490 = vmatprep.subr.bf16.mxu0 0
      %2491 = vmatpush1.bf16.msra.mxu0 0
      %2492 = vmatprep.subr.bf16.mxu0 0
      %2493 = vmatpush1.bf16.msra.mxu0 0
      %2494 = vmatprep.subr.bf16.mxu0 0
      %2495 = vmatpush1.bf16.msra.mxu0 %v2469
      %2496 = vmatprep.subr.bf16.mxu0 0
      %2497 = vmatpush1.bf16.msra.mxu0 %v2467
      %2498 = vmatprep.subr.bf16.mxu0 0
      %2499 = vmatpush1.bf16.msra.mxu0 %v2465
      %2500 = vmatprep.subr.bf16.mxu0 0
      %2501 = vmatpush1.bf16.msra.mxu0 %v2463
      %2502 = vmatprep.subr.bf16.mxu0 0
      %2503 = vmatpush2.bf16.msra.mxu0 0
      %2504 = vmatprep.subr.bf16.mxu0 0
      %2505 = vmatpush2.bf16.msra.mxu0 0
      %2506 = vmatprep.subr.bf16.mxu0 0
      %2507 = vmatpush2.bf16.msra.mxu0 0
      %2508 = vmatprep.subr.bf16.mxu0 0
      %2509 = vmatpush2.bf16.msra.mxu0 0
      %2510 = vmatprep.subr.bf16.mxu0 0
      %2511 = vmatpush2.bf16.msra.mxu0 0
      %2512 = vmatprep.subr.bf16.mxu0 0
      %2513 = vmatpush2.bf16.msra.mxu0 0
      %2514 = vmatprep.subr.bf16.mxu0 0
      %2515 = vmatpush2.bf16.msra.mxu0 0
      %2516 = vmatprep.subr.bf16.mxu0 0
      %2517 = vmatpush2.bf16.msra.mxu0 0
      %2518 = vmatprep.mubr.bf16.mxu0 0
      %2519 = vmatmul.mubr.bf16.gmra.mxu0 %v2475
      %v2520 = vpop.f32.mrf.mxu0
      %v2521 = vadd.f32 0.0, %v2520
      %v2522 = vpop.f32.mrf.mxu0
      %v2523 = vpop.f32.mrf.mxu0
      %v2524 = vadd.f32 0.0, %v2523
      %v2525 = vpop.f32.mrf.mxu0
      %2526 = vmatprep.mubr.bf16.mxu0 0
      %2527 = vmatmul.mubr.bf16.gmra.mxu0 %v2478
      %v2528 = vpop.f32.mrf.mxu0
      %v2529 = vadd.f32 0.0, %v2528
      %v2530 = vpop.f32.mrf.mxu0
      %v2531 = vpop.f32.mrf.mxu0
      %v2532 = vadd.f32 0.0, %v2531
      %v2533 = vpop.f32.mrf.mxu0
      %2534 = vmatprep.mubr.bf16.mxu0 0
      %2535 = vmatmul.mubr.bf16.gmra.mxu0 %v2481
      %v2536 = vpop.f32.mrf.mxu0
      %v2537 = vadd.f32 0.0, %v2536
      %v2538 = vpop.f32.mrf.mxu0
      %v2539 = vpop.f32.mrf.mxu0
      %v2540 = vadd.f32 0.0, %v2539
      %v2541 = vpop.f32.mrf.mxu0
      %2542 = vmatprep.mubr.bf16.mxu0 0
      %2543 = vmatmul.mubr.bf16.gmra.mxu0 %v2484
      %v2544 = vpop.f32.mrf.mxu0
      %v2545 = vadd.f32 0.0, %v2544
      %v2546 = vpop.f32.mrf.mxu0
      %v2547 = vpop.f32.mrf.mxu0
      %v2548 = vadd.f32 0.0, %v2547
      %v2549 = vpop.f32.mrf.mxu0
      %2550 = vdwg.mxu0
      %v2552 = vsel %vm991, %v2344, 0
      %2554 = vmatprep.subr.bf16.mxu0 0
      %2555 = vmatpush1.bf16.xpose.msra.mxu0 0
      %2556 = vmatprep.subr.bf16.mxu0 0
      %2557 = vmatpush1.bf16.xpose.msra.mxu0 0
      %2558 = vmatprep.subr.bf16.mxu0 0
      %2559 = vmatpush1.bf16.xpose.msra.mxu0 0
      %2560 = vmatprep.subr.bf16.mxu0 0
      %2561 = vmatpush1.bf16.xpose.msra.mxu0 0
      %2562 = vmatprep.subr.bf16.mxu0 0
      %2563 = vmatpush1.bf16.xpose.msra.mxu0 0
      %2564 = vmatprep.subr.bf16.mxu0 0
      %2565 = vmatpush1.bf16.xpose.msra.mxu0 0
      %2566 = vmatprep.subr.bf16.mxu0 0
      %2567 = vmatpush1.bf16.xpose.msra.mxu0 0
      %2568 = vmatprep.subr.bf16.mxu0 0
      %2569 = vmatpush1.bf16.xpose.msra.mxu0 %v2552
      %2570 = vmatprep.subr.bf16.mxu0 0
      %2571 = vmatpush2.bf16.xpose.msra.mxu0 0
      %2572 = vmatprep.subr.bf16.mxu0 0
      %2573 = vmatpush2.bf16.xpose.msra.mxu0 0
      %2574 = vmatprep.subr.bf16.mxu0 0
      %2575 = vmatpush2.bf16.xpose.msra.mxu0 0
      %2576 = vmatprep.subr.bf16.mxu0 0
      %2577 = vmatpush2.bf16.xpose.msra.mxu0 0
      %2578 = vmatprep.subr.bf16.mxu0 0
      %2579 = vmatpush2.bf16.xpose.msra.mxu0 0
      %2580 = vmatprep.subr.bf16.mxu0 0
      %2581 = vmatpush2.bf16.xpose.msra.mxu0 0
      %2582 = vmatprep.subr.bf16.mxu0 0
      %2583 = vmatpush2.bf16.xpose.msra.mxu0 0
      %2584 = vmatprep.subr.bf16.mxu0 0
      %2585 = vmatpush2.bf16.xpose.msra.mxu0 0
      %2586 = vmatprep.mubr.bf16.mxu0 0
      %2587 = vmatmul.mubr.bf16.gmra.mxu0 %v2362
      %v2588 = vpop.f32.mrf.mxu0
      %v2589 = vadd.f32 %v2521, %v2588
      %v2590 = vpop.f32.mrf.mxu0
      %v2591 = vpop.f32.mrf.mxu0
      %v2592 = vadd.f32 %v2524, %v2591
      %v2593 = vpop.f32.mrf.mxu0
      %2594 = vmatprep.mubr.bf16.mxu0 0
      %2595 = vmatmul.mubr.bf16.gmra.mxu0 %v2365
      %v2596 = vpop.f32.mrf.mxu0
      %v2597 = vadd.f32 %v2529, %v2596
      %v2598 = vpop.f32.mrf.mxu0
      %v2599 = vpop.f32.mrf.mxu0
      %v2600 = vadd.f32 %v2532, %v2599
      %v2601 = vpop.f32.mrf.mxu0
      %2602 = vmatprep.mubr.bf16.mxu0 0
      %2603 = vmatmul.mubr.bf16.gmra.mxu0 %v2368
      %v2604 = vpop.f32.mrf.mxu0
      %v2605 = vadd.f32 %v2537, %v2604
      %v2606 = vpop.f32.mrf.mxu0
      %v2607 = vpop.f32.mrf.mxu0
      %v2608 = vadd.f32 %v2540, %v2607
      %v2609 = vpop.f32.mrf.mxu0
      %2610 = vmatprep.mubr.bf16.mxu0 0
      %2611 = vmatmul.mubr.bf16.gmra.mxu0 %v2371
      %v2612 = vpop.f32.mrf.mxu0
      %v2613 = vadd.f32 %v2545, %v2612
      %v2614 = vpop.f32.mrf.mxu0
      %v2615 = vpop.f32.mrf.mxu0
      %v2616 = vadd.f32 %v2548, %v2615
      %v2617 = vpop.f32.mrf.mxu0
      %2618 = vdwg.mxu0
      %2619 = vrot.lane.b32.xlu0 %v939, 104
      %v2620 = vpop.permute.xlu0 %2619
      %v2622 = vmul.f32 %v2342, %v2620
      %v2623 = vmul.f32 %v2343, %v2620
      %2624 = vxpose.xlu0.c.b16.start [1/8] %v2463, 128
      %2625 = vxpose.xlu0.c.b16.cont [2/8] %v2465, 128
      %2626 = vxpose.xlu0.c.b16.cont [3/8] %v2467, 128
      %2627 = vxpose.xlu0.c.b16.cont [4/8] %v2469, 128
      %2628 = vxpose.xlu0.c.b16.cont [5/8] 0, 128
      %2629 = vxpose.xlu0.c.b16.cont [6/8] 0, 128
      %2630 = vxpose.xlu0.c.b16.cont [7/8] 0, 128
      %2631 = vxpose.xlu0.c.b16.end [8/8] 0, 128
      %v2632 = vpop.trf.xlu0
      %v2633 = vpop.trf.xlu0
      %v2634 = vpop.trf.xlu0
      %v2635 = vpop.trf.xlu0
      %v2636 = vpop.trf.xlu0
      %v2637 = vpop.trf.xlu0
      %v2638 = vpop.trf.xlu0
      %v2639 = vpop.trf.xlu0
      %2640 = vrot.lane.b32.xlu0 %v952, 72
      %v2641 = vpop.permute.xlu0 %2640
      %2642 = vrot.lane.b32.xlu0 %v953, 72
      %v2643 = vpop.permute.xlu0 %2642
      %2644 = vrot.lane.b32.xlu0 %v954, 72
      %v2645 = vpop.permute.xlu0 %2644
      %2646 = vrot.lane.b32.xlu0 %v955, 72
      %v2647 = vpop.permute.xlu0 %2646
      %v2653 = vsel %vm1109, %v2632, 0
      %2655 = vmatprep.subr.bf16.mxu0 0
      %2656 = vmatpush1.bf16.msra.mxu0 0
      %2657 = vmatprep.subr.bf16.mxu0 0
      %2658 = vmatpush1.bf16.msra.mxu0 0
      %2659 = vmatprep.subr.bf16.mxu0 0
      %2660 = vmatpush1.bf16.msra.mxu0 0
      %2661 = vmatprep.subr.bf16.mxu0 0
      %2662 = vmatpush1.bf16.msra.mxu0 0
      %2663 = vmatprep.subr.bf16.mxu0 0
      %2664 = vmatpush1.bf16.msra.mxu0 %v2647
      %2665 = vmatprep.subr.bf16.mxu0 0
      %2666 = vmatpush1.bf16.msra.mxu0 %v2645
      %2667 = vmatprep.subr.bf16.mxu0 0
      %2668 = vmatpush1.bf16.msra.mxu0 %v2643
      %2669 = vmatprep.subr.bf16.mxu0 0
      %2670 = vmatpush1.bf16.msra.mxu0 %v2641
      %2671 = vmatprep.subr.bf16.mxu0 0
      %2672 = vmatpush2.bf16.msra.mxu0 0
      %2673 = vmatprep.subr.bf16.mxu0 0
      %2674 = vmatpush2.bf16.msra.mxu0 0
      %2675 = vmatprep.subr.bf16.mxu0 0
      %2676 = vmatpush2.bf16.msra.mxu0 0
      %2677 = vmatprep.subr.bf16.mxu0 0
      %2678 = vmatpush2.bf16.msra.mxu0 0
      %2679 = vmatprep.subr.bf16.mxu0 0
      %2680 = vmatpush2.bf16.msra.mxu0 0
      %2681 = vmatprep.subr.bf16.mxu0 0
      %2682 = vmatpush2.bf16.msra.mxu0 0
      %2683 = vmatprep.subr.bf16.mxu0 0
      %2684 = vmatpush2.bf16.msra.mxu0 0
      %2685 = vmatprep.subr.bf16.mxu0 0
      %2686 = vmatpush2.bf16.msra.mxu0 0
      %2687 = vmatprep.mubr.bf16.mxu0 0
      %2688 = vmatmul.mubr.bf16.gmra.mxu0 %v2653
      %v2689 = vpop.f32.mrf.mxu0
      %v2690 = vadd.f32 0.0, %v2689
      %v2691 = vpop.f32.mrf.mxu0
      %v2692 = vpop.f32.mrf.mxu0
      %v2693 = vadd.f32 0.0, %v2692
      %v2694 = vpop.f32.mrf.mxu0
      %2695 = vdwg.mxu0
      %v2696 = vadd.f32 %v2622, %v2690
      %v2697 = vadd.f32 %v2623, %v2693
      %2698 = vst.msk [vmem:[%s2341] sm:$0xff] %vm991, %v2696
      %2699 = vst.msk [vmem:[%s2341 + $0x8] sm:$0xff] %vm991, %v2697
      %v2700 = vmul.f32 %v2589, %v2589
      %v2701 = vmul.f32 %v2592, %v2592
      %v2702 = vmul.f32 %v2597, %v2597
      %v2703 = vmul.f32 %v2600, %v2600
      %v2704 = vmul.f32 %v2605, %v2605
      %v2705 = vmul.f32 %v2608, %v2608
      %v2706 = vmul.f32 %v2613, %v2613
      %v2707 = vmul.f32 %v2616, %v2616
      %v2708 = vsel %vm485, %v2700, 0.0
      %2709 = vadd.xlane.f32.xlu0 %v2708
      %v2710 = vpop.xlane.xlu0 %2709
      %v2711 = vsel %vm485, %v2701, 0.0
      %2712 = vadd.xlane.f32.xlu0 %v2711
      %v2713 = vpop.xlane.xlu0 %2712
      %v2714 = vsel %vm485, %v2702, 0.0
      %2715 = vadd.xlane.f32.xlu0 %v2714
      %v2716 = vpop.xlane.xlu0 %2715
      %v2717 = vsel %vm485, %v2703, 0.0
      %2718 = vadd.xlane.f32.xlu0 %v2717
      %v2719 = vpop.xlane.xlu0 %2718
      %v2720 = vsel %vm485, %v2704, 0.0
      %2721 = vadd.xlane.f32.xlu0 %v2720
      %v2722 = vpop.xlane.xlu0 %2721
      %v2723 = vsel %vm485, %v2705, 0.0
      %2724 = vadd.xlane.f32.xlu0 %v2723
      %v2725 = vpop.xlane.xlu0 %2724
      %v2726 = vsel %vm485, %v2706, 0.0
      %2727 = vadd.xlane.f32.xlu0 %v2726
      %v2728 = vpop.xlane.xlu0 %2727
      %v2729 = vsel %vm485, %v2707, 0.0
      %2730 = vadd.xlane.f32.xlu0 %v2729
      %v2731 = vpop.xlane.xlu0 %2730
      %v2732 = vmul.f32 %v2710, %v635
      %v2733 = vmul.f32 %v2713, %v635
      %v2734 = vmul.f32 %v2716, %v635
      %v2735 = vmul.f32 %v2719, %v635
      %v2736 = vmul.f32 %v2722, %v635
      %v2737 = vmul.f32 %v2725, %v635
      %v2738 = vmul.f32 %v2728, %v635
      %v2739 = vmul.f32 %v2731, %v635
      %v2740 = vadd.f32 %v2732, 1e-05
      %v2741 = vadd.f32 %v2733, 1e-05
      %v2742 = vadd.f32 %v2734, 1e-05
      %v2743 = vadd.f32 %v2735, 1e-05
      %v2744 = vadd.f32 %v2736, 1e-05
      %v2745 = vadd.f32 %v2737, 1e-05
      %v2746 = vadd.f32 %v2738, 1e-05
      %v2747 = vadd.f32 %v2739, 1e-05
      %v2748 = vrsqrt.pop %v2740
      %v2749 = vrsqrt.pop %v2741
      %v2750 = vrsqrt.pop %v2742
      %v2751 = vrsqrt.pop %v2743
      %v2752 = vrsqrt.pop %v2744
      %v2753 = vrsqrt.pop %v2745
      %v2754 = vrsqrt.pop %v2746
      %v2755 = vrsqrt.pop %v2747
      %v2756 = vmul.f32 %v2589, %v2748
      %v2757 = vmul.f32 %v2592, %v2749
      %v2758 = vmul.f32 %v2597, %v2750
      %v2759 = vmul.f32 %v2600, %v2751
      %v2760 = vmul.f32 %v2605, %v2752
      %v2761 = vmul.f32 %v2608, %v2753
      %v2762 = vmul.f32 %v2613, %v2754
      %v2763 = vmul.f32 %v2616, %v2755
      %2772 = vrot.lane.b32.xlu0 %v2756, 48
      %v2773 = vpop.permute.xlu0 %2772
      %2774 = vrot.lane.b32.xlu0 %v2757, 48
      %v2775 = vpop.permute.xlu0 %2774
      %2776 = vrot.lane.b32.xlu0 %v2758, 48
      %v2777 = vpop.permute.xlu0 %2776
      %2778 = vrot.lane.b32.xlu0 %v2759, 48
      %v2779 = vpop.permute.xlu0 %2778
      %2780 = vrot.lane.b32.xlu0 %v2760, 48
      %v2781 = vpop.permute.xlu0 %2780
      %2782 = vrot.lane.b32.xlu0 %v2761, 48
      %v2783 = vpop.permute.xlu0 %2782
      %2784 = vrot.lane.b32.xlu0 %v2762, 48
      %v2785 = vpop.permute.xlu0 %2784
      %2786 = vrot.lane.b32.xlu0 %v2763, 48
      %v2787 = vpop.permute.xlu0 %2786
      %vm2796 = vcmask 523648
      %2797 = vst.msk [vmem:[#allocation2] sm:$0xff] %vm2796, %v2773
      %2798 = vst.msk [vmem:[#allocation2 + $0x8] sm:$0xff] %vm2796, %v2775
      %2799 = vst.msk [vmem:[#allocation2 + $0x10] sm:$0xff] %vm2796, %v2777
      %2800 = vst.msk [vmem:[#allocation2 + $0x18] sm:$0xff] %vm2796, %v2779
      %2801 = vst.msk [vmem:[#allocation2 + $0x20] sm:$0xff] %vm2796, %v2781
      %2802 = vst.msk [vmem:[#allocation2 + $0x28] sm:$0xff] %vm2796, %v2783
      %2803 = vst.msk [vmem:[#allocation2 + $0x30] sm:$0xff] %vm2796, %v2785
      %2804 = vst.msk [vmem:[#allocation2 + $0x38] sm:$0xff] %vm2796, %v2787
      %v2805 = vsub.f32 0.0, %v418
      %v2806 = vsub.f32 0.0, %v422
      %v2807 = vsub.f32 0.0, %v428
      %v2808 = vsub.f32 0.0, %v432
      %v2809 = vsub.f32 0.0, %v438
      %v2810 = vsub.f32 0.0, %v442
      %v2811 = vsub.f32 0.0, %v448
      %v2812 = vsub.f32 0.0, %v452
      %v2813 = vmul.f32 %v2805, 1.442695
      %v2814 = vpow.pop %v2813
      %v2815 = vmul.f32 %v2806, 1.442695
      %v2816 = vpow.pop %v2815
      %v2817 = vmul.f32 %v2807, 1.442695
      %v2818 = vpow.pop %v2817
      %v2819 = vmul.f32 %v2808, 1.442695
      %v2820 = vpow.pop %v2819
      %v2821 = vmul.f32 %v2809, 1.442695
      %v2822 = vpow.pop %v2821
      %v2823 = vmul.f32 %v2810, 1.442695
      %v2824 = vpow.pop %v2823
      %v2825 = vmul.f32 %v2811, 1.442695
      %v2826 = vpow.pop %v2825
      %v2827 = vmul.f32 %v2812, 1.442695
      %v2828 = vpow.pop %v2827
      %v2829 = vadd.f32 %v2814, 1.0
      %v2830 = vadd.f32 %v2816, 1.0
      %v2831 = vadd.f32 %v2818, 1.0
      %v2832 = vadd.f32 %v2820, 1.0
      %v2833 = vadd.f32 %v2822, 1.0
      %v2834 = vadd.f32 %v2824, 1.0
      %v2835 = vadd.f32 %v2826, 1.0
      %v2836 = vadd.f32 %v2828, 1.0
      %v2837 = vrcp.pop %v2829
      %v2838 = vmul.f32 1.0, %v2837
      %v2839 = vrcp.pop %v2830
      %v2840 = vmul.f32 1.0, %v2839
      %v2841 = vrcp.pop %v2831
      %v2842 = vmul.f32 1.0, %v2841
      %v2843 = vrcp.pop %v2832
      %v2844 = vmul.f32 1.0, %v2843
      %v2845 = vrcp.pop %v2833
      %v2846 = vmul.f32 1.0, %v2845
      %v2847 = vrcp.pop %v2834
      %v2848 = vmul.f32 1.0, %v2847
      %v2849 = vrcp.pop %v2835
      %v2850 = vmul.f32 1.0, %v2849
      %v2851 = vrcp.pop %v2836
      %v2852 = vmul.f32 1.0, %v2851
      %v2853 = vmul.f32 %v418, %v2838
      %v2854 = vmul.f32 %v422, %v2840
      %v2855 = vmul.f32 %v428, %v2842
      %v2856 = vmul.f32 %v432, %v2844
      %v2857 = vmul.f32 %v438, %v2846
      %v2858 = vmul.f32 %v442, %v2848
      %v2859 = vmul.f32 %v448, %v2850
      %v2860 = vmul.f32 %v452, %v2852
      %v2861 = vld [vmem:[#allocation2] sm:$0xff]
      %v2862 = vld [vmem:[#allocation2 + $0x8] sm:$0xff]
      %v2863 = vld [vmem:[#allocation2 + $0x10] sm:$0xff]
      %v2864 = vld [vmem:[#allocation2 + $0x18] sm:$0xff]
      %v2865 = vld [vmem:[#allocation2 + $0x20] sm:$0xff]
      %v2866 = vld [vmem:[#allocation2 + $0x28] sm:$0xff]
      %v2867 = vld [vmem:[#allocation2 + $0x30] sm:$0xff]
      %v2868 = vld [vmem:[#allocation2 + $0x38] sm:$0xff]
      %v2869 = vld [vmem:[%s4] sm:$0x1]
      %v2871 = vlaneseq
      %v2872 = vshrl.u32 %v2871, 7
      %v2873 = vsub.s32 0, %v2872
      %v2874 = vrot.slane %v2869, %v2873
      %v2876 = vmul.f32 %v2861, %v2874
      %v2877 = vmul.f32 %v2862, %v2874
      %v2878 = vmul.f32 %v2863, %v2874
      %v2879 = vmul.f32 %v2864, %v2874
      %v2880 = vmul.f32 %v2865, %v2874
      %v2881 = vmul.f32 %v2866, %v2874
      %v2882 = vmul.f32 %v2867, %v2874
      %v2883 = vmul.f32 %v2868, %v2874
      %v2884 = vmul.f32 %v2876, %v2853
      %v2885 = vmul.f32 %v2877, %v2854
      %v2886 = vmul.f32 %v2878, %v2855
      %v2887 = vmul.f32 %v2879, %v2856
      %v2888 = vmul.f32 %v2880, %v2857
      %v2889 = vmul.f32 %v2881, %v2858
      %v2890 = vmul.f32 %v2882, %v2859
      %v2891 = vmul.f32 %v2883, %v2860
      %v2892 = vpack.c.bf16 %v2885, %v2884
      %v2893 = vpack.c.bf16 %v2887, %v2886
      %v2894 = vpack.c.bf16 %v2889, %v2888
      %v2895 = vpack.c.bf16 %v2891, %v2890
      %v2896 = vld [vmem:[%s5] sm:$0xf]
      %v2897 = vld [vmem:[%s5 + $0x4] sm:$0xf]
      %v2898 = vld [vmem:[%s5 + $0x8] sm:$0xf]
      %v2899 = vld [vmem:[%s5 + $0xc] sm:$0xf]
      %v2900 = vld [vmem:[%s5 + $0x10] sm:$0xf]
      %v2901 = vld [vmem:[%s5 + $0x14] sm:$0xf]
      %v2902 = vld [vmem:[%s5 + $0x18] sm:$0xf]
      %v2903 = vld [vmem:[%s5 + $0x1c] sm:$0xf]
      %v2912 = vunpack.c.l.b16 %v2896
      %v2913 = vunpack.c.l.b16 %v2897
      %v2914 = vunpack.c.l.b16 %v2898
      %v2915 = vunpack.c.l.b16 %v2899
      %v2916 = vunpack.c.l.b16 %v2900
      %v2917 = vunpack.c.l.b16 %v2901
      %v2918 = vunpack.c.l.b16 %v2902
      %v2919 = vunpack.c.l.b16 %v2903
      %v2920 = vpack.c.b16 %v2913, %v2912
      %v2921 = vpack.c.b16 %v2915, %v2914
      %v2922 = vpack.c.b16 %v2917, %v2916
      %v2923 = vpack.c.b16 %v2919, %v2918
      %v2929 = vsel %vm1109, %v2892, 0
      %v2932 = vsel %vm1109, %v2893, 0
      %v2935 = vsel %vm1109, %v2894, 0
      %v2938 = vsel %vm1109, %v2895, 0
      %2940 = vmatprep.subr.bf16.mxu0 0
      %2941 = vmatpush1.bf16.msra.mxu0 0
      %2942 = vmatprep.subr.bf16.mxu0 0
      %2943 = vmatpush1.bf16.msra.mxu0 0
      %2944 = vmatprep.subr.bf16.mxu0 0
      %2945 = vmatpush1.bf16.msra.mxu0 0
      %2946 = vmatprep.subr.bf16.mxu0 0
      %2947 = vmatpush1.bf16.msra.mxu0 0
      %2948 = vmatprep.subr.bf16.mxu0 0
      %2949 = vmatpush1.bf16.msra.mxu0 %v2923
      %2950 = vmatprep.subr.bf16.mxu0 0
      %2951 = vmatpush1.bf16.msra.mxu0 %v2922
      %2952 = vmatprep.subr.bf16.mxu0 0
      %2953 = vmatpush1.bf16.msra.mxu0 %v2921
      %2954 = vmatprep.subr.bf16.mxu0 0
      %2955 = vmatpush1.bf16.msra.mxu0 %v2920
      %2956 = vmatprep.subr.bf16.mxu0 0
      %2957 = vmatpush2.bf16.msra.mxu0 0
      %2958 = vmatprep.subr.bf16.mxu0 0
      %2959 = vmatpush2.bf16.msra.mxu0 0
      %2960 = vmatprep.subr.bf16.mxu0 0
      %2961 = vmatpush2.bf16.msra.mxu0 0
      %2962 = vmatprep.subr.bf16.mxu0 0
      %2963 = vmatpush2.bf16.msra.mxu0 0
      %2964 = vmatprep.subr.bf16.mxu0 0
      %2965 = vmatpush2.bf16.msra.mxu0 0
      %2966 = vmatprep.subr.bf16.mxu0 0
      %2967 = vmatpush2.bf16.msra.mxu0 0
      %2968 = vmatprep.subr.bf16.mxu0 0
      %2969 = vmatpush2.bf16.msra.mxu0 0
      %2970 = vmatprep.subr.bf16.mxu0 0
      %2971 = vmatpush2.bf16.msra.mxu0 0
      %2972 = vmatprep.mubr.bf16.mxu0 0
      %2973 = vmatmul.mubr.bf16.gmra.mxu0 %v2929
      %v2974 = vpop.f32.mrf.mxu0
      %v2975 = vadd.f32 0.0, %v2974
      %v2976 = vpop.f32.mrf.mxu0
      %v2977 = vpop.f32.mrf.mxu0
      %v2978 = vadd.f32 0.0, %v2977
      %v2979 = vpop.f32.mrf.mxu0
      %2980 = vmatprep.mubr.bf16.mxu0 0
      %2981 = vmatmul.mubr.bf16.gmra.mxu0 %v2932
      %v2982 = vpop.f32.mrf.mxu0
      %v2983 = vadd.f32 0.0, %v2982
      %v2984 = vpop.f32.mrf.mxu0
      %v2985 = vpop.f32.mrf.mxu0
      %v2986 = vadd.f32 0.0, %v2985
      %v2987 = vpop.f32.mrf.mxu0
      %2988 = vmatprep.mubr.bf16.mxu0 0
      %2989 = vmatmul.mubr.bf16.gmra.mxu0 %v2935
      %v2990 = vpop.f32.mrf.mxu0
      %v2991 = vadd.f32 0.0, %v2990
      %v2992 = vpop.f32.mrf.mxu0
      %v2993 = vpop.f32.mrf.mxu0
      %v2994 = vadd.f32 0.0, %v2993
      %v2995 = vpop.f32.mrf.mxu0
      %2996 = vmatprep.mubr.bf16.mxu0 0
      %2997 = vmatmul.mubr.bf16.gmra.mxu0 %v2938
      %v2998 = vpop.f32.mrf.mxu0
      %v2999 = vadd.f32 0.0, %v2998
      %v3000 = vpop.f32.mrf.mxu0
      %v3001 = vpop.f32.mrf.mxu0
      %v3002 = vadd.f32 0.0, %v3001
      %v3003 = vpop.f32.mrf.mxu0
      %3004 = vdwg.mxu0
      %3005 = vst.msk [vmem:[%s316] sm:$0xff] %vm368, %v2975
      %3006 = vst.msk [vmem:[%s316 + $0x8] sm:$0xff] %vm368, %v2978
      %3007 = vst.msk [vmem:[%s316 + $0x10] sm:$0xff] %vm368, %v2983
      %3008 = vst.msk [vmem:[%s316 + $0x18] sm:$0xff] %vm368, %v2986
      %3009 = vst.msk [vmem:[%s316 + $0x20] sm:$0xff] %vm368, %v2991
      %3010 = vst.msk [vmem:[%s316 + $0x28] sm:$0xff] %vm368, %v2994
      %3011 = vst.msk [vmem:[%s316 + $0x30] sm:$0xff] %vm368, %v2999
      %3012 = vst.msk [vmem:[%s316 + $0x38] sm:$0xff] %vm368, %v3002
      %s3013 = smul.u32 8, %s23
      %p3014 = scmp.lt.s32.totalorder %s22, 1
      %s3015 = scalar_select %p3014, %s22, 1
      %p3016 = scmp.lt.s32.totalorder %s3013, 15
      %s3017 = scalar_select %p3016, %s3013, 15
      %s3018 = smul.addr %s3015, 16
      %s3019 = sadd.s32 %s3017, %s3018
      %s3020 = smul.addr %s3019, 8
      %s3021 = scalar_lea.vmem %s7, %s3020
      // Predicated region
      $region53: #{tpu_custom_call.1} parent=47 // pred_check
        %p3022 = pneg %p204
      $region54: #{tpu_custom_call.1} parent=47 // pred_check_branch
        %3024 = sbr.rel (%p3022) target = $region56
      $region55: #{tpu_custom_call.1} parent=47 // pred_region
        %s3025 = smul.u32 8, %s23
      $region56: #{tpu_custom_call.1} parent=47 // pred_fallthru
        _
    $region48: #{tpu_custom_call.1} parent=5 // pred_fallthru
      _
    %p3026 = scmp.le.s32.totalorder 2, %s13
    // Predicated region
    $region57: #{tpu_custom_call.1} parent=5 // pred_check
      %p3027 = pneg %p3026
    $region58: #{tpu_custom_call.1} parent=5 // pred_check_branch
      %3029 = sbr.rel (%p3027) target = $region60
    $region59: #{tpu_custom_call.1} parent=5 // pred_region
      %s3030 = ssub.s32 %s13, 2
      // Predicated region
      $region61: #{tpu_custom_call.1} parent=59 // pred_check
        %p3031 = pneg %p210
      $region62: #{tpu_custom_call.1} parent=59 // pred_check_branch
        %3033 = sbr.rel (%p3031) target = $region64
      $region63: #{tpu_custom_call.1} parent=59 // pred_region
        %s3034 = smul.u32 8, %s25
        %p3035 = scmp.lt.s32.totalorder %s24, 1
        %s3036 = scalar_select %p3035, %s24, 1
        %p3037 = scmp.lt.s32.totalorder %s3034, 15
        %s3038 = scalar_select %p3037, %s3034, 15
        %s3039 = smul.addr %s3036, 16
        %s3040 = sadd.s32 %s3038, %s3039
        %s3041 = smul.addr %s3040, 8
        %s3042 = scalar_lea.vmem %s7, %s3041
      $region64: #{tpu_custom_call.1} parent=59 // pred_fallthru
        _
    $region60: #{tpu_custom_call.1} parent=5 // pred_fallthru
      _
  $region6: #{tpu_custom_call.1} parent=0 // loop_footer
    %s17 = sadd.s32 1, %s13
  $region7: #{tpu_custom_call.1} parent=0 // loop_footer_branch
    %12 = sbr.rel target = $region3
  $region8: #{tpu_custom_call.1} parent=0 // loop_exit
    _

</llo_original>
